<compile_context>
chip_gen: v5e
topology: v5e:2x2
jax: 0.10.0
libtpu: 0.0.40
codegen_flags: <defaults>
</compile_context>

<pallas_src>
import functools

import jax
import jax.numpy as jnp
from jax import lax
from jax.experimental import pallas as pl
from jax.experimental.pallas import tpu as pltpu

IN_DIM = 64
HIDDEN = 5120
OUT_DIM = 50
OUT_PAD = 128  # lane-dense output slab; sliced back to OUT_DIM in the wrapper


def _round_up(x, m):
    return (x + m - 1) // m * m


def _rna_kernel(x_ref, w1_ref, b1_ref, w2_ref, b2_ref, o_ref, *, th):
    """One (tm, IN_DIM) row tile against VMEM-resident weights.

    grid = (num_row_tiles,).  Hidden dim is processed in th-sized chunks; the
    only materialized inter-matmul tensor is the bf16 (tm, th) activation, and
    the output accumulator is loop-carried (written to o_ref once).
    """
    n_chunks = HIDDEN // th
    x = x_ref[...]                       # (tm, 64), loaded once per row tile

    def body(k, acc):
        off = pl.multiple_of(k * th, th)
        # Linear(64 -> th chunk): MXU matmul, f32 accumulation.
        h = jnp.dot(x, w1_ref[:, pl.ds(off, th)],
                    preferred_element_type=jnp.float32)
        # Fused bias + ReLU + cast: the stored (tm, th) intermediate is bf16
        # (compute_dtype), not f32 -> halves vector-store traffic.
        h = jnp.maximum(h + b1_ref[:, pl.ds(off, th)], 0.0).astype(w2_ref.dtype)
        # Dropout(0.25): identity in eval/inference mode.
        # Linear(th chunk -> OUT_PAD), accumulated in the f32 loop carry.
        return acc + jnp.dot(h, w2_ref[pl.ds(off, th), :],
                             preferred_element_type=jnp.float32)

    acc = lax.fori_loop(0, n_chunks, body,
                        jnp.zeros(o_ref.shape, jnp.float32), unroll=True)
    o_ref[...] = (acc + b2_ref[...]).astype(o_ref.dtype)


def prepare_params(w1, b1, w2, b2, compute_dtype=jnp.bfloat16):
    """Cast / pad weights ONCE (do not run this per forward call).

    w1: (64, 5120), b1: (5120,), w2: (5120, 50), b2: (50,)  (torch weight.T).
    """
    assert w1.shape == (IN_DIM, HIDDEN) and w2.shape == (HIDDEN, OUT_DIM)
    w1c = jnp.asarray(w1, compute_dtype)
    w2c = jnp.pad(jnp.asarray(w2, jnp.float32),
                  ((0, 0), (0, OUT_PAD - OUT_DIM))).astype(compute_dtype)
    b1r = jnp.asarray(b1, jnp.float32).reshape(1, HIDDEN)
    b2r = jnp.pad(jnp.asarray(b2, jnp.float32).reshape(1, OUT_DIM),
                  ((0, 0), (0, OUT_PAD - OUT_DIM)))
    return w1c, b1r, w2c, b2r


def rna_model_forward(src, prepared, *, tm=1024, th=1024):
    """src: (M, 64) float32, prepared = prepare_params(...). Returns (M, 50) f32."""
    w1c, b1r, w2c, b2r = prepared
    compute_dtype = w1c.dtype
    M, K = src.shape
    assert K == IN_DIM
    assert HIDDEN % th == 0 and th % 128 == 0

    # Sublane rounding: bf16 packs (16,128), f32 packs (8,128).
    sub = 16 if compute_dtype == jnp.bfloat16 else 8

    # Row tile: big tiles for large batches, but >= 2 tiles whenever M > 32 so
    # both v7x TensorCores get work (costs one negligible extra grid step on
    # single-TC v5e/v6e).
    if M > 32:
        tm_cap = _round_up(pl.cdiv(M, 2), sub)
    else:
        tm_cap = _round_up(M, sub)
    tm_eff = min(_round_up(tm, sub), tm_cap)
    m_pad = _round_up(M, tm_eff)

    x = src.astype(compute_dtype)
    if m_pad != M:
        x = jnp.pad(x, ((0, m_pad - M), (0, 0)))

    grid = (m_pad // tm_eff,)

    out = pl.pallas_call(
        functools.partial(_rna_kernel, th=th),
        out_shape=jax.ShapeDtypeStruct((m_pad, OUT_PAD), jnp.float32),
        grid_spec=pltpu.PrefetchScalarGridSpec(
            num_scalar_prefetch=0,
            grid=grid,
            in_specs=[
                pl.BlockSpec((tm_eff, IN_DIM), lambda i: (i, 0)),    # x row tile
                pl.BlockSpec((IN_DIM, HIDDEN), lambda i: (0, 0)),    # W1 resident
                pl.BlockSpec((1, HIDDEN), lambda i: (0, 0)),         # b1 resident
                pl.BlockSpec((HIDDEN, OUT_PAD), lambda i: (0, 0)),   # W2 resident
                pl.BlockSpec((1, OUT_PAD), lambda i: (0, 0)),        # b2 resident
            ],
            out_specs=pl.BlockSpec((tm_eff, OUT_PAD), lambda i: (i, 0)),
        ),
        compiler_params=pltpu.CompilerParams(
            dimension_semantics=("parallel",),   # row tiles shard across TCs (v7x)
            vmem_limit_bytes=32 << 20,           # safe on v5e/v6e (128 MiB) and v7x (64 MiB)
        ),
    )(x, w1c, b1r, w2c, b2r)

    # Padded batch rows produce relu(b1)@W2+b2 garbage; this slice removes them.
    return out[:M, :OUT_DIM]


def rna_model_forward_raw(src, w1, b1, w2, b2, *, tm=1024, th=1024,
                          compute_dtype=jnp.bfloat16):
    """Convenience one-shot path (prepares weights inline; avoid in hot loops)."""
    return rna_model_forward(src, prepare_params(w1, b1, w2, b2, compute_dtype),
                             tm=tm, th=th)


def init_params(key):
    """Deterministic init matching nn.Linear default (uniform +-1/sqrt(fan_in))."""
    k1, k2, k3, k4 = jax.random.split(key, 4)
    bound1 = 1.0 / (IN_DIM ** 0.5)
    bound2 = 1.0 / (HIDDEN ** 0.5)
    w1 = jax.random.uniform(k1, (IN_DIM, HIDDEN), jnp.float32, -bound1, bound1)
    b1 = jax.random.uniform(k2, (HIDDEN,), jnp.float32, -bound1, bound1)
    w2 = jax.random.uniform(k3, (HIDDEN, OUT_DIM), jnp.float32, -bound2, bound2)
    b2 = jax.random.uniform(k4, (OUT_DIM,), jnp.float32, -bound2, bound2)
    return w1, b1, w2, b2


def _reference(src, w1, b1, w2, b2):
    return jnp.maximum(src @ w1 + b1, 0.0) @ w2 + b2


if __name__ == "__main__":
    key = jax.random.PRNGKey(0)
    kx, kp = jax.random.split(key)
    w1, b1, w2, b2 = init_params(kp)

    # Cast / pad weights once (cached outside the per-call path).
    params_bf16 = prepare_params(w1, b1, w2, b2, compute_dtype=jnp.bfloat16)
    params_f32 = prepare_params(w1, b1, w2, b2, compute_dtype=jnp.float32)

    # Small inference-style batch (single grid point path).
    M_small = 8
    src_small = jax.random.normal(kx, (M_small, IN_DIM), jnp.float32)
    ref_small = _reference(src_small, w1, b1, w2, b2)

    # Pure-f32 path: tight check against the reference.
    out_f32 = jax.block_until_ready(rna_model_forward(src_small, params_f32))
    assert out_f32.shape == (M_small, OUT_DIM)
    assert jnp.allclose(out_f32, ref_small, atol=1e-3, rtol=1e-3)

    # Default bf16-MXU path (f32 accumulation): looser tolerance.
    out_bf16 = jax.block_until_ready(rna_model_forward(src_small, params_bf16))
    assert out_bf16.shape == (M_small, OUT_DIM)
    assert jnp.allclose(out_bf16, ref_small, atol=2e-2, rtol=2e-2)

    # Larger non-multiple batch: exercises >=2 row tiles, padding, grid > 1.
    M_big = 300
    src_big = jax.random.normal(jax.random.PRNGKey(1), (M_big, IN_DIM), jnp.float32)
    ref_big = _reference(src_big, w1, b1, w2, b2)
    out_big = jax.block_until_ready(rna_model_forward(src_big, params_bf16))
    assert out_big.shape == (M_big, OUT_DIM)
    assert jnp.allclose(out_big, ref_big, atol=2e-2, rtol=2e-2)

    # Batch large enough to use the full tm=1024 row tile.
    M_huge = 2048 + 64
    src_huge = jax.random.normal(jax.random.PRNGKey(2), (M_huge, IN_DIM), jnp.float32)
    ref_huge = _reference(src_huge, w1, b1, w2, b2)
    out_huge = jax.block_until_ready(rna_model_forward(src_huge, params_bf16))
    assert out_huge.shape == (M_huge, OUT_DIM)
    assert jnp.allclose(out_huge, ref_huge, atol=2e-2, rtol=2e-2)

    print("KERNEL_OK")
</pallas_src>

<mosaic_0001>
module attributes {stable_mosaic.version = 11 : i64} {
  func.func @_rna_kernel(%arg0: i32, %arg1: memref<8x64xf32, #tpu.memory_space<vmem>>, %arg2: memref<64x5120xf32, #tpu.memory_space<vmem>>, %arg3: memref<1x5120xf32, #tpu.memory_space<vmem>>, %arg4: memref<5120x128xf32, #tpu.memory_space<vmem>>, %arg5: memref<1x128xf32, #tpu.memory_space<vmem>>, %arg6: memref<8x128xf32, #tpu.memory_space<vmem>>) attributes {dimension_semantics = [#tpu.dimension_semantics<parallel>], iteration_bounds = array<i64: 1>, scalar_prefetch = 0 : i64, scratch_operands = 0 : i64, tpu.core_type = #tpu.core_type<tc>, window_params = [{transform_indices = @transform_0, window_bounds = array<i64: 8, 64>}, {pipeline_mode = #tpu.pipeline_mode<synchronous>, transform_indices = @transform_1, window_bounds = array<i64: 64, 5120>}, {pipeline_mode = #tpu.pipeline_mode<synchronous>, transform_indices = @transform_2, window_bounds = array<i64: 1, 5120>}, {pipeline_mode = #tpu.pipeline_mode<synchronous>, transform_indices = @transform_3, window_bounds = array<i64: 5120, 128>}, {pipeline_mode = #tpu.pipeline_mode<synchronous>, transform_indices = @transform_4, window_bounds = array<i64: 1, 128>}, {transform_indices = @transform_5, window_bounds = array<i64: 8, 128>}]} {
    %c0 = arith.constant 0 : index
    %c0_0 = arith.constant 0 : index
    %0 = vector.load %arg1[%c0, %c0_0] : memref<8x64xf32, #tpu.memory_space<vmem>>, vector<8x64xf32>
    %cst = arith.constant 0.000000e+00 : f32
    %1 = vector.broadcast %cst : f32 to vector<8x128xf32>
    %c0_i32 = arith.constant 0 : i32
    %c1024_i32 = arith.constant 1024 : i32
    %2 = arith.muli %c0_i32, %c1024_i32 : i32
    %3 = tpu.assume_multiple %2, 1024 : i32
    %c0_1 = arith.constant 0 : index
    %4 = arith.index_cast %3 : i32 to index
    %5 = vector.load %arg2[%c0_1, %4] : memref<64x5120xf32, #tpu.memory_space<vmem>>, vector<64x1024xf32>
    %cst_2 = arith.constant dense<0.000000e+00> : vector<8x1024xf32>
    %6 = tpu.matmul %0, %5, %cst_2 {dimension_numbers = #tpu.dot_dimension_numbers<[1], [0], [0], [1], [0, 0, 1, 1], [], []>} : vector<8x64xf32>, vector<64x1024xf32>, vector<8x1024xf32> -> vector<8x1024xf32>
    %c0_3 = arith.constant 0 : index
    %7 = arith.index_cast %3 : i32 to index
    %8 = vector.load %arg3[%c0_3, %7] : memref<1x5120xf32, #tpu.memory_space<vmem>>, vector<1x1024xf32>
    %9 = vector.broadcast %8 : vector<1x1024xf32> to vector<8x1024xf32>
    %10 = arith.addf %6, %9 : vector<8x1024xf32>
    %cst_4 = arith.constant 0.000000e+00 : f32
    %11 = vector.broadcast %cst_4 : f32 to vector<8x1024xf32>
    %12 = arith.maximumf %10, %11 : vector<8x1024xf32>
    %13 = arith.index_cast %3 : i32 to index
    %c0_5 = arith.constant 0 : index
    %14 = vector.load %arg4[%13, %c0_5] : memref<5120x128xf32, #tpu.memory_space<vmem>>, vector<1024x128xf32>
    %cst_6 = arith.constant dense<0.000000e+00> : vector<8x128xf32>
    %15 = tpu.matmul %12, %14, %cst_6 {dimension_numbers = #tpu.dot_dimension_numbers<[1], [0], [0], [1], [0, 0, 1, 1], [], []>} : vector<8x1024xf32>, vector<1024x128xf32>, vector<8x128xf32> -> vector<8x128xf32>
    %16 = arith.addf %1, %15 : vector<8x128xf32>
    %c1_i32 = arith.constant 1 : i32
    %c1024_i32_7 = arith.constant 1024 : i32
    %17 = arith.muli %c1_i32, %c1024_i32_7 : i32
    %18 = tpu.assume_multiple %17, 1024 : i32
    %c0_8 = arith.constant 0 : index
    %19 = arith.index_cast %18 : i32 to index
    %20 = vector.load %arg2[%c0_8, %19] : memref<64x5120xf32, #tpu.memory_space<vmem>>, vector<64x1024xf32>
    %cst_9 = arith.constant dense<0.000000e+00> : vector<8x1024xf32>
    %21 = tpu.matmul %0, %20, %cst_9 {dimension_numbers = #tpu.dot_dimension_numbers<[1], [0], [0], [1], [0, 0, 1, 1], [], []>} : vector<8x64xf32>, vector<64x1024xf32>, vector<8x1024xf32> -> vector<8x1024xf32>
    %c0_10 = arith.constant 0 : index
    %22 = arith.index_cast %18 : i32 to index
    %23 = vector.load %arg3[%c0_10, %22] : memref<1x5120xf32, #tpu.memory_space<vmem>>, vector<1x1024xf32>
    %24 = vector.broadcast %23 : vector<1x1024xf32> to vector<8x1024xf32>
    %25 = arith.addf %21, %24 : vector<8x1024xf32>
    %cst_11 = arith.constant 0.000000e+00 : f32
    %26 = vector.broadcast %cst_11 : f32 to vector<8x1024xf32>
    %27 = arith.maximumf %25, %26 : vector<8x1024xf32>
    %28 = arith.index_cast %18 : i32 to index
    %c0_12 = arith.constant 0 : index
    %29 = vector.load %arg4[%28, %c0_12] : memref<5120x128xf32, #tpu.memory_space<vmem>>, vector<1024x128xf32>
    %cst_13 = arith.constant dense<0.000000e+00> : vector<8x128xf32>
    %30 = tpu.matmul %27, %29, %cst_13 {dimension_numbers = #tpu.dot_dimension_numbers<[1], [0], [0], [1], [0, 0, 1, 1], [], []>} : vector<8x1024xf32>, vector<1024x128xf32>, vector<8x128xf32> -> vector<8x128xf32>
    %31 = arith.addf %16, %30 : vector<8x128xf32>
    %c2_i32 = arith.constant 2 : i32
    %c1024_i32_14 = arith.constant 1024 : i32
    %32 = arith.muli %c2_i32, %c1024_i32_14 : i32
    %33 = tpu.assume_multiple %32, 1024 : i32
    %c0_15 = arith.constant 0 : index
    %34 = arith.index_cast %33 : i32 to index
    %35 = vector.load %arg2[%c0_15, %34] : memref<64x5120xf32, #tpu.memory_space<vmem>>, vector<64x1024xf32>
    %cst_16 = arith.constant dense<0.000000e+00> : vector<8x1024xf32>
    %36 = tpu.matmul %0, %35, %cst_16 {dimension_numbers = #tpu.dot_dimension_numbers<[1], [0], [0], [1], [0, 0, 1, 1], [], []>} : vector<8x64xf32>, vector<64x1024xf32>, vector<8x1024xf32> -> vector<8x1024xf32>
    %c0_17 = arith.constant 0 : index
    %37 = arith.index_cast %33 : i32 to index
    %38 = vector.load %arg3[%c0_17, %37] : memref<1x5120xf32, #tpu.memory_space<vmem>>, vector<1x1024xf32>
    %39 = vector.broadcast %38 : vector<1x1024xf32> to vector<8x1024xf32>
    %40 = arith.addf %36, %39 : vector<8x1024xf32>
    %cst_18 = arith.constant 0.000000e+00 : f32
    %41 = vector.broadcast %cst_18 : f32 to vector<8x1024xf32>
    %42 = arith.maximumf %40, %41 : vector<8x1024xf32>
    %43 = arith.index_cast %33 : i32 to index
    %c0_19 = arith.constant 0 : index
    %44 = vector.load %arg4[%43, %c0_19] : memref<5120x128xf32, #tpu.memory_space<vmem>>, vector<1024x128xf32>
    %cst_20 = arith.constant dense<0.000000e+00> : vector<8x128xf32>
    %45 = tpu.matmul %42, %44, %cst_20 {dimension_numbers = #tpu.dot_dimension_numbers<[1], [0], [0], [1], [0, 0, 1, 1], [], []>} : vector<8x1024xf32>, vector<1024x128xf32>, vector<8x128xf32> -> vector<8x128xf32>
    %46 = arith.addf %31, %45 : vector<8x128xf32>
    %c3_i32 = arith.constant 3 : i32
    %c1024_i32_21 = arith.constant 1024 : i32
    %47 = arith.muli %c3_i32, %c1024_i32_21 : i32
    %48 = tpu.assume_multiple %47, 1024 : i32
    %c0_22 = arith.constant 0 : index
    %49 = arith.index_cast %48 : i32 to index
    %50 = vector.load %arg2[%c0_22, %49] : memref<64x5120xf32, #tpu.memory_space<vmem>>, vector<64x1024xf32>
    %cst_23 = arith.constant dense<0.000000e+00> : vector<8x1024xf32>
    %51 = tpu.matmul %0, %50, %cst_23 {dimension_numbers = #tpu.dot_dimension_numbers<[1], [0], [0], [1], [0, 0, 1, 1], [], []>} : vector<8x64xf32>, vector<64x1024xf32>, vector<8x1024xf32> -> vector<8x1024xf32>
    %c0_24 = arith.constant 0 : index
    %52 = arith.index_cast %48 : i32 to index
    %53 = vector.load %arg3[%c0_24, %52] : memref<1x5120xf32, #tpu.memory_space<vmem>>, vector<1x1024xf32>
    %54 = vector.broadcast %53 : vector<1x1024xf32> to vector<8x1024xf32>
    %55 = arith.addf %51, %54 : vector<8x1024xf32>
    %cst_25 = arith.constant 0.000000e+00 : f32
    %56 = vector.broadcast %cst_25 : f32 to vector<8x1024xf32>
    %57 = arith.maximumf %55, %56 : vector<8x1024xf32>
    %58 = arith.index_cast %48 : i32 to index
    %c0_26 = arith.constant 0 : index
    %59 = vector.load %arg4[%58, %c0_26] : memref<5120x128xf32, #tpu.memory_space<vmem>>, vector<1024x128xf32>
    %cst_27 = arith.constant dense<0.000000e+00> : vector<8x128xf32>
    %60 = tpu.matmul %57, %59, %cst_27 {dimension_numbers = #tpu.dot_dimension_numbers<[1], [0], [0], [1], [0, 0, 1, 1], [], []>} : vector<8x1024xf32>, vector<1024x128xf32>, vector<8x128xf32> -> vector<8x128xf32>
    %61 = arith.addf %46, %60 : vector<8x128xf32>
    %c4_i32 = arith.constant 4 : i32
    %c1024_i32_28 = arith.constant 1024 : i32
    %62 = arith.muli %c4_i32, %c1024_i32_28 : i32
    %63 = tpu.assume_multiple %62, 1024 : i32
    %c0_29 = arith.constant 0 : index
    %64 = arith.index_cast %63 : i32 to index
    %65 = vector.load %arg2[%c0_29, %64] : memref<64x5120xf32, #tpu.memory_space<vmem>>, vector<64x1024xf32>
    %cst_30 = arith.constant dense<0.000000e+00> : vector<8x1024xf32>
    %66 = tpu.matmul %0, %65, %cst_30 {dimension_numbers = #tpu.dot_dimension_numbers<[1], [0], [0], [1], [0, 0, 1, 1], [], []>} : vector<8x64xf32>, vector<64x1024xf32>, vector<8x1024xf32> -> vector<8x1024xf32>
    %c0_31 = arith.constant 0 : index
    %67 = arith.index_cast %63 : i32 to index
    %68 = vector.load %arg3[%c0_31, %67] : memref<1x5120xf32, #tpu.memory_space<vmem>>, vector<1x1024xf32>
    %69 = vector.broadcast %68 : vector<1x1024xf32> to vector<8x1024xf32>
    %70 = arith.addf %66, %69 : vector<8x1024xf32>
    %cst_32 = arith.constant 0.000000e+00 : f32
    %71 = vector.broadcast %cst_32 : f32 to vector<8x1024xf32>
    %72 = arith.maximumf %70, %71 : vector<8x1024xf32>
    %73 = arith.index_cast %63 : i32 to index
    %c0_33 = arith.constant 0 : index
    %74 = vector.load %arg4[%73, %c0_33] : memref<5120x128xf32, #tpu.memory_space<vmem>>, vector<1024x128xf32>
    %cst_34 = arith.constant dense<0.000000e+00> : vector<8x128xf32>
    %75 = tpu.matmul %72, %74, %cst_34 {dimension_numbers = #tpu.dot_dimension_numbers<[1], [0], [0], [1], [0, 0, 1, 1], [], []>} : vector<8x1024xf32>, vector<1024x128xf32>, vector<8x128xf32> -> vector<8x128xf32>
    %76 = arith.addf %61, %75 : vector<8x128xf32>
    %c5_i32 = arith.constant 5 : i32
    %c0_35 = arith.constant 0 : index
    %c0_36 = arith.constant 0 : index
    %77 = vector.load %arg5[%c0_35, %c0_36] : memref<1x128xf32, #tpu.memory_space<vmem>>, vector<1x128xf32>
    %78 = vector.broadcast %77 : vector<1x128xf32> to vector<8x128xf32>
    %79 = arith.addf %76, %78 : vector<8x128xf32>
    %c0_37 = arith.constant 0 : index
    %c0_38 = arith.constant 0 : index
    %80 = vector.load %arg6[%c0_37, %c0_38] : memref<8x128xf32, #tpu.memory_space<vmem>>, vector<8x128xf32>
    tpu.vector_store %arg6[%c0_37, %c0_38], %79 {strides = array<i32>} : memref<8x128xf32, #tpu.memory_space<vmem>>, vector<8x128xf32>,
    return
  }
  func.func @transform_0(%arg0: i32) -> (i32, i32) {
    %c0_i32 = arith.constant 0 : i32
    %c0_i32_0 = arith.constant 0 : i32
    return %arg0, %c0_i32 : i32, i32
  }
  func.func @transform_1(%arg0: i32) -> (i32, i32) {
    %c0_i32 = arith.constant 0 : i32
    %c0_i32_0 = arith.constant 0 : i32
    %c0_i32_1 = arith.constant 0 : i32
    return %c0_i32, %c0_i32_0 : i32, i32
  }
  func.func @transform_2(%arg0: i32) -> (i32, i32) {
    %c0_i32 = arith.constant 0 : i32
    %c0_i32_0 = arith.constant 0 : i32
    %c0_i32_1 = arith.constant 0 : i32
    return %c0_i32, %c0_i32_0 : i32, i32
  }
  func.func @transform_3(%arg0: i32) -> (i32, i32) {
    %c0_i32 = arith.constant 0 : i32
    %c0_i32_0 = arith.constant 0 : i32
    %c0_i32_1 = arith.constant 0 : i32
    return %c0_i32, %c0_i32_0 : i32, i32
  }
  func.func @transform_4(%arg0: i32) -> (i32, i32) {
    %c0_i32 = arith.constant 0 : i32
    %c0_i32_0 = arith.constant 0 : i32
    %c0_i32_1 = arith.constant 0 : i32
    return %c0_i32, %c0_i32_0 : i32, i32
  }
  func.func @transform_5(%arg0: i32) -> (i32, i32) {
    %c0_i32 = arith.constant 0 : i32
    %c0_i32_0 = arith.constant 0 : i32
    return %arg0, %c0_i32 : i32, i32
  }
}

</mosaic_0001>

<llo_original>
// kernel: tpu_custom_call.1
$region0: #{tpu_custom_call.1}
  #allocation0 [shape = 'u32[]', space=smem, size = 0x4, offset = 0x4, fixed_abs, tag = 'smem constant byte address 0x4 - core index']
  #allocation1 [shape = 'u32[72,128]{1,0:T(1,128)}', space=vmem, size = 0x9000, scoped, tag = 'internal scratch']
  %s0 = inlined_call_operand.hbm [shape: f32[8,64], index: 0, kind: input, shape index: {}]
  %s1 = inlined_call_operand.hbm [shape: f32[64,5120], index: 1, kind: input, shape index: {}]
  %s2 = inlined_call_operand.hbm [shape: f32[1,5120], index: 2, kind: input, shape index: {}]
  %s3 = inlined_call_operand.hbm [shape: f32[5120,128], index: 3, kind: input, shape index: {}]
  %s4 = inlined_call_operand.hbm [shape: f32[1,128], index: 4, kind: input, shape index: {}]
  %s5 = inlined_call_operand.hbm [shape: f32[8,128], index: 5, kind: output, shape index: {}]
  %s6 = sld [smem:[#allocation0]]
  $region50: #{tpu_custom_call.1} parent=0
    _
  %s8 = ssub.s32 1, %s6
  %s9 = scalar_select 0, %s8, %s6
  $region1: #{tpu_custom_call.1} parent=0
    #allocation2 [shape = 'u8[4096]{0}', space=vmem, size = 0x1000, scoped, tag = 'input window, operand 0, single buffered']
    #allocation3 [shape = 's32[1]{0}', space=sflag, size = 0x4, scoped, tag = 'scoped memory for tpu_custom_call.1']
    #allocation4 [shape = 's32[1]{0}', space=sflag, size = 0x4, scoped, tag = 'scoped memory for tpu_custom_call.1']
    #allocation5 [shape = 'u8[1310720]{0}', space=vmem, size = 0x140000, scoped, tag = 'input window, operand 1, single buffered']
    #allocation6 [shape = 's32[1]{0}', space=sflag, size = 0x4, scoped, tag = 'scoped memory for tpu_custom_call.1']
    #allocation7 [shape = 'u8[20480]{0}', space=vmem, size = 0x5000, scoped, tag = 'input window, operand 2, single buffered']
    #allocation8 [shape = 'u8[2621440]{0}', space=vmem, size = 0x280000, scoped, tag = 'input window, operand 3, single buffered']
    #allocation9 [shape = 's32[1]{0}', space=sflag, size = 0x4, scoped, tag = 'scoped memory for tpu_custom_call.1']
    #allocation10 [shape = 'u8[512]{0}', space=vmem, size = 0x400, scoped, tag = 'input window, operand 4, single buffered']
    #allocation11 [shape = 'u8[4096]{0}', space=vmem, size = 0x1000, scoped, tag = 'output window, operand 0, single buffered']
    %10 = vsyncpa [#allocation3], 0
    %11 = vsyncpa [#allocation6], 0
    %12 = vsyncpa [#allocation9], 0
    %13 = vsyncpa [#allocation4], 0
    // Predicated region
    $region2: #{tpu_custom_call.1} parent=1 // pred_check
      _
    $region3: #{tpu_custom_call.1} parent=1 // pred_check_branch
      %15 = sbr.rel (0) target = $region5
    $region4: #{tpu_custom_call.1} parent=1 // pred_region
      %17 = vsyncadd [#allocation3], 0
      %s19 = sshll.u32 %s0, 4
      %s20 = int_to_ptr.hbm [resolvable:$true] %s19
      %s21 = sshll.u32 [#allocation2], 4
      %s22 = int_to_ptr.vmem [resolvable:$true] %s21
      %24 = dma.hbm_to_vmem [thread:$0]  %s20, 128, %s22, [#allocation3]
    $region5: #{tpu_custom_call.1} parent=1 // pred_fallthru
      _
    // Predicated region
    $region6: #{tpu_custom_call.1} parent=1 // pred_check
      _
    $region7: #{tpu_custom_call.1} parent=1 // pred_check_branch
      %26 = sbr.rel (0) target = $region9
    $region8: #{tpu_custom_call.1} parent=1 // pred_region
      %28 = vsyncadd [#allocation6], 0
      %s29 = sshll.u32 %s1, 4
      %s30 = int_to_ptr.hbm [resolvable:$true] %s29
      %s31 = sshll.u32 [#allocation5], 4
      %s32 = int_to_ptr.vmem [resolvable:$true] %s31
      %37 = dma.hbm_to_vmem [thread:$0]  %s30, 40960, %s32, [#allocation6], 5120, 5120, 320
    $region9: #{tpu_custom_call.1} parent=1 // pred_fallthru
      _
    // Predicated region
    $region10: #{tpu_custom_call.1} parent=1 // pred_check
      _
    $region11: #{tpu_custom_call.1} parent=1 // pred_check_branch
      %39 = sbr.rel (0) target = $region13
    $region12: #{tpu_custom_call.1} parent=1 // pred_region
      %41 = vsyncadd [#allocation6], 0
      %s43 = sshll.u32 %s2, 4
      %s44 = int_to_ptr.hbm [resolvable:$true] %s43
      %s45 = sshll.u32 [#allocation7], 4
      %s46 = int_to_ptr.vmem [resolvable:$true] %s45
      %48 = dma.hbm_to_vmem [thread:$0]  %s44, 640, %s46, [#allocation6]
    $region13: #{tpu_custom_call.1} parent=1 // pred_fallthru
      _
    // Predicated region
    $region14: #{tpu_custom_call.1} parent=1 // pred_check
      _
    $region15: #{tpu_custom_call.1} parent=1 // pred_check_branch
      %50 = sbr.rel (0) target = $region17
    $region16: #{tpu_custom_call.1} parent=1 // pred_region
      %52 = vsyncadd [#allocation9], 0
      %s53 = sshll.u32 %s3, 4
      %s54 = int_to_ptr.hbm [resolvable:$true] %s53
      %s55 = sshll.u32 [#allocation8], 4
      %s56 = int_to_ptr.vmem [resolvable:$true] %s55
      %61 = dma.hbm_to_vmem [thread:$0]  %s54, 81920, %s56, [#allocation9], 128, 128, 8
    $region17: #{tpu_custom_call.1} parent=1 // pred_fallthru
      _
    // Predicated region
    $region18: #{tpu_custom_call.1} parent=1 // pred_check
      _
    $region19: #{tpu_custom_call.1} parent=1 // pred_check_branch
      %63 = sbr.rel (0) target = $region21
    $region20: #{tpu_custom_call.1} parent=1 // pred_region
      %65 = vsyncadd [#allocation9], 0
      %s67 = sshll.u32 %s4, 4
      %s68 = int_to_ptr.hbm [resolvable:$true] %s67
      %s69 = sshll.u32 [#allocation10], 4
      %s70 = int_to_ptr.vmem [resolvable:$true] %s69
      %72 = dma.hbm_to_vmem [thread:$0]  %s68, 16, %s70, [#allocation9]
    $region21: #{tpu_custom_call.1} parent=1 // pred_fallthru
      _
    // Predicated region
    $region22: #{tpu_custom_call.1} parent=1 // pred_check
      _
    $region23: #{tpu_custom_call.1} parent=1 // pred_check_branch
      %74 = sbr.rel (0) target = $region25
    $region24: #{tpu_custom_call.1} parent=1 // pred_region
      %76 = dma.done [#allocation3], 128
    $region25: #{tpu_custom_call.1} parent=1 // pred_fallthru
      _
    // Predicated region
    $region26: #{tpu_custom_call.1} parent=1 // pred_check
      _
    $region27: #{tpu_custom_call.1} parent=1 // pred_check_branch
      %78 = sbr.rel (0) target = $region29
    $region28: #{tpu_custom_call.1} parent=1 // pred_region
      %80 = dma.done [#allocation6], 40960
    $region29: #{tpu_custom_call.1} parent=1 // pred_fallthru
      _
    // Predicated region
    $region30: #{tpu_custom_call.1} parent=1 // pred_check
      _
    $region31: #{tpu_custom_call.1} parent=1 // pred_check_branch
      %82 = sbr.rel (0) target = $region33
    $region32: #{tpu_custom_call.1} parent=1 // pred_region
      %84 = dma.done [#allocation6], 640
    $region33: #{tpu_custom_call.1} parent=1 // pred_fallthru
      _
    // Predicated region
    $region34: #{tpu_custom_call.1} parent=1 // pred_check
      _
    $region35: #{tpu_custom_call.1} parent=1 // pred_check_branch
      %86 = sbr.rel (0) target = $region37
    $region36: #{tpu_custom_call.1} parent=1 // pred_region
      %88 = dma.done [#allocation9], 81920
    $region37: #{tpu_custom_call.1} parent=1 // pred_fallthru
      _
    // Predicated region
    $region38: #{tpu_custom_call.1} parent=1 // pred_check
      _
    $region39: #{tpu_custom_call.1} parent=1 // pred_check_branch
      %90 = sbr.rel (0) target = $region41
    $region40: #{tpu_custom_call.1} parent=1 // pred_region
      %92 = dma.done [#allocation9], 16
    $region41: #{tpu_custom_call.1} parent=1 // pred_fallthru
      _
    %v93 = vld [vmem:[#allocation2] sm:$0xff]
    %v94 = vld [vmem:[#allocation5] sm:$0xff]
    %v95 = vld [vmem:[#allocation5 + $0x8] sm:$0xff]
    %v96 = vld [vmem:[#allocation5 + $0x10] sm:$0xff]
    %v97 = vld [vmem:[#allocation5 + $0x18] sm:$0xff]
    %v98 = vld [vmem:[#allocation5 + $0x20] sm:$0xff]
    %v99 = vld [vmem:[#allocation5 + $0x28] sm:$0xff]
    %v100 = vld [vmem:[#allocation5 + $0x30] sm:$0xff]
    %v101 = vld [vmem:[#allocation5 + $0x38] sm:$0xff]
    %v102 = vld [vmem:[#allocation5 + $0x140] sm:$0xff]
    %v103 = vld [vmem:[#allocation5 + $0x148] sm:$0xff]
    %v104 = vld [vmem:[#allocation5 + $0x150] sm:$0xff]
    %v105 = vld [vmem:[#allocation5 + $0x158] sm:$0xff]
    %v106 = vld [vmem:[#allocation5 + $0x160] sm:$0xff]
    %v107 = vld [vmem:[#allocation5 + $0x168] sm:$0xff]
    %v108 = vld [vmem:[#allocation5 + $0x170] sm:$0xff]
    %v109 = vld [vmem:[#allocation5 + $0x178] sm:$0xff]
    %v110 = vld [vmem:[#allocation5 + $0x280] sm:$0xff]
    %v111 = vld [vmem:[#allocation5 + $0x288] sm:$0xff]
    %v112 = vld [vmem:[#allocation5 + $0x290] sm:$0xff]
    %v113 = vld [vmem:[#allocation5 + $0x298] sm:$0xff]
    %v114 = vld [vmem:[#allocation5 + $0x2a0] sm:$0xff]
    %v115 = vld [vmem:[#allocation5 + $0x2a8] sm:$0xff]
    %v116 = vld [vmem:[#allocation5 + $0x2b0] sm:$0xff]
    %v117 = vld [vmem:[#allocation5 + $0x2b8] sm:$0xff]
    %v118 = vld [vmem:[#allocation5 + $0x3c0] sm:$0xff]
    %v119 = vld [vmem:[#allocation5 + $0x3c8] sm:$0xff]
    %v120 = vld [vmem:[#allocation5 + $0x3d0] sm:$0xff]
    %v121 = vld [vmem:[#allocation5 + $0x3d8] sm:$0xff]
    %v122 = vld [vmem:[#allocation5 + $0x3e0] sm:$0xff]
    %v123 = vld [vmem:[#allocation5 + $0x3e8] sm:$0xff]
    %v124 = vld [vmem:[#allocation5 + $0x3f0] sm:$0xff]
    %v125 = vld [vmem:[#allocation5 + $0x3f8] sm:$0xff]
    %v126 = vld [vmem:[#allocation5 + $0x500] sm:$0xff]
    %v127 = vld [vmem:[#allocation5 + $0x508] sm:$0xff]
    %v128 = vld [vmem:[#allocation5 + $0x510] sm:$0xff]
    %v129 = vld [vmem:[#allocation5 + $0x518] sm:$0xff]
    %v130 = vld [vmem:[#allocation5 + $0x520] sm:$0xff]
    %v131 = vld [vmem:[#allocation5 + $0x528] sm:$0xff]
    %v132 = vld [vmem:[#allocation5 + $0x530] sm:$0xff]
    %v133 = vld [vmem:[#allocation5 + $0x538] sm:$0xff]
    %v134 = vld [vmem:[#allocation5 + $0x640] sm:$0xff]
    %v135 = vld [vmem:[#allocation5 + $0x648] sm:$0xff]
    %v136 = vld [vmem:[#allocation5 + $0x650] sm:$0xff]
    %v137 = vld [vmem:[#allocation5 + $0x658] sm:$0xff]
    %v138 = vld [vmem:[#allocation5 + $0x660] sm:$0xff]
    %v139 = vld [vmem:[#allocation5 + $0x668] sm:$0xff]
    %v140 = vld [vmem:[#allocation5 + $0x670] sm:$0xff]
    %v141 = vld [vmem:[#allocation5 + $0x678] sm:$0xff]
    %v142 = vld [vmem:[#allocation5 + $0x780] sm:$0xff]
    %v143 = vld [vmem:[#allocation5 + $0x788] sm:$0xff]
    %v144 = vld [vmem:[#allocation5 + $0x790] sm:$0xff]
    %v145 = vld [vmem:[#allocation5 + $0x798] sm:$0xff]
    %v146 = vld [vmem:[#allocation5 + $0x7a0] sm:$0xff]
    %v147 = vld [vmem:[#allocation5 + $0x7a8] sm:$0xff]
    %v148 = vld [vmem:[#allocation5 + $0x7b0] sm:$0xff]
    %v149 = vld [vmem:[#allocation5 + $0x7b8] sm:$0xff]
    %v150 = vld [vmem:[#allocation5 + $0x8c0] sm:$0xff]
    %v151 = vld [vmem:[#allocation5 + $0x8c8] sm:$0xff]
    %v152 = vld [vmem:[#allocation5 + $0x8d0] sm:$0xff]
    %v153 = vld [vmem:[#allocation5 + $0x8d8] sm:$0xff]
    %v154 = vld [vmem:[#allocation5 + $0x8e0] sm:$0xff]
    %v155 = vld [vmem:[#allocation5 + $0x8e8] sm:$0xff]
    %v156 = vld [vmem:[#allocation5 + $0x8f0] sm:$0xff]
    %v157 = vld [vmem:[#allocation5 + $0x8f8] sm:$0xff]
    %v158 = vld [vmem:[#allocation7] sm:$0xff]
    %v160 = vperm.slane %v158, 0
    %v161 = vperm.slane %v158, 1
    %v162 = vperm.slane %v158, 2
    %v163 = vperm.slane %v158, 3
    %v164 = vperm.slane %v158, 4
    %v165 = vperm.slane %v158, 5
    %v166 = vperm.slane %v158, 6
    %v167 = vperm.slane %v158, 7
    %vm176 = vcmask 523264
    %v178 = vsel %vm176, %v93, 0
    %180 = vmatpush.msra.mxu0 0.0
    %181 = vmatpush.msra.mxu0 0.0
    %182 = vmatpush.msra.mxu0 0.0
    %183 = vmatpush.msra.mxu0 0.0
    %184 = vmatpush.msra.mxu0 0.0
    %185 = vmatpush.msra.mxu0 0.0
    %186 = vmatpush.msra.mxu0 0.0
    %187 = vmatpush.msra.mxu0 0.0
    %188 = vmatpush.msra.mxu0 %v150
    %189 = vmatpush.msra.mxu0 %v142
    %190 = vmatpush.msra.mxu0 %v134
    %191 = vmatpush.msra.mxu0 %v126
    %192 = vmatpush.msra.mxu0 %v118
    %193 = vmatpush.msra.mxu0 %v110
    %194 = vmatpush.msra.mxu0 %v102
    %195 = vmatpush.msra.mxu0 %v94
    %196 = vmatmul.f32.gmra.mxu0 %v178
    %v197 = vpop.f32.mrf.mxu0
    %v198 = vadd.f32 %v160, %v197
    %199 = vdwg.mxu0
    %200 = vmatpush.msra.mxu0 0.0
    %201 = vmatpush.msra.mxu0 0.0
    %202 = vmatpush.msra.mxu0 0.0
    %203 = vmatpush.msra.mxu0 0.0
    %204 = vmatpush.msra.mxu0 0.0
    %205 = vmatpush.msra.mxu0 0.0
    %206 = vmatpush.msra.mxu0 0.0
    %207 = vmatpush.msra.mxu0 0.0
    %208 = vmatpush.msra.mxu0 %v151
    %209 = vmatpush.msra.mxu0 %v143
    %210 = vmatpush.msra.mxu0 %v135
    %211 = vmatpush.msra.mxu0 %v127
    %212 = vmatpush.msra.mxu0 %v119
    %213 = vmatpush.msra.mxu0 %v111
    %214 = vmatpush.msra.mxu0 %v103
    %215 = vmatpush.msra.mxu0 %v95
    %216 = vmatmul.f32.gmra.mxu0 %v178
    %v217 = vpop.f32.mrf.mxu0
    %v218 = vadd.f32 %v161, %v217
    %219 = vdwg.mxu0
    %220 = vmatpush.msra.mxu0 0.0
    %221 = vmatpush.msra.mxu0 0.0
    %222 = vmatpush.msra.mxu0 0.0
    %223 = vmatpush.msra.mxu0 0.0
    %224 = vmatpush.msra.mxu0 0.0
    %225 = vmatpush.msra.mxu0 0.0
    %226 = vmatpush.msra.mxu0 0.0
    %227 = vmatpush.msra.mxu0 0.0
    %228 = vmatpush.msra.mxu0 %v152
    %229 = vmatpush.msra.mxu0 %v144
    %230 = vmatpush.msra.mxu0 %v136
    %231 = vmatpush.msra.mxu0 %v128
    %232 = vmatpush.msra.mxu0 %v120
    %233 = vmatpush.msra.mxu0 %v112
    %234 = vmatpush.msra.mxu0 %v104
    %235 = vmatpush.msra.mxu0 %v96
    %236 = vmatmul.f32.gmra.mxu0 %v178
    %v237 = vpop.f32.mrf.mxu0
    %v238 = vadd.f32 %v162, %v237
    %239 = vdwg.mxu0
    %240 = vmatpush.msra.mxu0 0.0
    %241 = vmatpush.msra.mxu0 0.0
    %242 = vmatpush.msra.mxu0 0.0
    %243 = vmatpush.msra.mxu0 0.0
    %244 = vmatpush.msra.mxu0 0.0
    %245 = vmatpush.msra.mxu0 0.0
    %246 = vmatpush.msra.mxu0 0.0
    %247 = vmatpush.msra.mxu0 0.0
    %248 = vmatpush.msra.mxu0 %v153
    %249 = vmatpush.msra.mxu0 %v145
    %250 = vmatpush.msra.mxu0 %v137
    %251 = vmatpush.msra.mxu0 %v129
    %252 = vmatpush.msra.mxu0 %v121
    %253 = vmatpush.msra.mxu0 %v113
    %254 = vmatpush.msra.mxu0 %v105
    %255 = vmatpush.msra.mxu0 %v97
    %256 = vmatmul.f32.gmra.mxu0 %v178
    %v257 = vpop.f32.mrf.mxu0
    %v258 = vadd.f32 %v163, %v257
    %259 = vdwg.mxu0
    %260 = vmatpush.msra.mxu0 0.0
    %261 = vmatpush.msra.mxu0 0.0
    %262 = vmatpush.msra.mxu0 0.0
    %263 = vmatpush.msra.mxu0 0.0
    %264 = vmatpush.msra.mxu0 0.0
    %265 = vmatpush.msra.mxu0 0.0
    %266 = vmatpush.msra.mxu0 0.0
    %267 = vmatpush.msra.mxu0 0.0
    %268 = vmatpush.msra.mxu0 %v154
    %269 = vmatpush.msra.mxu0 %v146
    %270 = vmatpush.msra.mxu0 %v138
    %271 = vmatpush.msra.mxu0 %v130
    %272 = vmatpush.msra.mxu0 %v122
    %273 = vmatpush.msra.mxu0 %v114
    %274 = vmatpush.msra.mxu0 %v106
    %275 = vmatpush.msra.mxu0 %v98
    %276 = vmatmul.f32.gmra.mxu0 %v178
    %v277 = vpop.f32.mrf.mxu0
    %v278 = vadd.f32 %v164, %v277
    %279 = vdwg.mxu0
    %280 = vmatpush.msra.mxu0 0.0
    %281 = vmatpush.msra.mxu0 0.0
    %282 = vmatpush.msra.mxu0 0.0
    %283 = vmatpush.msra.mxu0 0.0
    %284 = vmatpush.msra.mxu0 0.0
    %285 = vmatpush.msra.mxu0 0.0
    %286 = vmatpush.msra.mxu0 0.0
    %287 = vmatpush.msra.mxu0 0.0
    %288 = vmatpush.msra.mxu0 %v155
    %289 = vmatpush.msra.mxu0 %v147
    %290 = vmatpush.msra.mxu0 %v139
    %291 = vmatpush.msra.mxu0 %v131
    %292 = vmatpush.msra.mxu0 %v123
    %293 = vmatpush.msra.mxu0 %v115
    %294 = vmatpush.msra.mxu0 %v107
    %295 = vmatpush.msra.mxu0 %v99
    %296 = vmatmul.f32.gmra.mxu0 %v178
    %v297 = vpop.f32.mrf.mxu0
    %v298 = vadd.f32 %v165, %v297
    %299 = vdwg.mxu0
    %300 = vmatpush.msra.mxu0 0.0
    %301 = vmatpush.msra.mxu0 0.0
    %302 = vmatpush.msra.mxu0 0.0
    %303 = vmatpush.msra.mxu0 0.0
    %304 = vmatpush.msra.mxu0 0.0
    %305 = vmatpush.msra.mxu0 0.0
    %306 = vmatpush.msra.mxu0 0.0
    %307 = vmatpush.msra.mxu0 0.0
    %308 = vmatpush.msra.mxu0 %v156
    %309 = vmatpush.msra.mxu0 %v148
    %310 = vmatpush.msra.mxu0 %v140
    %311 = vmatpush.msra.mxu0 %v132
    %312 = vmatpush.msra.mxu0 %v124
    %313 = vmatpush.msra.mxu0 %v116
    %314 = vmatpush.msra.mxu0 %v108
    %315 = vmatpush.msra.mxu0 %v100
    %316 = vmatmul.f32.gmra.mxu0 %v178
    %v317 = vpop.f32.mrf.mxu0
    %v318 = vadd.f32 %v166, %v317
    %319 = vdwg.mxu0
    %320 = vmatpush.msra.mxu0 0.0
    %321 = vmatpush.msra.mxu0 0.0
    %322 = vmatpush.msra.mxu0 0.0
    %323 = vmatpush.msra.mxu0 0.0
    %324 = vmatpush.msra.mxu0 0.0
    %325 = vmatpush.msra.mxu0 0.0
    %326 = vmatpush.msra.mxu0 0.0
    %327 = vmatpush.msra.mxu0 0.0
    %328 = vmatpush.msra.mxu0 %v157
    %329 = vmatpush.msra.mxu0 %v149
    %330 = vmatpush.msra.mxu0 %v141
    %331 = vmatpush.msra.mxu0 %v133
    %332 = vmatpush.msra.mxu0 %v125
    %333 = vmatpush.msra.mxu0 %v117
    %334 = vmatpush.msra.mxu0 %v109
    %335 = vmatpush.msra.mxu0 %v101
    %336 = vmatmul.f32.gmra.mxu0 %v178
    %v337 = vpop.f32.mrf.mxu0
    %v338 = vadd.f32 %v167, %v337
    %339 = vdwg.mxu0
    %v340 = vmax.f32 %v198, 0.0
    %v341 = vmax.f32 %v218, 0.0
    %v342 = vmax.f32 %v238, 0.0
    %v343 = vmax.f32 %v258, 0.0
    %v344 = vmax.f32 %v278, 0.0
    %v345 = vmax.f32 %v298, 0.0
    %v346 = vmax.f32 %v318, 0.0
    %v347 = vmax.f32 %v338, 0.0
    %v348 = vld [vmem:[#allocation8] sm:$0xff]
    %v349 = vld [vmem:[#allocation8 + $0x8] sm:$0xff]
    %v350 = vld [vmem:[#allocation8 + $0x10] sm:$0xff]
    %v351 = vld [vmem:[#allocation8 + $0x18] sm:$0xff]
    %v352 = vld [vmem:[#allocation8 + $0x20] sm:$0xff]
    %v353 = vld [vmem:[#allocation8 + $0x28] sm:$0xff]
    %v354 = vld [vmem:[#allocation8 + $0x30] sm:$0xff]
    %v355 = vld [vmem:[#allocation8 + $0x38] sm:$0xff]
    %v356 = vld [vmem:[#allocation8 + $0x40] sm:$0xff]
    %v357 = vld [vmem:[#allocation8 + $0x48] sm:$0xff]
    %v358 = vld [vmem:[#allocation8 + $0x50] sm:$0xff]
    %v359 = vld [vmem:[#allocation8 + $0x58] sm:$0xff]
    %v360 = vld [vmem:[#allocation8 + $0x60] sm:$0xff]
    %v361 = vld [vmem:[#allocation8 + $0x68] sm:$0xff]
    %v362 = vld [vmem:[#allocation8 + $0x70] sm:$0xff]
    %v363 = vld [vmem:[#allocation8 + $0x78] sm:$0xff]
    %v364 = vld [vmem:[#allocation8 + $0x80] sm:$0xff]
    %v365 = vld [vmem:[#allocation8 + $0x88] sm:$0xff]
    %v366 = vld [vmem:[#allocation8 + $0x90] sm:$0xff]
    %v367 = vld [vmem:[#allocation8 + $0x98] sm:$0xff]
    %v368 = vld [vmem:[#allocation8 + $0xa0] sm:$0xff]
    %v369 = vld [vmem:[#allocation8 + $0xa8] sm:$0xff]
    %v370 = vld [vmem:[#allocation8 + $0xb0] sm:$0xff]
    %v371 = vld [vmem:[#allocation8 + $0xb8] sm:$0xff]
    %v372 = vld [vmem:[#allocation8 + $0xc0] sm:$0xff]
    %v373 = vld [vmem:[#allocation8 + $0xc8] sm:$0xff]
    %v374 = vld [vmem:[#allocation8 + $0xd0] sm:$0xff]
    %v375 = vld [vmem:[#allocation8 + $0xd8] sm:$0xff]
    %v376 = vld [vmem:[#allocation8 + $0xe0] sm:$0xff]
    %v377 = vld [vmem:[#allocation8 + $0xe8] sm:$0xff]
    %v378 = vld [vmem:[#allocation8 + $0xf0] sm:$0xff]
    %v379 = vld [vmem:[#allocation8 + $0xf8] sm:$0xff]
    %v380 = vld [vmem:[#allocation8 + $0x100] sm:$0xff]
    %v381 = vld [vmem:[#allocation8 + $0x108] sm:$0xff]
    %v382 = vld [vmem:[#allocation8 + $0x110] sm:$0xff]
    %v383 = vld [vmem:[#allocation8 + $0x118] sm:$0xff]
    %v384 = vld [vmem:[#allocation8 + $0x120] sm:$0xff]
    %v385 = vld [vmem:[#allocation8 + $0x128] sm:$0xff]
    %v386 = vld [vmem:[#allocation8 + $0x130] sm:$0xff]
    %v387 = vld [vmem:[#allocation8 + $0x138] sm:$0xff]
    %v388 = vld [vmem:[#allocation8 + $0x140] sm:$0xff]
    %v389 = vld [vmem:[#allocation8 + $0x148] sm:$0xff]
    %v390 = vld [vmem:[#allocation8 + $0x150] sm:$0xff]
    %v391 = vld [vmem:[#allocation8 + $0x158] sm:$0xff]
    %v392 = vld [vmem:[#allocation8 + $0x160] sm:$0xff]
    %v393 = vld [vmem:[#allocation8 + $0x168] sm:$0xff]
    %v394 = vld [vmem:[#allocation8 + $0x170] sm:$0xff]
    %v395 = vld [vmem:[#allocation8 + $0x178] sm:$0xff]
    %v396 = vld [vmem:[#allocation8 + $0x180] sm:$0xff]
    %v397 = vld [vmem:[#allocation8 + $0x188] sm:$0xff]
    %v398 = vld [vmem:[#allocation8 + $0x190] sm:$0xff]
    %v399 = vld [vmem:[#allocation8 + $0x198] sm:$0xff]
    %v400 = vld [vmem:[#allocation8 + $0x1a0] sm:$0xff]
    %v401 = vld [vmem:[#allocation8 + $0x1a8] sm:$0xff]
    %v402 = vld [vmem:[#allocation8 + $0x1b0] sm:$0xff]
    %v403 = vld [vmem:[#allocation8 + $0x1b8] sm:$0xff]
    %v404 = vld [vmem:[#allocation8 + $0x1c0] sm:$0xff]
    %v405 = vld [vmem:[#allocation8 + $0x1c8] sm:$0xff]
    %v406 = vld [vmem:[#allocation8 + $0x1d0] sm:$0xff]
    %v407 = vld [vmem:[#allocation8 + $0x1d8] sm:$0xff]
    %v408 = vld [vmem:[#allocation8 + $0x1e0] sm:$0xff]
    %v409 = vld [vmem:[#allocation8 + $0x1e8] sm:$0xff]
    %v410 = vld [vmem:[#allocation8 + $0x1f0] sm:$0xff]
    %v411 = vld [vmem:[#allocation8 + $0x1f8] sm:$0xff]
    %v412 = vld [vmem:[#allocation8 + $0x200] sm:$0xff]
    %v413 = vld [vmem:[#allocation8 + $0x208] sm:$0xff]
    %v414 = vld [vmem:[#allocation8 + $0x210] sm:$0xff]
    %v415 = vld [vmem:[#allocation8 + $0x218] sm:$0xff]
    %v416 = vld [vmem:[#allocation8 + $0x220] sm:$0xff]
    %v417 = vld [vmem:[#allocation8 + $0x228] sm:$0xff]
    %v418 = vld [vmem:[#allocation8 + $0x230] sm:$0xff]
    %v419 = vld [vmem:[#allocation8 + $0x238] sm:$0xff]
    %v420 = vld [vmem:[#allocation8 + $0x240] sm:$0xff]
    %v421 = vld [vmem:[#allocation8 + $0x248] sm:$0xff]
    %v422 = vld [vmem:[#allocation8 + $0x250] sm:$0xff]
    %v423 = vld [vmem:[#allocation8 + $0x258] sm:$0xff]
    %v424 = vld [vmem:[#allocation8 + $0x260] sm:$0xff]
    %v425 = vld [vmem:[#allocation8 + $0x268] sm:$0xff]
    %v426 = vld [vmem:[#allocation8 + $0x270] sm:$0xff]
    %v427 = vld [vmem:[#allocation8 + $0x278] sm:$0xff]
    %v428 = vld [vmem:[#allocation8 + $0x280] sm:$0xff]
    %v429 = vld [vmem:[#allocation8 + $0x288] sm:$0xff]
    %v430 = vld [vmem:[#allocation8 + $0x290] sm:$0xff]
    %v431 = vld [vmem:[#allocation8 + $0x298] sm:$0xff]
    %v432 = vld [vmem:[#allocation8 + $0x2a0] sm:$0xff]
    %v433 = vld [vmem:[#allocation8 + $0x2a8] sm:$0xff]
    %v434 = vld [vmem:[#allocation8 + $0x2b0] sm:$0xff]
    %v435 = vld [vmem:[#allocation8 + $0x2b8] sm:$0xff]
    %v436 = vld [vmem:[#allocation8 + $0x2c0] sm:$0xff]
    %v437 = vld [vmem:[#allocation8 + $0x2c8] sm:$0xff]
    %v438 = vld [vmem:[#allocation8 + $0x2d0] sm:$0xff]
    %v439 = vld [vmem:[#allocation8 + $0x2d8] sm:$0xff]
    %v440 = vld [vmem:[#allocation8 + $0x2e0] sm:$0xff]
    %v441 = vld [vmem:[#allocation8 + $0x2e8] sm:$0xff]
    %v442 = vld [vmem:[#allocation8 + $0x2f0] sm:$0xff]
    %v443 = vld [vmem:[#allocation8 + $0x2f8] sm:$0xff]
    %v444 = vld [vmem:[#allocation8 + $0x300] sm:$0xff]
    %v445 = vld [vmem:[#allocation8 + $0x308] sm:$0xff]
    %v446 = vld [vmem:[#allocation8 + $0x310] sm:$0xff]
    %v447 = vld [vmem:[#allocation8 + $0x318] sm:$0xff]
    %v448 = vld [vmem:[#allocation8 + $0x320] sm:$0xff]
    %v449 = vld [vmem:[#allocation8 + $0x328] sm:$0xff]
    %v450 = vld [vmem:[#allocation8 + $0x330] sm:$0xff]
    %v451 = vld [vmem:[#allocation8 + $0x338] sm:$0xff]
    %v452 = vld [vmem:[#allocation8 + $0x340] sm:$0xff]
    %v453 = vld [vmem:[#allocation8 + $0x348] sm:$0xff]
    %v454 = vld [vmem:[#allocation8 + $0x350] sm:$0xff]
    %v455 = vld [vmem:[#allocation8 + $0x358] sm:$0xff]
    %v456 = vld [vmem:[#allocation8 + $0x360] sm:$0xff]
    %v457 = vld [vmem:[#allocation8 + $0x368] sm:$0xff]
    %v458 = vld [vmem:[#allocation8 + $0x370] sm:$0xff]
    %v459 = vld [vmem:[#allocation8 + $0x378] sm:$0xff]
    %v460 = vld [vmem:[#allocation8 + $0x380] sm:$0xff]
    %v461 = vld [vmem:[#allocation8 + $0x388] sm:$0xff]
    %v462 = vld [vmem:[#allocation8 + $0x390] sm:$0xff]
    %v463 = vld [vmem:[#allocation8 + $0x398] sm:$0xff]
    %v464 = vld [vmem:[#allocation8 + $0x3a0] sm:$0xff]
    %v465 = vld [vmem:[#allocation8 + $0x3a8] sm:$0xff]
    %v466 = vld [vmem:[#allocation8 + $0x3b0] sm:$0xff]
    %v467 = vld [vmem:[#allocation8 + $0x3b8] sm:$0xff]
    %v468 = vld [vmem:[#allocation8 + $0x3c0] sm:$0xff]
    %v469 = vld [vmem:[#allocation8 + $0x3c8] sm:$0xff]
    %v470 = vld [vmem:[#allocation8 + $0x3d0] sm:$0xff]
    %v471 = vld [vmem:[#allocation8 + $0x3d8] sm:$0xff]
    %v472 = vld [vmem:[#allocation8 + $0x3e0] sm:$0xff]
    %v473 = vld [vmem:[#allocation8 + $0x3e8] sm:$0xff]
    %v474 = vld [vmem:[#allocation8 + $0x3f0] sm:$0xff]
    %v475 = vld [vmem:[#allocation8 + $0x3f8] sm:$0xff]
    %s476 = scalar_lea.vmem [#allocation5], 64
    %v477 = vld [vmem:[%s476] sm:$0xff]
    %v478 = vld [vmem:[%s476 + $0x8] sm:$0xff]
    %v479 = vld [vmem:[%s476 + $0x10] sm:$0xff]
    %v480 = vld [vmem:[%s476 + $0x18] sm:$0xff]
    %v481 = vld [vmem:[%s476 + $0x20] sm:$0xff]
    %v482 = vld [vmem:[%s476 + $0x28] sm:$0xff]
    %v483 = vld [vmem:[%s476 + $0x30] sm:$0xff]
    %v484 = vld [vmem:[%s476 + $0x38] sm:$0xff]
    %v485 = vld [vmem:[%s476 + $0x140] sm:$0xff]
    %v486 = vld [vmem:[%s476 + $0x148] sm:$0xff]
    %v487 = vld [vmem:[%s476 + $0x150] sm:$0xff]
    %v488 = vld [vmem:[%s476 + $0x158] sm:$0xff]
    %v489 = vld [vmem:[%s476 + $0x160] sm:$0xff]
    %v490 = vld [vmem:[%s476 + $0x168] sm:$0xff]
    %v491 = vld [vmem:[%s476 + $0x170] sm:$0xff]
    %v492 = vld [vmem:[%s476 + $0x178] sm:$0xff]
    %v493 = vld [vmem:[%s476 + $0x280] sm:$0xff]
    %v494 = vld [vmem:[%s476 + $0x288] sm:$0xff]
    %v495 = vld [vmem:[%s476 + $0x290] sm:$0xff]
    %v496 = vld [vmem:[%s476 + $0x298] sm:$0xff]
    %v497 = vld [vmem:[%s476 + $0x2a0] sm:$0xff]
    %v498 = vld [vmem:[%s476 + $0x2a8] sm:$0xff]
    %v499 = vld [vmem:[%s476 + $0x2b0] sm:$0xff]
    %v500 = vld [vmem:[%s476 + $0x2b8] sm:$0xff]
    %v501 = vld [vmem:[%s476 + $0x3c0] sm:$0xff]
    %v502 = vld [vmem:[%s476 + $0x3c8] sm:$0xff]
    %v503 = vld [vmem:[%s476 + $0x3d0] sm:$0xff]
    %v504 = vld [vmem:[%s476 + $0x3d8] sm:$0xff]
    %v505 = vld [vmem:[%s476 + $0x3e0] sm:$0xff]
    %v506 = vld [vmem:[%s476 + $0x3e8] sm:$0xff]
    %v507 = vld [vmem:[%s476 + $0x3f0] sm:$0xff]
    %v508 = vld [vmem:[%s476 + $0x3f8] sm:$0xff]
    %v509 = vld [vmem:[%s476 + $0x500] sm:$0xff]
    %v510 = vld [vmem:[%s476 + $0x508] sm:$0xff]
    %v511 = vld [vmem:[%s476 + $0x510] sm:$0xff]
    %v512 = vld [vmem:[%s476 + $0x518] sm:$0xff]
    %v513 = vld [vmem:[%s476 + $0x520] sm:$0xff]
    %v514 = vld [vmem:[%s476 + $0x528] sm:$0xff]
    %v515 = vld [vmem:[%s476 + $0x530] sm:$0xff]
    %v516 = vld [vmem:[%s476 + $0x538] sm:$0xff]
    %v517 = vld [vmem:[%s476 + $0x640] sm:$0xff]
    %v518 = vld [vmem:[%s476 + $0x648] sm:$0xff]
    %v519 = vld [vmem:[%s476 + $0x650] sm:$0xff]
    %v520 = vld [vmem:[%s476 + $0x658] sm:$0xff]
    %v521 = vld [vmem:[%s476 + $0x660] sm:$0xff]
    %v522 = vld [vmem:[%s476 + $0x668] sm:$0xff]
    %v523 = vld [vmem:[%s476 + $0x670] sm:$0xff]
    %v524 = vld [vmem:[%s476 + $0x678] sm:$0xff]
    %v525 = vld [vmem:[%s476 + $0x780] sm:$0xff]
    %v526 = vld [vmem:[%s476 + $0x788] sm:$0xff]
    %v527 = vld [vmem:[%s476 + $0x790] sm:$0xff]
    %v528 = vld [vmem:[%s476 + $0x798] sm:$0xff]
    %v529 = vld [vmem:[%s476 + $0x7a0] sm:$0xff]
    %v530 = vld [vmem:[%s476 + $0x7a8] sm:$0xff]
    %v531 = vld [vmem:[%s476 + $0x7b0] sm:$0xff]
    %v532 = vld [vmem:[%s476 + $0x7b8] sm:$0xff]
    %v533 = vld [vmem:[%s476 + $0x8c0] sm:$0xff]
    %v534 = vld [vmem:[%s476 + $0x8c8] sm:$0xff]
    %v535 = vld [vmem:[%s476 + $0x8d0] sm:$0xff]
    %v536 = vld [vmem:[%s476 + $0x8d8] sm:$0xff]
    %v537 = vld [vmem:[%s476 + $0x8e0] sm:$0xff]
    %v538 = vld [vmem:[%s476 + $0x8e8] sm:$0xff]
    %v539 = vld [vmem:[%s476 + $0x8f0] sm:$0xff]
    %v540 = vld [vmem:[%s476 + $0x8f8] sm:$0xff]
    %s541 = scalar_lea.vmem [#allocation7], 8
    %v542 = vld [vmem:[%s541] sm:$0xff]
    %v544 = vperm.slane %v542, 0
    %v545 = vperm.slane %v542, 1
    %v546 = vperm.slane %v542, 2
    %v547 = vperm.slane %v542, 3
    %v548 = vperm.slane %v542, 4
    %v549 = vperm.slane %v542, 5
    %v550 = vperm.slane %v542, 6
    %v551 = vperm.slane %v542, 7
    %560 = vmatpush.msra.mxu0 0.0
    %561 = vmatpush.msra.mxu0 0.0
    %562 = vmatpush.msra.mxu0 0.0
    %563 = vmatpush.msra.mxu0 0.0
    %564 = vmatpush.msra.mxu0 0.0
    %565 = vmatpush.msra.mxu0 0.0
    %566 = vmatpush.msra.mxu0 0.0
    %567 = vmatpush.msra.mxu0 0.0
    %568 = vmatpush.msra.mxu0 %v533
    %569 = vmatpush.msra.mxu0 %v525
    %570 = vmatpush.msra.mxu0 %v517
    %571 = vmatpush.msra.mxu0 %v509
    %572 = vmatpush.msra.mxu0 %v501
    %573 = vmatpush.msra.mxu0 %v493
    %574 = vmatpush.msra.mxu0 %v485
    %575 = vmatpush.msra.mxu0 %v477
    %576 = vmatmul.f32.gmra.mxu0 %v178
    %v577 = vpop.f32.mrf.mxu0
    %v578 = vadd.f32 %v544, %v577
    %579 = vdwg.mxu0
    %580 = vmatpush.msra.mxu0 0.0
    %581 = vmatpush.msra.mxu0 0.0
    %582 = vmatpush.msra.mxu0 0.0
    %583 = vmatpush.msra.mxu0 0.0
    %584 = vmatpush.msra.mxu0 0.0
    %585 = vmatpush.msra.mxu0 0.0
    %586 = vmatpush.msra.mxu0 0.0
    %587 = vmatpush.msra.mxu0 0.0
    %588 = vmatpush.msra.mxu0 %v534
    %589 = vmatpush.msra.mxu0 %v526
    %590 = vmatpush.msra.mxu0 %v518
    %591 = vmatpush.msra.mxu0 %v510
    %592 = vmatpush.msra.mxu0 %v502
    %593 = vmatpush.msra.mxu0 %v494
    %594 = vmatpush.msra.mxu0 %v486
    %595 = vmatpush.msra.mxu0 %v478
    %596 = vmatmul.f32.gmra.mxu0 %v178
    %v597 = vpop.f32.mrf.mxu0
    %v598 = vadd.f32 %v545, %v597
    %599 = vdwg.mxu0
    %600 = vmatpush.msra.mxu0 0.0
    %601 = vmatpush.msra.mxu0 0.0
    %602 = vmatpush.msra.mxu0 0.0
    %603 = vmatpush.msra.mxu0 0.0
    %604 = vmatpush.msra.mxu0 0.0
    %605 = vmatpush.msra.mxu0 0.0
    %606 = vmatpush.msra.mxu0 0.0
    %607 = vmatpush.msra.mxu0 0.0
    %608 = vmatpush.msra.mxu0 %v535
    %609 = vmatpush.msra.mxu0 %v527
    %610 = vmatpush.msra.mxu0 %v519
    %611 = vmatpush.msra.mxu0 %v511
    %612 = vmatpush.msra.mxu0 %v503
    %613 = vmatpush.msra.mxu0 %v495
    %614 = vmatpush.msra.mxu0 %v487
    %615 = vmatpush.msra.mxu0 %v479
    %616 = vmatmul.f32.gmra.mxu0 %v178
    %v617 = vpop.f32.mrf.mxu0
    %v618 = vadd.f32 %v546, %v617
    %619 = vdwg.mxu0
    %620 = vmatpush.msra.mxu0 0.0
    %621 = vmatpush.msra.mxu0 0.0
    %622 = vmatpush.msra.mxu0 0.0
    %623 = vmatpush.msra.mxu0 0.0
    %624 = vmatpush.msra.mxu0 0.0
    %625 = vmatpush.msra.mxu0 0.0
    %626 = vmatpush.msra.mxu0 0.0
    %627 = vmatpush.msra.mxu0 0.0
    %628 = vmatpush.msra.mxu0 %v536
    %629 = vmatpush.msra.mxu0 %v528
    %630 = vmatpush.msra.mxu0 %v520
    %631 = vmatpush.msra.mxu0 %v512
    %632 = vmatpush.msra.mxu0 %v504
    %633 = vmatpush.msra.mxu0 %v496
    %634 = vmatpush.msra.mxu0 %v488
    %635 = vmatpush.msra.mxu0 %v480
    %636 = vmatmul.f32.gmra.mxu0 %v178
    %v637 = vpop.f32.mrf.mxu0
    %v638 = vadd.f32 %v547, %v637
    %639 = vdwg.mxu0
    %640 = vmatpush.msra.mxu0 0.0
    %641 = vmatpush.msra.mxu0 0.0
    %642 = vmatpush.msra.mxu0 0.0
    %643 = vmatpush.msra.mxu0 0.0
    %644 = vmatpush.msra.mxu0 0.0
    %645 = vmatpush.msra.mxu0 0.0
    %646 = vmatpush.msra.mxu0 0.0
    %647 = vmatpush.msra.mxu0 0.0
    %648 = vmatpush.msra.mxu0 %v537
    %649 = vmatpush.msra.mxu0 %v529
    %650 = vmatpush.msra.mxu0 %v521
    %651 = vmatpush.msra.mxu0 %v513
    %652 = vmatpush.msra.mxu0 %v505
    %653 = vmatpush.msra.mxu0 %v497
    %654 = vmatpush.msra.mxu0 %v489
    %655 = vmatpush.msra.mxu0 %v481
    %656 = vmatmul.f32.gmra.mxu0 %v178
    %v657 = vpop.f32.mrf.mxu0
    %v658 = vadd.f32 %v548, %v657
    %659 = vdwg.mxu0
    %660 = vmatpush.msra.mxu0 0.0
    %661 = vmatpush.msra.mxu0 0.0
    %662 = vmatpush.msra.mxu0 0.0
    %663 = vmatpush.msra.mxu0 0.0
    %664 = vmatpush.msra.mxu0 0.0
    %665 = vmatpush.msra.mxu0 0.0
    %666 = vmatpush.msra.mxu0 0.0
    %667 = vmatpush.msra.mxu0 0.0
    %668 = vmatpush.msra.mxu0 %v538
    %669 = vmatpush.msra.mxu0 %v530
    %670 = vmatpush.msra.mxu0 %v522
    %671 = vmatpush.msra.mxu0 %v514
    %672 = vmatpush.msra.mxu0 %v506
    %673 = vmatpush.msra.mxu0 %v498
    %674 = vmatpush.msra.mxu0 %v490
    %675 = vmatpush.msra.mxu0 %v482
    %676 = vmatmul.f32.gmra.mxu0 %v178
    %v677 = vpop.f32.mrf.mxu0
    %v678 = vadd.f32 %v549, %v677
    %679 = vdwg.mxu0
    %680 = vmatpush.msra.mxu0 0.0
    %681 = vmatpush.msra.mxu0 0.0
    %682 = vmatpush.msra.mxu0 0.0
    %683 = vmatpush.msra.mxu0 0.0
    %684 = vmatpush.msra.mxu0 0.0
    %685 = vmatpush.msra.mxu0 0.0
    %686 = vmatpush.msra.mxu0 0.0
    %687 = vmatpush.msra.mxu0 0.0
    %688 = vmatpush.msra.mxu0 %v539
    %689 = vmatpush.msra.mxu0 %v531
    %690 = vmatpush.msra.mxu0 %v523
    %691 = vmatpush.msra.mxu0 %v515
    %692 = vmatpush.msra.mxu0 %v507
    %693 = vmatpush.msra.mxu0 %v499
    %694 = vmatpush.msra.mxu0 %v491
    %695 = vmatpush.msra.mxu0 %v483
    %696 = vmatmul.f32.gmra.mxu0 %v178
    %v697 = vpop.f32.mrf.mxu0
    %v698 = vadd.f32 %v550, %v697
    %699 = vdwg.mxu0
    %700 = vmatpush.msra.mxu0 0.0
    %701 = vmatpush.msra.mxu0 0.0
    %702 = vmatpush.msra.mxu0 0.0
    %703 = vmatpush.msra.mxu0 0.0
    %704 = vmatpush.msra.mxu0 0.0
    %705 = vmatpush.msra.mxu0 0.0
    %706 = vmatpush.msra.mxu0 0.0
    %707 = vmatpush.msra.mxu0 0.0
    %708 = vmatpush.msra.mxu0 %v540
    %709 = vmatpush.msra.mxu0 %v532
    %710 = vmatpush.msra.mxu0 %v524
    %711 = vmatpush.msra.mxu0 %v516
    %712 = vmatpush.msra.mxu0 %v508
    %713 = vmatpush.msra.mxu0 %v500
    %714 = vmatpush.msra.mxu0 %v492
    %715 = vmatpush.msra.mxu0 %v484
    %716 = vmatmul.f32.gmra.mxu0 %v178
    %v717 = vpop.f32.mrf.mxu0
    %v718 = vadd.f32 %v551, %v717
    %719 = vdwg.mxu0
    %v720 = vmax.f32 %v578, 0.0
    %v721 = vmax.f32 %v598, 0.0
    %v722 = vmax.f32 %v618, 0.0
    %v723 = vmax.f32 %v638, 0.0
    %v724 = vmax.f32 %v658, 0.0
    %v725 = vmax.f32 %v678, 0.0
    %v726 = vmax.f32 %v698, 0.0
    %v727 = vmax.f32 %v718, 0.0
    %s728 = scalar_lea.vmem [#allocation8], 1024
    %v729 = vld [vmem:[%s728] sm:$0xff]
    %v730 = vld [vmem:[%s728 + $0x8] sm:$0xff]
    %v731 = vld [vmem:[%s728 + $0x10] sm:$0xff]
    %v732 = vld [vmem:[%s728 + $0x18] sm:$0xff]
    %v733 = vld [vmem:[%s728 + $0x20] sm:$0xff]
    %v734 = vld [vmem:[%s728 + $0x28] sm:$0xff]
    %v735 = vld [vmem:[%s728 + $0x30] sm:$0xff]
    %v736 = vld [vmem:[%s728 + $0x38] sm:$0xff]
    %v737 = vld [vmem:[%s728 + $0x40] sm:$0xff]
    %v738 = vld [vmem:[%s728 + $0x48] sm:$0xff]
    %v739 = vld [vmem:[%s728 + $0x50] sm:$0xff]
    %v740 = vld [vmem:[%s728 + $0x58] sm:$0xff]
    %v741 = vld [vmem:[%s728 + $0x60] sm:$0xff]
    %v742 = vld [vmem:[%s728 + $0x68] sm:$0xff]
    %v743 = vld [vmem:[%s728 + $0x70] sm:$0xff]
    %v744 = vld [vmem:[%s728 + $0x78] sm:$0xff]
    %v745 = vld [vmem:[%s728 + $0x80] sm:$0xff]
    %v746 = vld [vmem:[%s728 + $0x88] sm:$0xff]
    %v747 = vld [vmem:[%s728 + $0x90] sm:$0xff]
    %v748 = vld [vmem:[%s728 + $0x98] sm:$0xff]
    %v749 = vld [vmem:[%s728 + $0xa0] sm:$0xff]
    %v750 = vld [vmem:[%s728 + $0xa8] sm:$0xff]
    %v751 = vld [vmem:[%s728 + $0xb0] sm:$0xff]
    %v752 = vld [vmem:[%s728 + $0xb8] sm:$0xff]
    %v753 = vld [vmem:[%s728 + $0xc0] sm:$0xff]
    %v754 = vld [vmem:[%s728 + $0xc8] sm:$0xff]
    %v755 = vld [vmem:[%s728 + $0xd0] sm:$0xff]
    %v756 = vld [vmem:[%s728 + $0xd8] sm:$0xff]
    %v757 = vld [vmem:[%s728 + $0xe0] sm:$0xff]
    %v758 = vld [vmem:[%s728 + $0xe8] sm:$0xff]
    %v759 = vld [vmem:[%s728 + $0xf0] sm:$0xff]
    %v760 = vld [vmem:[%s728 + $0xf8] sm:$0xff]
    %v761 = vld [vmem:[%s728 + $0x100] sm:$0xff]
    %v762 = vld [vmem:[%s728 + $0x108] sm:$0xff]
    %v763 = vld [vmem:[%s728 + $0x110] sm:$0xff]
    %v764 = vld [vmem:[%s728 + $0x118] sm:$0xff]
    %v765 = vld [vmem:[%s728 + $0x120] sm:$0xff]
    %v766 = vld [vmem:[%s728 + $0x128] sm:$0xff]
    %v767 = vld [vmem:[%s728 + $0x130] sm:$0xff]
    %v768 = vld [vmem:[%s728 + $0x138] sm:$0xff]
    %v769 = vld [vmem:[%s728 + $0x140] sm:$0xff]
    %v770 = vld [vmem:[%s728 + $0x148] sm:$0xff]
    %v771 = vld [vmem:[%s728 + $0x150] sm:$0xff]
    %v772 = vld [vmem:[%s728 + $0x158] sm:$0xff]
    %v773 = vld [vmem:[%s728 + $0x160] sm:$0xff]
    %v774 = vld [vmem:[%s728 + $0x168] sm:$0xff]
    %v775 = vld [vmem:[%s728 + $0x170] sm:$0xff]
    %v776 = vld [vmem:[%s728 + $0x178] sm:$0xff]
    %v777 = vld [vmem:[%s728 + $0x180] sm:$0xff]
    %v778 = vld [vmem:[%s728 + $0x188] sm:$0xff]
    %v779 = vld [vmem:[%s728 + $0x190] sm:$0xff]
    %v780 = vld [vmem:[%s728 + $0x198] sm:$0xff]
    %v781 = vld [vmem:[%s728 + $0x1a0] sm:$0xff]
    %v782 = vld [vmem:[%s728 + $0x1a8] sm:$0xff]
    %v783 = vld [vmem:[%s728 + $0x1b0] sm:$0xff]
    %v784 = vld [vmem:[%s728 + $0x1b8] sm:$0xff]
    %v785 = vld [vmem:[%s728 + $0x1c0] sm:$0xff]
    %v786 = vld [vmem:[%s728 + $0x1c8] sm:$0xff]
    %v787 = vld [vmem:[%s728 + $0x1d0] sm:$0xff]
    %v788 = vld [vmem:[%s728 + $0x1d8] sm:$0xff]
    %v789 = vld [vmem:[%s728 + $0x1e0] sm:$0xff]
    %v790 = vld [vmem:[%s728 + $0x1e8] sm:$0xff]
    %v791 = vld [vmem:[%s728 + $0x1f0] sm:$0xff]
    %v792 = vld [vmem:[%s728 + $0x1f8] sm:$0xff]
    %v793 = vld [vmem:[%s728 + $0x200] sm:$0xff]
    %v794 = vld [vmem:[%s728 + $0x208] sm:$0xff]
    %v795 = vld [vmem:[%s728 + $0x210] sm:$0xff]
    %v796 = vld [vmem:[%s728 + $0x218] sm:$0xff]
    %v797 = vld [vmem:[%s728 + $0x220] sm:$0xff]
    %v798 = vld [vmem:[%s728 + $0x228] sm:$0xff]
    %v799 = vld [vmem:[%s728 + $0x230] sm:$0xff]
    %v800 = vld [vmem:[%s728 + $0x238] sm:$0xff]
    %v801 = vld [vmem:[%s728 + $0x240] sm:$0xff]
    %v802 = vld [vmem:[%s728 + $0x248] sm:$0xff]
    %v803 = vld [vmem:[%s728 + $0x250] sm:$0xff]
    %v804 = vld [vmem:[%s728 + $0x258] sm:$0xff]
    %v805 = vld [vmem:[%s728 + $0x260] sm:$0xff]
    %v806 = vld [vmem:[%s728 + $0x268] sm:$0xff]
    %v807 = vld [vmem:[%s728 + $0x270] sm:$0xff]
    %v808 = vld [vmem:[%s728 + $0x278] sm:$0xff]
    %v809 = vld [vmem:[%s728 + $0x280] sm:$0xff]
    %v810 = vld [vmem:[%s728 + $0x288] sm:$0xff]
    %v811 = vld [vmem:[%s728 + $0x290] sm:$0xff]
    %v812 = vld [vmem:[%s728 + $0x298] sm:$0xff]
    %v813 = vld [vmem:[%s728 + $0x2a0] sm:$0xff]
    %v814 = vld [vmem:[%s728 + $0x2a8] sm:$0xff]
    %v815 = vld [vmem:[%s728 + $0x2b0] sm:$0xff]
    %v816 = vld [vmem:[%s728 + $0x2b8] sm:$0xff]
    %v817 = vld [vmem:[%s728 + $0x2c0] sm:$0xff]
    %v818 = vld [vmem:[%s728 + $0x2c8] sm:$0xff]
    %v819 = vld [vmem:[%s728 + $0x2d0] sm:$0xff]
    %v820 = vld [vmem:[%s728 + $0x2d8] sm:$0xff]
    %v821 = vld [vmem:[%s728 + $0x2e0] sm:$0xff]
    %v822 = vld [vmem:[%s728 + $0x2e8] sm:$0xff]
    %v823 = vld [vmem:[%s728 + $0x2f0] sm:$0xff]
    %v824 = vld [vmem:[%s728 + $0x2f8] sm:$0xff]
    %v825 = vld [vmem:[%s728 + $0x300] sm:$0xff]
    %v826 = vld [vmem:[%s728 + $0x308] sm:$0xff]
    %v827 = vld [vmem:[%s728 + $0x310] sm:$0xff]
    %v828 = vld [vmem:[%s728 + $0x318] sm:$0xff]
    %v829 = vld [vmem:[%s728 + $0x320] sm:$0xff]
    %v830 = vld [vmem:[%s728 + $0x328] sm:$0xff]
    %v831 = vld [vmem:[%s728 + $0x330] sm:$0xff]
    %v832 = vld [vmem:[%s728 + $0x338] sm:$0xff]
    %v833 = vld [vmem:[%s728 + $0x340] sm:$0xff]
    %v834 = vld [vmem:[%s728 + $0x348] sm:$0xff]
    %v835 = vld [vmem:[%s728 + $0x350] sm:$0xff]
    %v836 = vld [vmem:[%s728 + $0x358] sm:$0xff]
    %v837 = vld [vmem:[%s728 + $0x360] sm:$0xff]
    %v838 = vld [vmem:[%s728 + $0x368] sm:$0xff]
    %v839 = vld [vmem:[%s728 + $0x370] sm:$0xff]
    %v840 = vld [vmem:[%s728 + $0x378] sm:$0xff]
    %v841 = vld [vmem:[%s728 + $0x380] sm:$0xff]
    %v842 = vld [vmem:[%s728 + $0x388] sm:$0xff]
    %v843 = vld [vmem:[%s728 + $0x390] sm:$0xff]
    %v844 = vld [vmem:[%s728 + $0x398] sm:$0xff]
    %v845 = vld [vmem:[%s728 + $0x3a0] sm:$0xff]
    %v846 = vld [vmem:[%s728 + $0x3a8] sm:$0xff]
    %v847 = vld [vmem:[%s728 + $0x3b0] sm:$0xff]
    %v848 = vld [vmem:[%s728 + $0x3b8] sm:$0xff]
    %v849 = vld [vmem:[%s728 + $0x3c0] sm:$0xff]
    %v850 = vld [vmem:[%s728 + $0x3c8] sm:$0xff]
    %v851 = vld [vmem:[%s728 + $0x3d0] sm:$0xff]
    %v852 = vld [vmem:[%s728 + $0x3d8] sm:$0xff]
    %v853 = vld [vmem:[%s728 + $0x3e0] sm:$0xff]
    %v854 = vld [vmem:[%s728 + $0x3e8] sm:$0xff]
    %v855 = vld [vmem:[%s728 + $0x3f0] sm:$0xff]
    %v856 = vld [vmem:[%s728 + $0x3f8] sm:$0xff]
    %857 = vmatpush.msra.mxu0 %v744
    %858 = vmatpush.msra.mxu0 %v743
    %859 = vmatpush.msra.mxu0 %v742
    %860 = vmatpush.msra.mxu0 %v741
    %861 = vmatpush.msra.mxu0 %v740
    %862 = vmatpush.msra.mxu0 %v739
    %863 = vmatpush.msra.mxu0 %v738
    %864 = vmatpush.msra.mxu0 %v737
    %865 = vmatpush.msra.mxu0 %v736
    %866 = vmatpush.msra.mxu0 %v735
    %867 = vmatpush.msra.mxu0 %v734
    %868 = vmatpush.msra.mxu0 %v733
    %869 = vmatpush.msra.mxu0 %v732
    %870 = vmatpush.msra.mxu0 %v731
    %871 = vmatpush.msra.mxu0 %v730
    %872 = vmatpush.msra.mxu0 %v729
    %873 = vmatmul.f32.gmra.mxu0 %v720
    %v874 = vpop.f32.mrf.mxu0
    %v875 = vadd.f32 0.0, %v874
    %876 = vdwg.mxu0
    %877 = vmatpush.msra.mxu0 %v760
    %878 = vmatpush.msra.mxu0 %v759
    %879 = vmatpush.msra.mxu0 %v758
    %880 = vmatpush.msra.mxu0 %v757
    %881 = vmatpush.msra.mxu0 %v756
    %882 = vmatpush.msra.mxu0 %v755
    %883 = vmatpush.msra.mxu0 %v754
    %884 = vmatpush.msra.mxu0 %v753
    %885 = vmatpush.msra.mxu0 %v752
    %886 = vmatpush.msra.mxu0 %v751
    %887 = vmatpush.msra.mxu0 %v750
    %888 = vmatpush.msra.mxu0 %v749
    %889 = vmatpush.msra.mxu0 %v748
    %890 = vmatpush.msra.mxu0 %v747
    %891 = vmatpush.msra.mxu0 %v746
    %892 = vmatpush.msra.mxu0 %v745
    %893 = vmatmul.f32.gmra.mxu0 %v721
    %v894 = vpop.f32.mrf.mxu0
    %v895 = vadd.f32 %v875, %v894
    %896 = vdwg.mxu0
    %897 = vmatpush.msra.mxu0 %v776
    %898 = vmatpush.msra.mxu0 %v775
    %899 = vmatpush.msra.mxu0 %v774
    %900 = vmatpush.msra.mxu0 %v773
    %901 = vmatpush.msra.mxu0 %v772
    %902 = vmatpush.msra.mxu0 %v771
    %903 = vmatpush.msra.mxu0 %v770
    %904 = vmatpush.msra.mxu0 %v769
    %905 = vmatpush.msra.mxu0 %v768
    %906 = vmatpush.msra.mxu0 %v767
    %907 = vmatpush.msra.mxu0 %v766
    %908 = vmatpush.msra.mxu0 %v765
    %909 = vmatpush.msra.mxu0 %v764
    %910 = vmatpush.msra.mxu0 %v763
    %911 = vmatpush.msra.mxu0 %v762
    %912 = vmatpush.msra.mxu0 %v761
    %913 = vmatmul.f32.gmra.mxu0 %v722
    %v914 = vpop.f32.mrf.mxu0
    %v915 = vadd.f32 %v895, %v914
    %916 = vdwg.mxu0
    %917 = vmatpush.msra.mxu0 %v792
    %918 = vmatpush.msra.mxu0 %v791
    %919 = vmatpush.msra.mxu0 %v790
    %920 = vmatpush.msra.mxu0 %v789
    %921 = vmatpush.msra.mxu0 %v788
    %922 = vmatpush.msra.mxu0 %v787
    %923 = vmatpush.msra.mxu0 %v786
    %924 = vmatpush.msra.mxu0 %v785
    %925 = vmatpush.msra.mxu0 %v784
    %926 = vmatpush.msra.mxu0 %v783
    %927 = vmatpush.msra.mxu0 %v782
    %928 = vmatpush.msra.mxu0 %v781
    %929 = vmatpush.msra.mxu0 %v780
    %930 = vmatpush.msra.mxu0 %v779
    %931 = vmatpush.msra.mxu0 %v778
    %932 = vmatpush.msra.mxu0 %v777
    %933 = vmatmul.f32.gmra.mxu0 %v723
    %v934 = vpop.f32.mrf.mxu0
    %v935 = vadd.f32 %v915, %v934
    %936 = vdwg.mxu0
    %937 = vmatpush.msra.mxu0 %v808
    %938 = vmatpush.msra.mxu0 %v807
    %939 = vmatpush.msra.mxu0 %v806
    %940 = vmatpush.msra.mxu0 %v805
    %941 = vmatpush.msra.mxu0 %v804
    %942 = vmatpush.msra.mxu0 %v803
    %943 = vmatpush.msra.mxu0 %v802
    %944 = vmatpush.msra.mxu0 %v801
    %945 = vmatpush.msra.mxu0 %v800
    %946 = vmatpush.msra.mxu0 %v799
    %947 = vmatpush.msra.mxu0 %v798
    %948 = vmatpush.msra.mxu0 %v797
    %949 = vmatpush.msra.mxu0 %v796
    %950 = vmatpush.msra.mxu0 %v795
    %951 = vmatpush.msra.mxu0 %v794
    %952 = vmatpush.msra.mxu0 %v793
    %953 = vmatmul.f32.gmra.mxu0 %v724
    %v954 = vpop.f32.mrf.mxu0
    %v955 = vadd.f32 %v935, %v954
    %956 = vdwg.mxu0
    %957 = vmatpush.msra.mxu0 %v824
    %958 = vmatpush.msra.mxu0 %v823
    %959 = vmatpush.msra.mxu0 %v822
    %960 = vmatpush.msra.mxu0 %v821
    %961 = vmatpush.msra.mxu0 %v820
    %962 = vmatpush.msra.mxu0 %v819
    %963 = vmatpush.msra.mxu0 %v818
    %964 = vmatpush.msra.mxu0 %v817
    %965 = vmatpush.msra.mxu0 %v816
    %966 = vmatpush.msra.mxu0 %v815
    %967 = vmatpush.msra.mxu0 %v814
    %968 = vmatpush.msra.mxu0 %v813
    %969 = vmatpush.msra.mxu0 %v812
    %970 = vmatpush.msra.mxu0 %v811
    %971 = vmatpush.msra.mxu0 %v810
    %972 = vmatpush.msra.mxu0 %v809
    %973 = vmatmul.f32.gmra.mxu0 %v725
    %v974 = vpop.f32.mrf.mxu0
    %v975 = vadd.f32 %v955, %v974
    %976 = vdwg.mxu0
    %977 = vmatpush.msra.mxu0 %v840
    %978 = vmatpush.msra.mxu0 %v839
    %979 = vmatpush.msra.mxu0 %v838
    %980 = vmatpush.msra.mxu0 %v837
    %981 = vmatpush.msra.mxu0 %v836
    %982 = vmatpush.msra.mxu0 %v835
    %983 = vmatpush.msra.mxu0 %v834
    %984 = vmatpush.msra.mxu0 %v833
    %985 = vmatpush.msra.mxu0 %v832
    %986 = vmatpush.msra.mxu0 %v831
    %987 = vmatpush.msra.mxu0 %v830
    %988 = vmatpush.msra.mxu0 %v829
    %989 = vmatpush.msra.mxu0 %v828
    %990 = vmatpush.msra.mxu0 %v827
    %991 = vmatpush.msra.mxu0 %v826
    %992 = vmatpush.msra.mxu0 %v825
    %993 = vmatmul.f32.gmra.mxu0 %v726
    %v994 = vpop.f32.mrf.mxu0
    %v995 = vadd.f32 %v975, %v994
    %996 = vdwg.mxu0
    %997 = vmatpush.msra.mxu0 %v856
    %998 = vmatpush.msra.mxu0 %v855
    %999 = vmatpush.msra.mxu0 %v854
    %1000 = vmatpush.msra.mxu0 %v853
    %1001 = vmatpush.msra.mxu0 %v852
    %1002 = vmatpush.msra.mxu0 %v851
    %1003 = vmatpush.msra.mxu0 %v850
    %1004 = vmatpush.msra.mxu0 %v849
    %1005 = vmatpush.msra.mxu0 %v848
    %1006 = vmatpush.msra.mxu0 %v847
    %1007 = vmatpush.msra.mxu0 %v846
    %1008 = vmatpush.msra.mxu0 %v845
    %1009 = vmatpush.msra.mxu0 %v844
    %1010 = vmatpush.msra.mxu0 %v843
    %1011 = vmatpush.msra.mxu0 %v842
    %1012 = vmatpush.msra.mxu0 %v841
    %1013 = vmatmul.f32.gmra.mxu0 %v727
    %v1014 = vpop.f32.mrf.mxu0
    %v1015 = vadd.f32 %v995, %v1014
    %1016 = vdwg.mxu0
    %1017 = vmatpush.msra.mxu0 %v363
    %1018 = vmatpush.msra.mxu0 %v362
    %1019 = vmatpush.msra.mxu0 %v361
    %1020 = vmatpush.msra.mxu0 %v360
    %1021 = vmatpush.msra.mxu0 %v359
    %1022 = vmatpush.msra.mxu0 %v358
    %1023 = vmatpush.msra.mxu0 %v357
    %1024 = vmatpush.msra.mxu0 %v356
    %1025 = vmatpush.msra.mxu0 %v355
    %1026 = vmatpush.msra.mxu0 %v354
    %1027 = vmatpush.msra.mxu0 %v353
    %1028 = vmatpush.msra.mxu0 %v352
    %1029 = vmatpush.msra.mxu0 %v351
    %1030 = vmatpush.msra.mxu0 %v350
    %1031 = vmatpush.msra.mxu0 %v349
    %1032 = vmatpush.msra.mxu0 %v348
    %1033 = vmatmul.f32.gmra.mxu0 %v340
    %v1034 = vpop.f32.mrf.mxu0
    %v1035 = vadd.f32 %v1015, %v1034
    %1036 = vdwg.mxu0
    %1037 = vmatpush.msra.mxu0 %v379
    %1038 = vmatpush.msra.mxu0 %v378
    %1039 = vmatpush.msra.mxu0 %v377
    %1040 = vmatpush.msra.mxu0 %v376
    %1041 = vmatpush.msra.mxu0 %v375
    %1042 = vmatpush.msra.mxu0 %v374
    %1043 = vmatpush.msra.mxu0 %v373
    %1044 = vmatpush.msra.mxu0 %v372
    %1045 = vmatpush.msra.mxu0 %v371
    %1046 = vmatpush.msra.mxu0 %v370
    %1047 = vmatpush.msra.mxu0 %v369
    %1048 = vmatpush.msra.mxu0 %v368
    %1049 = vmatpush.msra.mxu0 %v367
    %1050 = vmatpush.msra.mxu0 %v366
    %1051 = vmatpush.msra.mxu0 %v365
    %1052 = vmatpush.msra.mxu0 %v364
    %1053 = vmatmul.f32.gmra.mxu0 %v341
    %v1054 = vpop.f32.mrf.mxu0
    %v1055 = vadd.f32 %v1035, %v1054
    %1056 = vdwg.mxu0
    %1057 = vmatpush.msra.mxu0 %v395
    %1058 = vmatpush.msra.mxu0 %v394
    %1059 = vmatpush.msra.mxu0 %v393
    %1060 = vmatpush.msra.mxu0 %v392
    %1061 = vmatpush.msra.mxu0 %v391
    %1062 = vmatpush.msra.mxu0 %v390
    %1063 = vmatpush.msra.mxu0 %v389
    %1064 = vmatpush.msra.mxu0 %v388
    %1065 = vmatpush.msra.mxu0 %v387
    %1066 = vmatpush.msra.mxu0 %v386
    %1067 = vmatpush.msra.mxu0 %v385
    %1068 = vmatpush.msra.mxu0 %v384
    %1069 = vmatpush.msra.mxu0 %v383
    %1070 = vmatpush.msra.mxu0 %v382
    %1071 = vmatpush.msra.mxu0 %v381
    %1072 = vmatpush.msra.mxu0 %v380
    %1073 = vmatmul.f32.gmra.mxu0 %v342
    %v1074 = vpop.f32.mrf.mxu0
    %v1075 = vadd.f32 %v1055, %v1074
    %1076 = vdwg.mxu0
    %1077 = vmatpush.msra.mxu0 %v411
    %1078 = vmatpush.msra.mxu0 %v410
    %1079 = vmatpush.msra.mxu0 %v409
    %1080 = vmatpush.msra.mxu0 %v408
    %1081 = vmatpush.msra.mxu0 %v407
    %1082 = vmatpush.msra.mxu0 %v406
    %1083 = vmatpush.msra.mxu0 %v405
    %1084 = vmatpush.msra.mxu0 %v404
    %1085 = vmatpush.msra.mxu0 %v403
    %1086 = vmatpush.msra.mxu0 %v402
    %1087 = vmatpush.msra.mxu0 %v401
    %1088 = vmatpush.msra.mxu0 %v400
    %1089 = vmatpush.msra.mxu0 %v399
    %1090 = vmatpush.msra.mxu0 %v398
    %1091 = vmatpush.msra.mxu0 %v397
    %1092 = vmatpush.msra.mxu0 %v396
    %1093 = vmatmul.f32.gmra.mxu0 %v343
    %v1094 = vpop.f32.mrf.mxu0
    %v1095 = vadd.f32 %v1075, %v1094
    %1096 = vdwg.mxu0
    %1097 = vmatpush.msra.mxu0 %v427
    %1098 = vmatpush.msra.mxu0 %v426
    %1099 = vmatpush.msra.mxu0 %v425
    %1100 = vmatpush.msra.mxu0 %v424
    %1101 = vmatpush.msra.mxu0 %v423
    %1102 = vmatpush.msra.mxu0 %v422
    %1103 = vmatpush.msra.mxu0 %v421
    %1104 = vmatpush.msra.mxu0 %v420
    %1105 = vmatpush.msra.mxu0 %v419
    %1106 = vmatpush.msra.mxu0 %v418
    %1107 = vmatpush.msra.mxu0 %v417
    %1108 = vmatpush.msra.mxu0 %v416
    %1109 = vmatpush.msra.mxu0 %v415
    %1110 = vmatpush.msra.mxu0 %v414
    %1111 = vmatpush.msra.mxu0 %v413
    %1112 = vmatpush.msra.mxu0 %v412
    %1113 = vmatmul.f32.gmra.mxu0 %v344
    %v1114 = vpop.f32.mrf.mxu0
    %v1115 = vadd.f32 %v1095, %v1114
    %1116 = vdwg.mxu0
    %1117 = vmatpush.msra.mxu0 %v443
    %1118 = vmatpush.msra.mxu0 %v442
    %1119 = vmatpush.msra.mxu0 %v441
    %1120 = vmatpush.msra.mxu0 %v440
    %1121 = vmatpush.msra.mxu0 %v439
    %1122 = vmatpush.msra.mxu0 %v438
    %1123 = vmatpush.msra.mxu0 %v437
    %1124 = vmatpush.msra.mxu0 %v436
    %1125 = vmatpush.msra.mxu0 %v435
    %1126 = vmatpush.msra.mxu0 %v434
    %1127 = vmatpush.msra.mxu0 %v433
    %1128 = vmatpush.msra.mxu0 %v432
    %1129 = vmatpush.msra.mxu0 %v431
    %1130 = vmatpush.msra.mxu0 %v430
    %1131 = vmatpush.msra.mxu0 %v429
    %1132 = vmatpush.msra.mxu0 %v428
    %1133 = vmatmul.f32.gmra.mxu0 %v345
    %v1134 = vpop.f32.mrf.mxu0
    %v1135 = vadd.f32 %v1115, %v1134
    %1136 = vdwg.mxu0
    %1137 = vmatpush.msra.mxu0 %v459
    %1138 = vmatpush.msra.mxu0 %v458
    %1139 = vmatpush.msra.mxu0 %v457
    %1140 = vmatpush.msra.mxu0 %v456
    %1141 = vmatpush.msra.mxu0 %v455
    %1142 = vmatpush.msra.mxu0 %v454
    %1143 = vmatpush.msra.mxu0 %v453
    %1144 = vmatpush.msra.mxu0 %v452
    %1145 = vmatpush.msra.mxu0 %v451
    %1146 = vmatpush.msra.mxu0 %v450
    %1147 = vmatpush.msra.mxu0 %v449
    %1148 = vmatpush.msra.mxu0 %v448
    %1149 = vmatpush.msra.mxu0 %v447
    %1150 = vmatpush.msra.mxu0 %v446
    %1151 = vmatpush.msra.mxu0 %v445
    %1152 = vmatpush.msra.mxu0 %v444
    %1153 = vmatmul.f32.gmra.mxu0 %v346
    %v1154 = vpop.f32.mrf.mxu0
    %v1155 = vadd.f32 %v1135, %v1154
    %1156 = vdwg.mxu0
    %1157 = vmatpush.msra.mxu0 %v475
    %1158 = vmatpush.msra.mxu0 %v474
    %1159 = vmatpush.msra.mxu0 %v473
    %1160 = vmatpush.msra.mxu0 %v472
    %1161 = vmatpush.msra.mxu0 %v471
    %1162 = vmatpush.msra.mxu0 %v470
    %1163 = vmatpush.msra.mxu0 %v469
    %1164 = vmatpush.msra.mxu0 %v468
    %1165 = vmatpush.msra.mxu0 %v467
    %1166 = vmatpush.msra.mxu0 %v466
    %1167 = vmatpush.msra.mxu0 %v465
    %1168 = vmatpush.msra.mxu0 %v464
    %1169 = vmatpush.msra.mxu0 %v463
    %1170 = vmatpush.msra.mxu0 %v462
    %1171 = vmatpush.msra.mxu0 %v461
    %1172 = vmatpush.msra.mxu0 %v460
    %1173 = vmatmul.f32.gmra.mxu0 %v347
    %v1174 = vpop.f32.mrf.mxu0
    %v1175 = vadd.f32 %v1155, %v1174
    %1176 = vdwg.mxu0
    %s1177 = scalar_lea.vmem [#allocation5], 128
    %v1178 = vld [vmem:[%s1177] sm:$0xff]
    %v1179 = vld [vmem:[%s1177 + $0x8] sm:$0xff]
    %v1180 = vld [vmem:[%s1177 + $0x10] sm:$0xff]
    %v1181 = vld [vmem:[%s1177 + $0x18] sm:$0xff]
    %v1182 = vld [vmem:[%s1177 + $0x20] sm:$0xff]
    %v1183 = vld [vmem:[%s1177 + $0x28] sm:$0xff]
    %v1184 = vld [vmem:[%s1177 + $0x30] sm:$0xff]
    %v1185 = vld [vmem:[%s1177 + $0x38] sm:$0xff]
    %v1186 = vld [vmem:[%s1177 + $0x140] sm:$0xff]
    %v1187 = vld [vmem:[%s1177 + $0x148] sm:$0xff]
    %v1188 = vld [vmem:[%s1177 + $0x150] sm:$0xff]
    %v1189 = vld [vmem:[%s1177 + $0x158] sm:$0xff]
    %v1190 = vld [vmem:[%s1177 + $0x160] sm:$0xff]
    %v1191 = vld [vmem:[%s1177 + $0x168] sm:$0xff]
    %v1192 = vld [vmem:[%s1177 + $0x170] sm:$0xff]
    %v1193 = vld [vmem:[%s1177 + $0x178] sm:$0xff]
    %v1194 = vld [vmem:[%s1177 + $0x280] sm:$0xff]
    %v1195 = vld [vmem:[%s1177 + $0x288] sm:$0xff]
    %v1196 = vld [vmem:[%s1177 + $0x290] sm:$0xff]
    %v1197 = vld [vmem:[%s1177 + $0x298] sm:$0xff]
    %v1198 = vld [vmem:[%s1177 + $0x2a0] sm:$0xff]
    %v1199 = vld [vmem:[%s1177 + $0x2a8] sm:$0xff]
    %v1200 = vld [vmem:[%s1177 + $0x2b0] sm:$0xff]
    %v1201 = vld [vmem:[%s1177 + $0x2b8] sm:$0xff]
    %v1202 = vld [vmem:[%s1177 + $0x3c0] sm:$0xff]
    %v1203 = vld [vmem:[%s1177 + $0x3c8] sm:$0xff]
    %v1204 = vld [vmem:[%s1177 + $0x3d0] sm:$0xff]
    %v1205 = vld [vmem:[%s1177 + $0x3d8] sm:$0xff]
    %v1206 = vld [vmem:[%s1177 + $0x3e0] sm:$0xff]
    %v1207 = vld [vmem:[%s1177 + $0x3e8] sm:$0xff]
    %v1208 = vld [vmem:[%s1177 + $0x3f0] sm:$0xff]
    %v1209 = vld [vmem:[%s1177 + $0x3f8] sm:$0xff]
    %v1210 = vld [vmem:[%s1177 + $0x500] sm:$0xff]
    %v1211 = vld [vmem:[%s1177 + $0x508] sm:$0xff]
    %v1212 = vld [vmem:[%s1177 + $0x510] sm:$0xff]
    %v1213 = vld [vmem:[%s1177 + $0x518] sm:$0xff]
    %v1214 = vld [vmem:[%s1177 + $0x520] sm:$0xff]
    %v1215 = vld [vmem:[%s1177 + $0x528] sm:$0xff]
    %v1216 = vld [vmem:[%s1177 + $0x530] sm:$0xff]
    %v1217 = vld [vmem:[%s1177 + $0x538] sm:$0xff]
    %v1218 = vld [vmem:[%s1177 + $0x640] sm:$0xff]
    %v1219 = vld [vmem:[%s1177 + $0x648] sm:$0xff]
    %v1220 = vld [vmem:[%s1177 + $0x650] sm:$0xff]
    %v1221 = vld [vmem:[%s1177 + $0x658] sm:$0xff]
    %v1222 = vld [vmem:[%s1177 + $0x660] sm:$0xff]
    %v1223 = vld [vmem:[%s1177 + $0x668] sm:$0xff]
    %v1224 = vld [vmem:[%s1177 + $0x670] sm:$0xff]
    %v1225 = vld [vmem:[%s1177 + $0x678] sm:$0xff]
    %v1226 = vld [vmem:[%s1177 + $0x780] sm:$0xff]
    %v1227 = vld [vmem:[%s1177 + $0x788] sm:$0xff]
    %v1228 = vld [vmem:[%s1177 + $0x790] sm:$0xff]
    %v1229 = vld [vmem:[%s1177 + $0x798] sm:$0xff]
    %v1230 = vld [vmem:[%s1177 + $0x7a0] sm:$0xff]
    %v1231 = vld [vmem:[%s1177 + $0x7a8] sm:$0xff]
    %v1232 = vld [vmem:[%s1177 + $0x7b0] sm:$0xff]
    %v1233 = vld [vmem:[%s1177 + $0x7b8] sm:$0xff]
    %v1234 = vld [vmem:[%s1177 + $0x8c0] sm:$0xff]
    %v1235 = vld [vmem:[%s1177 + $0x8c8] sm:$0xff]
    %v1236 = vld [vmem:[%s1177 + $0x8d0] sm:$0xff]
    %v1237 = vld [vmem:[%s1177 + $0x8d8] sm:$0xff]
    %v1238 = vld [vmem:[%s1177 + $0x8e0] sm:$0xff]
    %v1239 = vld [vmem:[%s1177 + $0x8e8] sm:$0xff]
    %v1240 = vld [vmem:[%s1177 + $0x8f0] sm:$0xff]
    %v1241 = vld [vmem:[%s1177 + $0x8f8] sm:$0xff]
    %s1242 = scalar_lea.vmem [#allocation7], 16
    %v1243 = vld [vmem:[%s1242] sm:$0xff]
    %v1245 = vperm.slane %v1243, 0
    %v1246 = vperm.slane %v1243, 1
    %v1247 = vperm.slane %v1243, 2
    %v1248 = vperm.slane %v1243, 3
    %v1249 = vperm.slane %v1243, 4
    %v1250 = vperm.slane %v1243, 5
    %v1251 = vperm.slane %v1243, 6
    %v1252 = vperm.slane %v1243, 7
    %1261 = vmatpush.msra.mxu0 0.0
    %1262 = vmatpush.msra.mxu0 0.0
    %1263 = vmatpush.msra.mxu0 0.0
    %1264 = vmatpush.msra.mxu0 0.0
    %1265 = vmatpush.msra.mxu0 0.0
    %1266 = vmatpush.msra.mxu0 0.0
    %1267 = vmatpush.msra.mxu0 0.0
    %1268 = vmatpush.msra.mxu0 0.0
    %1269 = vmatpush.msra.mxu0 %v1234
    %1270 = vmatpush.msra.mxu0 %v1226
    %1271 = vmatpush.msra.mxu0 %v1218
    %1272 = vmatpush.msra.mxu0 %v1210
    %1273 = vmatpush.msra.mxu0 %v1202
    %1274 = vmatpush.msra.mxu0 %v1194
    %1275 = vmatpush.msra.mxu0 %v1186
    %1276 = vmatpush.msra.mxu0 %v1178
    %1277 = vmatmul.f32.gmra.mxu0 %v178
    %v1278 = vpop.f32.mrf.mxu0
    %v1279 = vadd.f32 %v1245, %v1278
    %1280 = vdwg.mxu0
    %1281 = vmatpush.msra.mxu0 0.0
    %1282 = vmatpush.msra.mxu0 0.0
    %1283 = vmatpush.msra.mxu0 0.0
    %1284 = vmatpush.msra.mxu0 0.0
    %1285 = vmatpush.msra.mxu0 0.0
    %1286 = vmatpush.msra.mxu0 0.0
    %1287 = vmatpush.msra.mxu0 0.0
    %1288 = vmatpush.msra.mxu0 0.0
    %1289 = vmatpush.msra.mxu0 %v1235
    %1290 = vmatpush.msra.mxu0 %v1227
    %1291 = vmatpush.msra.mxu0 %v1219
    %1292 = vmatpush.msra.mxu0 %v1211
    %1293 = vmatpush.msra.mxu0 %v1203
    %1294 = vmatpush.msra.mxu0 %v1195
    %1295 = vmatpush.msra.mxu0 %v1187
    %1296 = vmatpush.msra.mxu0 %v1179
    %1297 = vmatmul.f32.gmra.mxu0 %v178
    %v1298 = vpop.f32.mrf.mxu0
    %v1299 = vadd.f32 %v1246, %v1298
    %1300 = vdwg.mxu0
    %1301 = vmatpush.msra.mxu0 0.0
    %1302 = vmatpush.msra.mxu0 0.0
    %1303 = vmatpush.msra.mxu0 0.0
    %1304 = vmatpush.msra.mxu0 0.0
    %1305 = vmatpush.msra.mxu0 0.0
    %1306 = vmatpush.msra.mxu0 0.0
    %1307 = vmatpush.msra.mxu0 0.0
    %1308 = vmatpush.msra.mxu0 0.0
    %1309 = vmatpush.msra.mxu0 %v1236
    %1310 = vmatpush.msra.mxu0 %v1228
    %1311 = vmatpush.msra.mxu0 %v1220
    %1312 = vmatpush.msra.mxu0 %v1212
    %1313 = vmatpush.msra.mxu0 %v1204
    %1314 = vmatpush.msra.mxu0 %v1196
    %1315 = vmatpush.msra.mxu0 %v1188
    %1316 = vmatpush.msra.mxu0 %v1180
    %1317 = vmatmul.f32.gmra.mxu0 %v178
    %v1318 = vpop.f32.mrf.mxu0
    %v1319 = vadd.f32 %v1247, %v1318
    %1320 = vdwg.mxu0
    %1321 = vmatpush.msra.mxu0 0.0
    %1322 = vmatpush.msra.mxu0 0.0
    %1323 = vmatpush.msra.mxu0 0.0
    %1324 = vmatpush.msra.mxu0 0.0
    %1325 = vmatpush.msra.mxu0 0.0
    %1326 = vmatpush.msra.mxu0 0.0
    %1327 = vmatpush.msra.mxu0 0.0
    %1328 = vmatpush.msra.mxu0 0.0
    %1329 = vmatpush.msra.mxu0 %v1237
    %1330 = vmatpush.msra.mxu0 %v1229
    %1331 = vmatpush.msra.mxu0 %v1221
    %1332 = vmatpush.msra.mxu0 %v1213
    %1333 = vmatpush.msra.mxu0 %v1205
    %1334 = vmatpush.msra.mxu0 %v1197
    %1335 = vmatpush.msra.mxu0 %v1189
    %1336 = vmatpush.msra.mxu0 %v1181
    %1337 = vmatmul.f32.gmra.mxu0 %v178
    %v1338 = vpop.f32.mrf.mxu0
    %v1339 = vadd.f32 %v1248, %v1338
    %1340 = vdwg.mxu0
    %1341 = vmatpush.msra.mxu0 0.0
    %1342 = vmatpush.msra.mxu0 0.0
    %1343 = vmatpush.msra.mxu0 0.0
    %1344 = vmatpush.msra.mxu0 0.0
    %1345 = vmatpush.msra.mxu0 0.0
    %1346 = vmatpush.msra.mxu0 0.0
    %1347 = vmatpush.msra.mxu0 0.0
    %1348 = vmatpush.msra.mxu0 0.0
    %1349 = vmatpush.msra.mxu0 %v1238
    %1350 = vmatpush.msra.mxu0 %v1230
    %1351 = vmatpush.msra.mxu0 %v1222
    %1352 = vmatpush.msra.mxu0 %v1214
    %1353 = vmatpush.msra.mxu0 %v1206
    %1354 = vmatpush.msra.mxu0 %v1198
    %1355 = vmatpush.msra.mxu0 %v1190
    %1356 = vmatpush.msra.mxu0 %v1182
    %1357 = vmatmul.f32.gmra.mxu0 %v178
    %v1358 = vpop.f32.mrf.mxu0
    %v1359 = vadd.f32 %v1249, %v1358
    %1360 = vdwg.mxu0
    %1361 = vmatpush.msra.mxu0 0.0
    %1362 = vmatpush.msra.mxu0 0.0
    %1363 = vmatpush.msra.mxu0 0.0
    %1364 = vmatpush.msra.mxu0 0.0
    %1365 = vmatpush.msra.mxu0 0.0
    %1366 = vmatpush.msra.mxu0 0.0
    %1367 = vmatpush.msra.mxu0 0.0
    %1368 = vmatpush.msra.mxu0 0.0
    %1369 = vmatpush.msra.mxu0 %v1239
    %1370 = vmatpush.msra.mxu0 %v1231
    %1371 = vmatpush.msra.mxu0 %v1223
    %1372 = vmatpush.msra.mxu0 %v1215
    %1373 = vmatpush.msra.mxu0 %v1207
    %1374 = vmatpush.msra.mxu0 %v1199
    %1375 = vmatpush.msra.mxu0 %v1191
    %1376 = vmatpush.msra.mxu0 %v1183
    %1377 = vmatmul.f32.gmra.mxu0 %v178
    %v1378 = vpop.f32.mrf.mxu0
    %v1379 = vadd.f32 %v1250, %v1378
    %1380 = vdwg.mxu0
    %1381 = vmatpush.msra.mxu0 0.0
    %1382 = vmatpush.msra.mxu0 0.0
    %1383 = vmatpush.msra.mxu0 0.0
    %1384 = vmatpush.msra.mxu0 0.0
    %1385 = vmatpush.msra.mxu0 0.0
    %1386 = vmatpush.msra.mxu0 0.0
    %1387 = vmatpush.msra.mxu0 0.0
    %1388 = vmatpush.msra.mxu0 0.0
    %1389 = vmatpush.msra.mxu0 %v1240
    %1390 = vmatpush.msra.mxu0 %v1232
    %1391 = vmatpush.msra.mxu0 %v1224
    %1392 = vmatpush.msra.mxu0 %v1216
    %1393 = vmatpush.msra.mxu0 %v1208
    %1394 = vmatpush.msra.mxu0 %v1200
    %1395 = vmatpush.msra.mxu0 %v1192
    %1396 = vmatpush.msra.mxu0 %v1184
    %1397 = vmatmul.f32.gmra.mxu0 %v178
    %v1398 = vpop.f32.mrf.mxu0
    %v1399 = vadd.f32 %v1251, %v1398
    %1400 = vdwg.mxu0
    %1401 = vmatpush.msra.mxu0 0.0
    %1402 = vmatpush.msra.mxu0 0.0
    %1403 = vmatpush.msra.mxu0 0.0
    %1404 = vmatpush.msra.mxu0 0.0
    %1405 = vmatpush.msra.mxu0 0.0
    %1406 = vmatpush.msra.mxu0 0.0
    %1407 = vmatpush.msra.mxu0 0.0
    %1408 = vmatpush.msra.mxu0 0.0
    %1409 = vmatpush.msra.mxu0 %v1241
    %1410 = vmatpush.msra.mxu0 %v1233
    %1411 = vmatpush.msra.mxu0 %v1225
    %1412 = vmatpush.msra.mxu0 %v1217
    %1413 = vmatpush.msra.mxu0 %v1209
    %1414 = vmatpush.msra.mxu0 %v1201
    %1415 = vmatpush.msra.mxu0 %v1193
    %1416 = vmatpush.msra.mxu0 %v1185
    %1417 = vmatmul.f32.gmra.mxu0 %v178
    %v1418 = vpop.f32.mrf.mxu0
    %v1419 = vadd.f32 %v1252, %v1418
    %1420 = vdwg.mxu0
    %v1421 = vmax.f32 %v1279, 0.0
    %v1422 = vmax.f32 %v1299, 0.0
    %v1423 = vmax.f32 %v1319, 0.0
    %v1424 = vmax.f32 %v1339, 0.0
    %v1425 = vmax.f32 %v1359, 0.0
    %v1426 = vmax.f32 %v1379, 0.0
    %v1427 = vmax.f32 %v1399, 0.0
    %v1428 = vmax.f32 %v1419, 0.0
    %s1429 = scalar_lea.vmem [#allocation8], 2048
    %v1430 = vld [vmem:[%s1429] sm:$0xff]
    %v1431 = vld [vmem:[%s1429 + $0x8] sm:$0xff]
    %v1432 = vld [vmem:[%s1429 + $0x10] sm:$0xff]
    %v1433 = vld [vmem:[%s1429 + $0x18] sm:$0xff]
    %v1434 = vld [vmem:[%s1429 + $0x20] sm:$0xff]
    %v1435 = vld [vmem:[%s1429 + $0x28] sm:$0xff]
    %v1436 = vld [vmem:[%s1429 + $0x30] sm:$0xff]
    %v1437 = vld [vmem:[%s1429 + $0x38] sm:$0xff]
    %v1438 = vld [vmem:[%s1429 + $0x40] sm:$0xff]
    %v1439 = vld [vmem:[%s1429 + $0x48] sm:$0xff]
    %v1440 = vld [vmem:[%s1429 + $0x50] sm:$0xff]
    %v1441 = vld [vmem:[%s1429 + $0x58] sm:$0xff]
    %v1442 = vld [vmem:[%s1429 + $0x60] sm:$0xff]
    %v1443 = vld [vmem:[%s1429 + $0x68] sm:$0xff]
    %v1444 = vld [vmem:[%s1429 + $0x70] sm:$0xff]
    %v1445 = vld [vmem:[%s1429 + $0x78] sm:$0xff]
    %v1446 = vld [vmem:[%s1429 + $0x80] sm:$0xff]
    %v1447 = vld [vmem:[%s1429 + $0x88] sm:$0xff]
    %v1448 = vld [vmem:[%s1429 + $0x90] sm:$0xff]
    %v1449 = vld [vmem:[%s1429 + $0x98] sm:$0xff]
    %v1450 = vld [vmem:[%s1429 + $0xa0] sm:$0xff]
    %v1451 = vld [vmem:[%s1429 + $0xa8] sm:$0xff]
    %v1452 = vld [vmem:[%s1429 + $0xb0] sm:$0xff]
    %v1453 = vld [vmem:[%s1429 + $0xb8] sm:$0xff]
    %v1454 = vld [vmem:[%s1429 + $0xc0] sm:$0xff]
    %v1455 = vld [vmem:[%s1429 + $0xc8] sm:$0xff]
    %v1456 = vld [vmem:[%s1429 + $0xd0] sm:$0xff]
    %v1457 = vld [vmem:[%s1429 + $0xd8] sm:$0xff]
    %v1458 = vld [vmem:[%s1429 + $0xe0] sm:$0xff]
    %v1459 = vld [vmem:[%s1429 + $0xe8] sm:$0xff]
    %v1460 = vld [vmem:[%s1429 + $0xf0] sm:$0xff]
    %v1461 = vld [vmem:[%s1429 + $0xf8] sm:$0xff]
    %v1462 = vld [vmem:[%s1429 + $0x100] sm:$0xff]
    %v1463 = vld [vmem:[%s1429 + $0x108] sm:$0xff]
    %v1464 = vld [vmem:[%s1429 + $0x110] sm:$0xff]
    %v1465 = vld [vmem:[%s1429 + $0x118] sm:$0xff]
    %v1466 = vld [vmem:[%s1429 + $0x120] sm:$0xff]
    %v1467 = vld [vmem:[%s1429 + $0x128] sm:$0xff]
    %v1468 = vld [vmem:[%s1429 + $0x130] sm:$0xff]
    %v1469 = vld [vmem:[%s1429 + $0x138] sm:$0xff]
    %v1470 = vld [vmem:[%s1429 + $0x140] sm:$0xff]
    %v1471 = vld [vmem:[%s1429 + $0x148] sm:$0xff]
    %v1472 = vld [vmem:[%s1429 + $0x150] sm:$0xff]
    %v1473 = vld [vmem:[%s1429 + $0x158] sm:$0xff]
    %v1474 = vld [vmem:[%s1429 + $0x160] sm:$0xff]
    %v1475 = vld [vmem:[%s1429 + $0x168] sm:$0xff]
    %v1476 = vld [vmem:[%s1429 + $0x170] sm:$0xff]
    %v1477 = vld [vmem:[%s1429 + $0x178] sm:$0xff]
    %v1478 = vld [vmem:[%s1429 + $0x180] sm:$0xff]
    %v1479 = vld [vmem:[%s1429 + $0x188] sm:$0xff]
    %v1480 = vld [vmem:[%s1429 + $0x190] sm:$0xff]
    %v1481 = vld [vmem:[%s1429 + $0x198] sm:$0xff]
    %v1482 = vld [vmem:[%s1429 + $0x1a0] sm:$0xff]
    %v1483 = vld [vmem:[%s1429 + $0x1a8] sm:$0xff]
    %v1484 = vld [vmem:[%s1429 + $0x1b0] sm:$0xff]
    %v1485 = vld [vmem:[%s1429 + $0x1b8] sm:$0xff]
    %v1486 = vld [vmem:[%s1429 + $0x1c0] sm:$0xff]
    %v1487 = vld [vmem:[%s1429 + $0x1c8] sm:$0xff]
    %v1488 = vld [vmem:[%s1429 + $0x1d0] sm:$0xff]
    %v1489 = vld [vmem:[%s1429 + $0x1d8] sm:$0xff]
    %v1490 = vld [vmem:[%s1429 + $0x1e0] sm:$0xff]
    %v1491 = vld [vmem:[%s1429 + $0x1e8] sm:$0xff]
    %v1492 = vld [vmem:[%s1429 + $0x1f0] sm:$0xff]
    %v1493 = vld [vmem:[%s1429 + $0x1f8] sm:$0xff]
    %v1494 = vld [vmem:[%s1429 + $0x200] sm:$0xff]
    %v1495 = vld [vmem:[%s1429 + $0x208] sm:$0xff]
    %v1496 = vld [vmem:[%s1429 + $0x210] sm:$0xff]
    %v1497 = vld [vmem:[%s1429 + $0x218] sm:$0xff]
    %v1498 = vld [vmem:[%s1429 + $0x220] sm:$0xff]
    %v1499 = vld [vmem:[%s1429 + $0x228] sm:$0xff]
    %v1500 = vld [vmem:[%s1429 + $0x230] sm:$0xff]
    %v1501 = vld [vmem:[%s1429 + $0x238] sm:$0xff]
    %v1502 = vld [vmem:[%s1429 + $0x240] sm:$0xff]
    %v1503 = vld [vmem:[%s1429 + $0x248] sm:$0xff]
    %v1504 = vld [vmem:[%s1429 + $0x250] sm:$0xff]
    %v1505 = vld [vmem:[%s1429 + $0x258] sm:$0xff]
    %v1506 = vld [vmem:[%s1429 + $0x260] sm:$0xff]
    %v1507 = vld [vmem:[%s1429 + $0x268] sm:$0xff]
    %v1508 = vld [vmem:[%s1429 + $0x270] sm:$0xff]
    %v1509 = vld [vmem:[%s1429 + $0x278] sm:$0xff]
    %v1510 = vld [vmem:[%s1429 + $0x280] sm:$0xff]
    %v1511 = vld [vmem:[%s1429 + $0x288] sm:$0xff]
    %v1512 = vld [vmem:[%s1429 + $0x290] sm:$0xff]
    %v1513 = vld [vmem:[%s1429 + $0x298] sm:$0xff]
    %v1514 = vld [vmem:[%s1429 + $0x2a0] sm:$0xff]
    %v1515 = vld [vmem:[%s1429 + $0x2a8] sm:$0xff]
    %v1516 = vld [vmem:[%s1429 + $0x2b0] sm:$0xff]
    %v1517 = vld [vmem:[%s1429 + $0x2b8] sm:$0xff]
    %v1518 = vld [vmem:[%s1429 + $0x2c0] sm:$0xff]
    %v1519 = vld [vmem:[%s1429 + $0x2c8] sm:$0xff]
    %v1520 = vld [vmem:[%s1429 + $0x2d0] sm:$0xff]
    %v1521 = vld [vmem:[%s1429 + $0x2d8] sm:$0xff]
    %v1522 = vld [vmem:[%s1429 + $0x2e0] sm:$0xff]
    %v1523 = vld [vmem:[%s1429 + $0x2e8] sm:$0xff]
    %v1524 = vld [vmem:[%s1429 + $0x2f0] sm:$0xff]
    %v1525 = vld [vmem:[%s1429 + $0x2f8] sm:$0xff]
    %v1526 = vld [vmem:[%s1429 + $0x300] sm:$0xff]
    %v1527 = vld [vmem:[%s1429 + $0x308] sm:$0xff]
    %v1528 = vld [vmem:[%s1429 + $0x310] sm:$0xff]
    %v1529 = vld [vmem:[%s1429 + $0x318] sm:$0xff]
    %v1530 = vld [vmem:[%s1429 + $0x320] sm:$0xff]
    %v1531 = vld [vmem:[%s1429 + $0x328] sm:$0xff]
    %v1532 = vld [vmem:[%s1429 + $0x330] sm:$0xff]
    %v1533 = vld [vmem:[%s1429 + $0x338] sm:$0xff]
    %v1534 = vld [vmem:[%s1429 + $0x340] sm:$0xff]
    %v1535 = vld [vmem:[%s1429 + $0x348] sm:$0xff]
    %v1536 = vld [vmem:[%s1429 + $0x350] sm:$0xff]
    %v1537 = vld [vmem:[%s1429 + $0x358] sm:$0xff]
    %v1538 = vld [vmem:[%s1429 + $0x360] sm:$0xff]
    %v1539 = vld [vmem:[%s1429 + $0x368] sm:$0xff]
    %v1540 = vld [vmem:[%s1429 + $0x370] sm:$0xff]
    %v1541 = vld [vmem:[%s1429 + $0x378] sm:$0xff]
    %v1542 = vld [vmem:[%s1429 + $0x380] sm:$0xff]
    %v1543 = vld [vmem:[%s1429 + $0x388] sm:$0xff]
    %v1544 = vld [vmem:[%s1429 + $0x390] sm:$0xff]
    %v1545 = vld [vmem:[%s1429 + $0x398] sm:$0xff]
    %v1546 = vld [vmem:[%s1429 + $0x3a0] sm:$0xff]
    %v1547 = vld [vmem:[%s1429 + $0x3a8] sm:$0xff]
    %v1548 = vld [vmem:[%s1429 + $0x3b0] sm:$0xff]
    %v1549 = vld [vmem:[%s1429 + $0x3b8] sm:$0xff]
    %v1550 = vld [vmem:[%s1429 + $0x3c0] sm:$0xff]
    %v1551 = vld [vmem:[%s1429 + $0x3c8] sm:$0xff]
    %v1552 = vld [vmem:[%s1429 + $0x3d0] sm:$0xff]
    %v1553 = vld [vmem:[%s1429 + $0x3d8] sm:$0xff]
    %v1554 = vld [vmem:[%s1429 + $0x3e0] sm:$0xff]
    %v1555 = vld [vmem:[%s1429 + $0x3e8] sm:$0xff]
    %v1556 = vld [vmem:[%s1429 + $0x3f0] sm:$0xff]
    %v1557 = vld [vmem:[%s1429 + $0x3f8] sm:$0xff]
    %1558 = vmatpush.msra.mxu0 %v1445
    %1559 = vmatpush.msra.mxu0 %v1444
    %1560 = vmatpush.msra.mxu0 %v1443
    %1561 = vmatpush.msra.mxu0 %v1442
    %1562 = vmatpush.msra.mxu0 %v1441
    %1563 = vmatpush.msra.mxu0 %v1440
    %1564 = vmatpush.msra.mxu0 %v1439
    %1565 = vmatpush.msra.mxu0 %v1438
    %1566 = vmatpush.msra.mxu0 %v1437
    %1567 = vmatpush.msra.mxu0 %v1436
    %1568 = vmatpush.msra.mxu0 %v1435
    %1569 = vmatpush.msra.mxu0 %v1434
    %1570 = vmatpush.msra.mxu0 %v1433
    %1571 = vmatpush.msra.mxu0 %v1432
    %1572 = vmatpush.msra.mxu0 %v1431
    %1573 = vmatpush.msra.mxu0 %v1430
    %1574 = vmatmul.f32.gmra.mxu0 %v1421
    %v1575 = vpop.f32.mrf.mxu0
    %v1576 = vadd.f32 0.0, %v1575
    %1577 = vdwg.mxu0
    %1578 = vmatpush.msra.mxu0 %v1461
    %1579 = vmatpush.msra.mxu0 %v1460
    %1580 = vmatpush.msra.mxu0 %v1459
    %1581 = vmatpush.msra.mxu0 %v1458
    %1582 = vmatpush.msra.mxu0 %v1457
    %1583 = vmatpush.msra.mxu0 %v1456
    %1584 = vmatpush.msra.mxu0 %v1455
    %1585 = vmatpush.msra.mxu0 %v1454
    %1586 = vmatpush.msra.mxu0 %v1453
    %1587 = vmatpush.msra.mxu0 %v1452
    %1588 = vmatpush.msra.mxu0 %v1451
    %1589 = vmatpush.msra.mxu0 %v1450
    %1590 = vmatpush.msra.mxu0 %v1449
    %1591 = vmatpush.msra.mxu0 %v1448
    %1592 = vmatpush.msra.mxu0 %v1447
    %1593 = vmatpush.msra.mxu0 %v1446
    %1594 = vmatmul.f32.gmra.mxu0 %v1422
    %v1595 = vpop.f32.mrf.mxu0
    %v1596 = vadd.f32 %v1576, %v1595
    %1597 = vdwg.mxu0
    %1598 = vmatpush.msra.mxu0 %v1477
    %1599 = vmatpush.msra.mxu0 %v1476
    %1600 = vmatpush.msra.mxu0 %v1475
    %1601 = vmatpush.msra.mxu0 %v1474
    %1602 = vmatpush.msra.mxu0 %v1473
    %1603 = vmatpush.msra.mxu0 %v1472
    %1604 = vmatpush.msra.mxu0 %v1471
    %1605 = vmatpush.msra.mxu0 %v1470
    %1606 = vmatpush.msra.mxu0 %v1469
    %1607 = vmatpush.msra.mxu0 %v1468
    %1608 = vmatpush.msra.mxu0 %v1467
    %1609 = vmatpush.msra.mxu0 %v1466
    %1610 = vmatpush.msra.mxu0 %v1465
    %1611 = vmatpush.msra.mxu0 %v1464
    %1612 = vmatpush.msra.mxu0 %v1463
    %1613 = vmatpush.msra.mxu0 %v1462
    %1614 = vmatmul.f32.gmra.mxu0 %v1423
    %v1615 = vpop.f32.mrf.mxu0
    %v1616 = vadd.f32 %v1596, %v1615
    %1617 = vdwg.mxu0
    %1618 = vmatpush.msra.mxu0 %v1493
    %1619 = vmatpush.msra.mxu0 %v1492
    %1620 = vmatpush.msra.mxu0 %v1491
    %1621 = vmatpush.msra.mxu0 %v1490
    %1622 = vmatpush.msra.mxu0 %v1489
    %1623 = vmatpush.msra.mxu0 %v1488
    %1624 = vmatpush.msra.mxu0 %v1487
    %1625 = vmatpush.msra.mxu0 %v1486
    %1626 = vmatpush.msra.mxu0 %v1485
    %1627 = vmatpush.msra.mxu0 %v1484
    %1628 = vmatpush.msra.mxu0 %v1483
    %1629 = vmatpush.msra.mxu0 %v1482
    %1630 = vmatpush.msra.mxu0 %v1481
    %1631 = vmatpush.msra.mxu0 %v1480
    %1632 = vmatpush.msra.mxu0 %v1479
    %1633 = vmatpush.msra.mxu0 %v1478
    %1634 = vmatmul.f32.gmra.mxu0 %v1424
    %v1635 = vpop.f32.mrf.mxu0
    %v1636 = vadd.f32 %v1616, %v1635
    %1637 = vdwg.mxu0
    %1638 = vmatpush.msra.mxu0 %v1509
    %1639 = vmatpush.msra.mxu0 %v1508
    %1640 = vmatpush.msra.mxu0 %v1507
    %1641 = vmatpush.msra.mxu0 %v1506
    %1642 = vmatpush.msra.mxu0 %v1505
    %1643 = vmatpush.msra.mxu0 %v1504
    %1644 = vmatpush.msra.mxu0 %v1503
    %1645 = vmatpush.msra.mxu0 %v1502
    %1646 = vmatpush.msra.mxu0 %v1501
    %1647 = vmatpush.msra.mxu0 %v1500
    %1648 = vmatpush.msra.mxu0 %v1499
    %1649 = vmatpush.msra.mxu0 %v1498
    %1650 = vmatpush.msra.mxu0 %v1497
    %1651 = vmatpush.msra.mxu0 %v1496
    %1652 = vmatpush.msra.mxu0 %v1495
    %1653 = vmatpush.msra.mxu0 %v1494
    %1654 = vmatmul.f32.gmra.mxu0 %v1425
    %v1655 = vpop.f32.mrf.mxu0
    %v1656 = vadd.f32 %v1636, %v1655
    %1657 = vdwg.mxu0
    %1658 = vmatpush.msra.mxu0 %v1525
    %1659 = vmatpush.msra.mxu0 %v1524
    %1660 = vmatpush.msra.mxu0 %v1523
    %1661 = vmatpush.msra.mxu0 %v1522
    %1662 = vmatpush.msra.mxu0 %v1521
    %1663 = vmatpush.msra.mxu0 %v1520
    %1664 = vmatpush.msra.mxu0 %v1519
    %1665 = vmatpush.msra.mxu0 %v1518
    %1666 = vmatpush.msra.mxu0 %v1517
    %1667 = vmatpush.msra.mxu0 %v1516
    %1668 = vmatpush.msra.mxu0 %v1515
    %1669 = vmatpush.msra.mxu0 %v1514
    %1670 = vmatpush.msra.mxu0 %v1513
    %1671 = vmatpush.msra.mxu0 %v1512
    %1672 = vmatpush.msra.mxu0 %v1511
    %1673 = vmatpush.msra.mxu0 %v1510
    %1674 = vmatmul.f32.gmra.mxu0 %v1426
    %v1675 = vpop.f32.mrf.mxu0
    %v1676 = vadd.f32 %v1656, %v1675
    %1677 = vdwg.mxu0
    %1678 = vmatpush.msra.mxu0 %v1541
    %1679 = vmatpush.msra.mxu0 %v1540
    %1680 = vmatpush.msra.mxu0 %v1539
    %1681 = vmatpush.msra.mxu0 %v1538
    %1682 = vmatpush.msra.mxu0 %v1537
    %1683 = vmatpush.msra.mxu0 %v1536
    %1684 = vmatpush.msra.mxu0 %v1535
    %1685 = vmatpush.msra.mxu0 %v1534
    %1686 = vmatpush.msra.mxu0 %v1533
    %1687 = vmatpush.msra.mxu0 %v1532
    %1688 = vmatpush.msra.mxu0 %v1531
    %1689 = vmatpush.msra.mxu0 %v1530
    %1690 = vmatpush.msra.mxu0 %v1529
    %1691 = vmatpush.msra.mxu0 %v1528
    %1692 = vmatpush.msra.mxu0 %v1527
    %1693 = vmatpush.msra.mxu0 %v1526
    %1694 = vmatmul.f32.gmra.mxu0 %v1427
    %v1695 = vpop.f32.mrf.mxu0
    %v1696 = vadd.f32 %v1676, %v1695
    %1697 = vdwg.mxu0
    %1698 = vmatpush.msra.mxu0 %v1557
    %1699 = vmatpush.msra.mxu0 %v1556
    %1700 = vmatpush.msra.mxu0 %v1555
    %1701 = vmatpush.msra.mxu0 %v1554
    %1702 = vmatpush.msra.mxu0 %v1553
    %1703 = vmatpush.msra.mxu0 %v1552
    %1704 = vmatpush.msra.mxu0 %v1551
    %1705 = vmatpush.msra.mxu0 %v1550
    %1706 = vmatpush.msra.mxu0 %v1549
    %1707 = vmatpush.msra.mxu0 %v1548
    %1708 = vmatpush.msra.mxu0 %v1547
    %1709 = vmatpush.msra.mxu0 %v1546
    %1710 = vmatpush.msra.mxu0 %v1545
    %1711 = vmatpush.msra.mxu0 %v1544
    %1712 = vmatpush.msra.mxu0 %v1543
    %1713 = vmatpush.msra.mxu0 %v1542
    %1714 = vmatmul.f32.gmra.mxu0 %v1428
    %v1715 = vpop.f32.mrf.mxu0
    %v1716 = vadd.f32 %v1696, %v1715
    %1717 = vdwg.mxu0
    %v1718 = vadd.f32 %v1175, %v1716
    %s1719 = scalar_lea.vmem [#allocation5], 192
    %v1720 = vld [vmem:[%s1719] sm:$0xff]
    %v1721 = vld [vmem:[%s1719 + $0x8] sm:$0xff]
    %v1722 = vld [vmem:[%s1719 + $0x10] sm:$0xff]
    %v1723 = vld [vmem:[%s1719 + $0x18] sm:$0xff]
    %v1724 = vld [vmem:[%s1719 + $0x20] sm:$0xff]
    %v1725 = vld [vmem:[%s1719 + $0x28] sm:$0xff]
    %v1726 = vld [vmem:[%s1719 + $0x30] sm:$0xff]
    %v1727 = vld [vmem:[%s1719 + $0x38] sm:$0xff]
    %v1728 = vld [vmem:[%s1719 + $0x140] sm:$0xff]
    %v1729 = vld [vmem:[%s1719 + $0x148] sm:$0xff]
    %v1730 = vld [vmem:[%s1719 + $0x150] sm:$0xff]
    %v1731 = vld [vmem:[%s1719 + $0x158] sm:$0xff]
    %v1732 = vld [vmem:[%s1719 + $0x160] sm:$0xff]
    %v1733 = vld [vmem:[%s1719 + $0x168] sm:$0xff]
    %v1734 = vld [vmem:[%s1719 + $0x170] sm:$0xff]
    %v1735 = vld [vmem:[%s1719 + $0x178] sm:$0xff]
    %v1736 = vld [vmem:[%s1719 + $0x280] sm:$0xff]
    %v1737 = vld [vmem:[%s1719 + $0x288] sm:$0xff]
    %v1738 = vld [vmem:[%s1719 + $0x290] sm:$0xff]
    %v1739 = vld [vmem:[%s1719 + $0x298] sm:$0xff]
    %v1740 = vld [vmem:[%s1719 + $0x2a0] sm:$0xff]
    %v1741 = vld [vmem:[%s1719 + $0x2a8] sm:$0xff]
    %v1742 = vld [vmem:[%s1719 + $0x2b0] sm:$0xff]
    %v1743 = vld [vmem:[%s1719 + $0x2b8] sm:$0xff]
    %v1744 = vld [vmem:[%s1719 + $0x3c0] sm:$0xff]
    %v1745 = vld [vmem:[%s1719 + $0x3c8] sm:$0xff]
    %v1746 = vld [vmem:[%s1719 + $0x3d0] sm:$0xff]
    %v1747 = vld [vmem:[%s1719 + $0x3d8] sm:$0xff]
    %v1748 = vld [vmem:[%s1719 + $0x3e0] sm:$0xff]
    %v1749 = vld [vmem:[%s1719 + $0x3e8] sm:$0xff]
    %v1750 = vld [vmem:[%s1719 + $0x3f0] sm:$0xff]
    %v1751 = vld [vmem:[%s1719 + $0x3f8] sm:$0xff]
    %v1752 = vld [vmem:[%s1719 + $0x500] sm:$0xff]
    %v1753 = vld [vmem:[%s1719 + $0x508] sm:$0xff]
    %v1754 = vld [vmem:[%s1719 + $0x510] sm:$0xff]
    %v1755 = vld [vmem:[%s1719 + $0x518] sm:$0xff]
    %v1756 = vld [vmem:[%s1719 + $0x520] sm:$0xff]
    %v1757 = vld [vmem:[%s1719 + $0x528] sm:$0xff]
    %v1758 = vld [vmem:[%s1719 + $0x530] sm:$0xff]
    %v1759 = vld [vmem:[%s1719 + $0x538] sm:$0xff]
    %v1760 = vld [vmem:[%s1719 + $0x640] sm:$0xff]
    %v1761 = vld [vmem:[%s1719 + $0x648] sm:$0xff]
    %v1762 = vld [vmem:[%s1719 + $0x650] sm:$0xff]
    %v1763 = vld [vmem:[%s1719 + $0x658] sm:$0xff]
    %v1764 = vld [vmem:[%s1719 + $0x660] sm:$0xff]
    %v1765 = vld [vmem:[%s1719 + $0x668] sm:$0xff]
    %v1766 = vld [vmem:[%s1719 + $0x670] sm:$0xff]
    %v1767 = vld [vmem:[%s1719 + $0x678] sm:$0xff]
    %v1768 = vld [vmem:[%s1719 + $0x780] sm:$0xff]
    %v1769 = vld [vmem:[%s1719 + $0x788] sm:$0xff]
    %v1770 = vld [vmem:[%s1719 + $0x790] sm:$0xff]
    %v1771 = vld [vmem:[%s1719 + $0x798] sm:$0xff]
    %v1772 = vld [vmem:[%s1719 + $0x7a0] sm:$0xff]
    %v1773 = vld [vmem:[%s1719 + $0x7a8] sm:$0xff]
    %v1774 = vld [vmem:[%s1719 + $0x7b0] sm:$0xff]
    %v1775 = vld [vmem:[%s1719 + $0x7b8] sm:$0xff]
    %v1776 = vld [vmem:[%s1719 + $0x8c0] sm:$0xff]
    %v1777 = vld [vmem:[%s1719 + $0x8c8] sm:$0xff]
    %v1778 = vld [vmem:[%s1719 + $0x8d0] sm:$0xff]
    %v1779 = vld [vmem:[%s1719 + $0x8d8] sm:$0xff]
    %v1780 = vld [vmem:[%s1719 + $0x8e0] sm:$0xff]
    %v1781 = vld [vmem:[%s1719 + $0x8e8] sm:$0xff]
    %v1782 = vld [vmem:[%s1719 + $0x8f0] sm:$0xff]
    %v1783 = vld [vmem:[%s1719 + $0x8f8] sm:$0xff]
    %s1784 = scalar_lea.vmem [#allocation7], 24
    %v1785 = vld [vmem:[%s1784] sm:$0xff]
    %v1787 = vperm.slane %v1785, 0
    %v1788 = vperm.slane %v1785, 1
    %v1789 = vperm.slane %v1785, 2
    %v1790 = vperm.slane %v1785, 3
    %v1791 = vperm.slane %v1785, 4
    %v1792 = vperm.slane %v1785, 5
    %v1793 = vperm.slane %v1785, 6
    %v1794 = vperm.slane %v1785, 7
    %1803 = vmatpush.msra.mxu0 0.0
    %1804 = vmatpush.msra.mxu0 0.0
    %1805 = vmatpush.msra.mxu0 0.0
    %1806 = vmatpush.msra.mxu0 0.0
    %1807 = vmatpush.msra.mxu0 0.0
    %1808 = vmatpush.msra.mxu0 0.0
    %1809 = vmatpush.msra.mxu0 0.0
    %1810 = vmatpush.msra.mxu0 0.0
    %1811 = vmatpush.msra.mxu0 %v1776
    %1812 = vmatpush.msra.mxu0 %v1768
    %1813 = vmatpush.msra.mxu0 %v1760
    %1814 = vmatpush.msra.mxu0 %v1752
    %1815 = vmatpush.msra.mxu0 %v1744
    %1816 = vmatpush.msra.mxu0 %v1736
    %1817 = vmatpush.msra.mxu0 %v1728
    %1818 = vmatpush.msra.mxu0 %v1720
    %1819 = vmatmul.f32.gmra.mxu0 %v178
    %v1820 = vpop.f32.mrf.mxu0
    %v1821 = vadd.f32 %v1787, %v1820
    %1822 = vdwg.mxu0
    %1823 = vmatpush.msra.mxu0 0.0
    %1824 = vmatpush.msra.mxu0 0.0
    %1825 = vmatpush.msra.mxu0 0.0
    %1826 = vmatpush.msra.mxu0 0.0
    %1827 = vmatpush.msra.mxu0 0.0
    %1828 = vmatpush.msra.mxu0 0.0
    %1829 = vmatpush.msra.mxu0 0.0
    %1830 = vmatpush.msra.mxu0 0.0
    %1831 = vmatpush.msra.mxu0 %v1777
    %1832 = vmatpush.msra.mxu0 %v1769
    %1833 = vmatpush.msra.mxu0 %v1761
    %1834 = vmatpush.msra.mxu0 %v1753
    %1835 = vmatpush.msra.mxu0 %v1745
    %1836 = vmatpush.msra.mxu0 %v1737
    %1837 = vmatpush.msra.mxu0 %v1729
    %1838 = vmatpush.msra.mxu0 %v1721
    %1839 = vmatmul.f32.gmra.mxu0 %v178
    %v1840 = vpop.f32.mrf.mxu0
    %v1841 = vadd.f32 %v1788, %v1840
    %1842 = vdwg.mxu0
    %1843 = vmatpush.msra.mxu0 0.0
    %1844 = vmatpush.msra.mxu0 0.0
    %1845 = vmatpush.msra.mxu0 0.0
    %1846 = vmatpush.msra.mxu0 0.0
    %1847 = vmatpush.msra.mxu0 0.0
    %1848 = vmatpush.msra.mxu0 0.0
    %1849 = vmatpush.msra.mxu0 0.0
    %1850 = vmatpush.msra.mxu0 0.0
    %1851 = vmatpush.msra.mxu0 %v1778
    %1852 = vmatpush.msra.mxu0 %v1770
    %1853 = vmatpush.msra.mxu0 %v1762
    %1854 = vmatpush.msra.mxu0 %v1754
    %1855 = vmatpush.msra.mxu0 %v1746
    %1856 = vmatpush.msra.mxu0 %v1738
    %1857 = vmatpush.msra.mxu0 %v1730
    %1858 = vmatpush.msra.mxu0 %v1722
    %1859 = vmatmul.f32.gmra.mxu0 %v178
    %v1860 = vpop.f32.mrf.mxu0
    %v1861 = vadd.f32 %v1789, %v1860
    %1862 = vdwg.mxu0
    %1863 = vmatpush.msra.mxu0 0.0
    %1864 = vmatpush.msra.mxu0 0.0
    %1865 = vmatpush.msra.mxu0 0.0
    %1866 = vmatpush.msra.mxu0 0.0
    %1867 = vmatpush.msra.mxu0 0.0
    %1868 = vmatpush.msra.mxu0 0.0
    %1869 = vmatpush.msra.mxu0 0.0
    %1870 = vmatpush.msra.mxu0 0.0
    %1871 = vmatpush.msra.mxu0 %v1779
    %1872 = vmatpush.msra.mxu0 %v1771
    %1873 = vmatpush.msra.mxu0 %v1763
    %1874 = vmatpush.msra.mxu0 %v1755
    %1875 = vmatpush.msra.mxu0 %v1747
    %1876 = vmatpush.msra.mxu0 %v1739
    %1877 = vmatpush.msra.mxu0 %v1731
    %1878 = vmatpush.msra.mxu0 %v1723
    %1879 = vmatmul.f32.gmra.mxu0 %v178
    %v1880 = vpop.f32.mrf.mxu0
    %v1881 = vadd.f32 %v1790, %v1880
    %1882 = vdwg.mxu0
    %1883 = vmatpush.msra.mxu0 0.0
    %1884 = vmatpush.msra.mxu0 0.0
    %1885 = vmatpush.msra.mxu0 0.0
    %1886 = vmatpush.msra.mxu0 0.0
    %1887 = vmatpush.msra.mxu0 0.0
    %1888 = vmatpush.msra.mxu0 0.0
    %1889 = vmatpush.msra.mxu0 0.0
    %1890 = vmatpush.msra.mxu0 0.0
    %1891 = vmatpush.msra.mxu0 %v1780
    %1892 = vmatpush.msra.mxu0 %v1772
    %1893 = vmatpush.msra.mxu0 %v1764
    %1894 = vmatpush.msra.mxu0 %v1756
    %1895 = vmatpush.msra.mxu0 %v1748
    %1896 = vmatpush.msra.mxu0 %v1740
    %1897 = vmatpush.msra.mxu0 %v1732
    %1898 = vmatpush.msra.mxu0 %v1724
    %1899 = vmatmul.f32.gmra.mxu0 %v178
    %v1900 = vpop.f32.mrf.mxu0
    %v1901 = vadd.f32 %v1791, %v1900
    %1902 = vdwg.mxu0
    %1903 = vmatpush.msra.mxu0 0.0
    %1904 = vmatpush.msra.mxu0 0.0
    %1905 = vmatpush.msra.mxu0 0.0
    %1906 = vmatpush.msra.mxu0 0.0
    %1907 = vmatpush.msra.mxu0 0.0
    %1908 = vmatpush.msra.mxu0 0.0
    %1909 = vmatpush.msra.mxu0 0.0
    %1910 = vmatpush.msra.mxu0 0.0
    %1911 = vmatpush.msra.mxu0 %v1781
    %1912 = vmatpush.msra.mxu0 %v1773
    %1913 = vmatpush.msra.mxu0 %v1765
    %1914 = vmatpush.msra.mxu0 %v1757
    %1915 = vmatpush.msra.mxu0 %v1749
    %1916 = vmatpush.msra.mxu0 %v1741
    %1917 = vmatpush.msra.mxu0 %v1733
    %1918 = vmatpush.msra.mxu0 %v1725
    %1919 = vmatmul.f32.gmra.mxu0 %v178
    %v1920 = vpop.f32.mrf.mxu0
    %v1921 = vadd.f32 %v1792, %v1920
    %1922 = vdwg.mxu0
    %1923 = vmatpush.msra.mxu0 0.0
    %1924 = vmatpush.msra.mxu0 0.0
    %1925 = vmatpush.msra.mxu0 0.0
    %1926 = vmatpush.msra.mxu0 0.0
    %1927 = vmatpush.msra.mxu0 0.0
    %1928 = vmatpush.msra.mxu0 0.0
    %1929 = vmatpush.msra.mxu0 0.0
    %1930 = vmatpush.msra.mxu0 0.0
    %1931 = vmatpush.msra.mxu0 %v1782
    %1932 = vmatpush.msra.mxu0 %v1774
    %1933 = vmatpush.msra.mxu0 %v1766
    %1934 = vmatpush.msra.mxu0 %v1758
    %1935 = vmatpush.msra.mxu0 %v1750
    %1936 = vmatpush.msra.mxu0 %v1742
    %1937 = vmatpush.msra.mxu0 %v1734
    %1938 = vmatpush.msra.mxu0 %v1726
    %1939 = vmatmul.f32.gmra.mxu0 %v178
    %v1940 = vpop.f32.mrf.mxu0
    %v1941 = vadd.f32 %v1793, %v1940
    %1942 = vdwg.mxu0
    %1943 = vmatpush.msra.mxu0 0.0
    %1944 = vmatpush.msra.mxu0 0.0
    %1945 = vmatpush.msra.mxu0 0.0
    %1946 = vmatpush.msra.mxu0 0.0
    %1947 = vmatpush.msra.mxu0 0.0
    %1948 = vmatpush.msra.mxu0 0.0
    %1949 = vmatpush.msra.mxu0 0.0
    %1950 = vmatpush.msra.mxu0 0.0
    %1951 = vmatpush.msra.mxu0 %v1783
    %1952 = vmatpush.msra.mxu0 %v1775
    %1953 = vmatpush.msra.mxu0 %v1767
    %1954 = vmatpush.msra.mxu0 %v1759
    %1955 = vmatpush.msra.mxu0 %v1751
    %1956 = vmatpush.msra.mxu0 %v1743
    %1957 = vmatpush.msra.mxu0 %v1735
    %1958 = vmatpush.msra.mxu0 %v1727
    %1959 = vmatmul.f32.gmra.mxu0 %v178
    %v1960 = vpop.f32.mrf.mxu0
    %v1961 = vadd.f32 %v1794, %v1960
    %1962 = vdwg.mxu0
    %v1963 = vmax.f32 %v1821, 0.0
    %v1964 = vmax.f32 %v1841, 0.0
    %v1965 = vmax.f32 %v1861, 0.0
    %v1966 = vmax.f32 %v1881, 0.0
    %v1967 = vmax.f32 %v1901, 0.0
    %v1968 = vmax.f32 %v1921, 0.0
    %v1969 = vmax.f32 %v1941, 0.0
    %v1970 = vmax.f32 %v1961, 0.0
    %s1971 = scalar_lea.vmem [#allocation8], 3072
    %v1972 = vld [vmem:[%s1971] sm:$0xff]
    %v1973 = vld [vmem:[%s1971 + $0x8] sm:$0xff]
    %v1974 = vld [vmem:[%s1971 + $0x10] sm:$0xff]
    %v1975 = vld [vmem:[%s1971 + $0x18] sm:$0xff]
    %v1976 = vld [vmem:[%s1971 + $0x20] sm:$0xff]
    %v1977 = vld [vmem:[%s1971 + $0x28] sm:$0xff]
    %v1978 = vld [vmem:[%s1971 + $0x30] sm:$0xff]
    %v1979 = vld [vmem:[%s1971 + $0x38] sm:$0xff]
    %v1980 = vld [vmem:[%s1971 + $0x40] sm:$0xff]
    %v1981 = vld [vmem:[%s1971 + $0x48] sm:$0xff]
    %v1982 = vld [vmem:[%s1971 + $0x50] sm:$0xff]
    %v1983 = vld [vmem:[%s1971 + $0x58] sm:$0xff]
    %v1984 = vld [vmem:[%s1971 + $0x60] sm:$0xff]
    %v1985 = vld [vmem:[%s1971 + $0x68] sm:$0xff]
    %v1986 = vld [vmem:[%s1971 + $0x70] sm:$0xff]
    %v1987 = vld [vmem:[%s1971 + $0x78] sm:$0xff]
    %v1988 = vld [vmem:[%s1971 + $0x80] sm:$0xff]
    %v1989 = vld [vmem:[%s1971 + $0x88] sm:$0xff]
    %v1990 = vld [vmem:[%s1971 + $0x90] sm:$0xff]
    %v1991 = vld [vmem:[%s1971 + $0x98] sm:$0xff]
    %v1992 = vld [vmem:[%s1971 + $0xa0] sm:$0xff]
    %v1993 = vld [vmem:[%s1971 + $0xa8] sm:$0xff]
    %v1994 = vld [vmem:[%s1971 + $0xb0] sm:$0xff]
    %v1995 = vld [vmem:[%s1971 + $0xb8] sm:$0xff]
    %v1996 = vld [vmem:[%s1971 + $0xc0] sm:$0xff]
    %v1997 = vld [vmem:[%s1971 + $0xc8] sm:$0xff]
    %v1998 = vld [vmem:[%s1971 + $0xd0] sm:$0xff]
    %v1999 = vld [vmem:[%s1971 + $0xd8] sm:$0xff]
    %v2000 = vld [vmem:[%s1971 + $0xe0] sm:$0xff]
    %v2001 = vld [vmem:[%s1971 + $0xe8] sm:$0xff]
    %v2002 = vld [vmem:[%s1971 + $0xf0] sm:$0xff]
    %v2003 = vld [vmem:[%s1971 + $0xf8] sm:$0xff]
    %v2004 = vld [vmem:[%s1971 + $0x100] sm:$0xff]
    %v2005 = vld [vmem:[%s1971 + $0x108] sm:$0xff]
    %v2006 = vld [vmem:[%s1971 + $0x110] sm:$0xff]
    %v2007 = vld [vmem:[%s1971 + $0x118] sm:$0xff]
    %v2008 = vld [vmem:[%s1971 + $0x120] sm:$0xff]
    %v2009 = vld [vmem:[%s1971 + $0x128] sm:$0xff]
    %v2010 = vld [vmem:[%s1971 + $0x130] sm:$0xff]
    %v2011 = vld [vmem:[%s1971 + $0x138] sm:$0xff]
    %v2012 = vld [vmem:[%s1971 + $0x140] sm:$0xff]
    %v2013 = vld [vmem:[%s1971 + $0x148] sm:$0xff]
    %v2014 = vld [vmem:[%s1971 + $0x150] sm:$0xff]
    %v2015 = vld [vmem:[%s1971 + $0x158] sm:$0xff]
    %v2016 = vld [vmem:[%s1971 + $0x160] sm:$0xff]
    %v2017 = vld [vmem:[%s1971 + $0x168] sm:$0xff]
    %v2018 = vld [vmem:[%s1971 + $0x170] sm:$0xff]
    %v2019 = vld [vmem:[%s1971 + $0x178] sm:$0xff]
    %v2020 = vld [vmem:[%s1971 + $0x180] sm:$0xff]
    %v2021 = vld [vmem:[%s1971 + $0x188] sm:$0xff]
    %v2022 = vld [vmem:[%s1971 + $0x190] sm:$0xff]
    %v2023 = vld [vmem:[%s1971 + $0x198] sm:$0xff]
    %v2024 = vld [vmem:[%s1971 + $0x1a0] sm:$0xff]
    %v2025 = vld [vmem:[%s1971 + $0x1a8] sm:$0xff]
    %v2026 = vld [vmem:[%s1971 + $0x1b0] sm:$0xff]
    %v2027 = vld [vmem:[%s1971 + $0x1b8] sm:$0xff]
    %v2028 = vld [vmem:[%s1971 + $0x1c0] sm:$0xff]
    %v2029 = vld [vmem:[%s1971 + $0x1c8] sm:$0xff]
    %v2030 = vld [vmem:[%s1971 + $0x1d0] sm:$0xff]
    %v2031 = vld [vmem:[%s1971 + $0x1d8] sm:$0xff]
    %v2032 = vld [vmem:[%s1971 + $0x1e0] sm:$0xff]
    %v2033 = vld [vmem:[%s1971 + $0x1e8] sm:$0xff]
    %v2034 = vld [vmem:[%s1971 + $0x1f0] sm:$0xff]
    %v2035 = vld [vmem:[%s1971 + $0x1f8] sm:$0xff]
    %v2036 = vld [vmem:[%s1971 + $0x200] sm:$0xff]
    %v2037 = vld [vmem:[%s1971 + $0x208] sm:$0xff]
    %v2038 = vld [vmem:[%s1971 + $0x210] sm:$0xff]
    %v2039 = vld [vmem:[%s1971 + $0x218] sm:$0xff]
    %v2040 = vld [vmem:[%s1971 + $0x220] sm:$0xff]
    %v2041 = vld [vmem:[%s1971 + $0x228] sm:$0xff]
    %v2042 = vld [vmem:[%s1971 + $0x230] sm:$0xff]
    %v2043 = vld [vmem:[%s1971 + $0x238] sm:$0xff]
    %v2044 = vld [vmem:[%s1971 + $0x240] sm:$0xff]
    %v2045 = vld [vmem:[%s1971 + $0x248] sm:$0xff]
    %v2046 = vld [vmem:[%s1971 + $0x250] sm:$0xff]
    %v2047 = vld [vmem:[%s1971 + $0x258] sm:$0xff]
    %v2048 = vld [vmem:[%s1971 + $0x260] sm:$0xff]
    %v2049 = vld [vmem:[%s1971 + $0x268] sm:$0xff]
    %v2050 = vld [vmem:[%s1971 + $0x270] sm:$0xff]
    %v2051 = vld [vmem:[%s1971 + $0x278] sm:$0xff]
    %v2052 = vld [vmem:[%s1971 + $0x280] sm:$0xff]
    %v2053 = vld [vmem:[%s1971 + $0x288] sm:$0xff]
    %v2054 = vld [vmem:[%s1971 + $0x290] sm:$0xff]
    %v2055 = vld [vmem:[%s1971 + $0x298] sm:$0xff]
    %v2056 = vld [vmem:[%s1971 + $0x2a0] sm:$0xff]
    %v2057 = vld [vmem:[%s1971 + $0x2a8] sm:$0xff]
    %v2058 = vld [vmem:[%s1971 + $0x2b0] sm:$0xff]
    %v2059 = vld [vmem:[%s1971 + $0x2b8] sm:$0xff]
    %v2060 = vld [vmem:[%s1971 + $0x2c0] sm:$0xff]
    %v2061 = vld [vmem:[%s1971 + $0x2c8] sm:$0xff]
    %v2062 = vld [vmem:[%s1971 + $0x2d0] sm:$0xff]
    %v2063 = vld [vmem:[%s1971 + $0x2d8] sm:$0xff]
    %v2064 = vld [vmem:[%s1971 + $0x2e0] sm:$0xff]
    %v2065 = vld [vmem:[%s1971 + $0x2e8] sm:$0xff]
    %v2066 = vld [vmem:[%s1971 + $0x2f0] sm:$0xff]
    %v2067 = vld [vmem:[%s1971 + $0x2f8] sm:$0xff]
    %v2068 = vld [vmem:[%s1971 + $0x300] sm:$0xff]
    %v2069 = vld [vmem:[%s1971 + $0x308] sm:$0xff]
    %v2070 = vld [vmem:[%s1971 + $0x310] sm:$0xff]
    %v2071 = vld [vmem:[%s1971 + $0x318] sm:$0xff]
    %v2072 = vld [vmem:[%s1971 + $0x320] sm:$0xff]
    %v2073 = vld [vmem:[%s1971 + $0x328] sm:$0xff]
    %v2074 = vld [vmem:[%s1971 + $0x330] sm:$0xff]
    %v2075 = vld [vmem:[%s1971 + $0x338] sm:$0xff]
    %v2076 = vld [vmem:[%s1971 + $0x340] sm:$0xff]
    %v2077 = vld [vmem:[%s1971 + $0x348] sm:$0xff]
    %v2078 = vld [vmem:[%s1971 + $0x350] sm:$0xff]
    %v2079 = vld [vmem:[%s1971 + $0x358] sm:$0xff]
    %v2080 = vld [vmem:[%s1971 + $0x360] sm:$0xff]
    %v2081 = vld [vmem:[%s1971 + $0x368] sm:$0xff]
    %v2082 = vld [vmem:[%s1971 + $0x370] sm:$0xff]
    %v2083 = vld [vmem:[%s1971 + $0x378] sm:$0xff]
    %v2084 = vld [vmem:[%s1971 + $0x380] sm:$0xff]
    %v2085 = vld [vmem:[%s1971 + $0x388] sm:$0xff]
    %v2086 = vld [vmem:[%s1971 + $0x390] sm:$0xff]
    %v2087 = vld [vmem:[%s1971 + $0x398] sm:$0xff]
    %v2088 = vld [vmem:[%s1971 + $0x3a0] sm:$0xff]
    %v2089 = vld [vmem:[%s1971 + $0x3a8] sm:$0xff]
    %v2090 = vld [vmem:[%s1971 + $0x3b0] sm:$0xff]
    %v2091 = vld [vmem:[%s1971 + $0x3b8] sm:$0xff]
    %v2092 = vld [vmem:[%s1971 + $0x3c0] sm:$0xff]
    %v2093 = vld [vmem:[%s1971 + $0x3c8] sm:$0xff]
    %v2094 = vld [vmem:[%s1971 + $0x3d0] sm:$0xff]
    %v2095 = vld [vmem:[%s1971 + $0x3d8] sm:$0xff]
    %v2096 = vld [vmem:[%s1971 + $0x3e0] sm:$0xff]
    %v2097 = vld [vmem:[%s1971 + $0x3e8] sm:$0xff]
    %v2098 = vld [vmem:[%s1971 + $0x3f0] sm:$0xff]
    %v2099 = vld [vmem:[%s1971 + $0x3f8] sm:$0xff]
    %2100 = vmatpush.msra.mxu0 %v1987
    %2101 = vmatpush.msra.mxu0 %v1986
    %2102 = vmatpush.msra.mxu0 %v1985
    %2103 = vmatpush.msra.mxu0 %v1984
    %2104 = vmatpush.msra.mxu0 %v1983
    %2105 = vmatpush.msra.mxu0 %v1982
    %2106 = vmatpush.msra.mxu0 %v1981
    %2107 = vmatpush.msra.mxu0 %v1980
    %2108 = vmatpush.msra.mxu0 %v1979
    %2109 = vmatpush.msra.mxu0 %v1978
    %2110 = vmatpush.msra.mxu0 %v1977
    %2111 = vmatpush.msra.mxu0 %v1976
    %2112 = vmatpush.msra.mxu0 %v1975
    %2113 = vmatpush.msra.mxu0 %v1974
    %2114 = vmatpush.msra.mxu0 %v1973
    %2115 = vmatpush.msra.mxu0 %v1972
    %2116 = vmatmul.f32.gmra.mxu0 %v1963
    %v2117 = vpop.f32.mrf.mxu0
    %v2118 = vadd.f32 0.0, %v2117
    %2119 = vdwg.mxu0
    %2120 = vmatpush.msra.mxu0 %v2003
    %2121 = vmatpush.msra.mxu0 %v2002
    %2122 = vmatpush.msra.mxu0 %v2001
    %2123 = vmatpush.msra.mxu0 %v2000
    %2124 = vmatpush.msra.mxu0 %v1999
    %2125 = vmatpush.msra.mxu0 %v1998
    %2126 = vmatpush.msra.mxu0 %v1997
    %2127 = vmatpush.msra.mxu0 %v1996
    %2128 = vmatpush.msra.mxu0 %v1995
    %2129 = vmatpush.msra.mxu0 %v1994
    %2130 = vmatpush.msra.mxu0 %v1993
    %2131 = vmatpush.msra.mxu0 %v1992
    %2132 = vmatpush.msra.mxu0 %v1991
    %2133 = vmatpush.msra.mxu0 %v1990
    %2134 = vmatpush.msra.mxu0 %v1989
    %2135 = vmatpush.msra.mxu0 %v1988
    %2136 = vmatmul.f32.gmra.mxu0 %v1964
    %v2137 = vpop.f32.mrf.mxu0
    %v2138 = vadd.f32 %v2118, %v2137
    %2139 = vdwg.mxu0
    %2140 = vmatpush.msra.mxu0 %v2019
    %2141 = vmatpush.msra.mxu0 %v2018
    %2142 = vmatpush.msra.mxu0 %v2017
    %2143 = vmatpush.msra.mxu0 %v2016
    %2144 = vmatpush.msra.mxu0 %v2015
    %2145 = vmatpush.msra.mxu0 %v2014
    %2146 = vmatpush.msra.mxu0 %v2013
    %2147 = vmatpush.msra.mxu0 %v2012
    %2148 = vmatpush.msra.mxu0 %v2011
    %2149 = vmatpush.msra.mxu0 %v2010
    %2150 = vmatpush.msra.mxu0 %v2009
    %2151 = vmatpush.msra.mxu0 %v2008
    %2152 = vmatpush.msra.mxu0 %v2007
    %2153 = vmatpush.msra.mxu0 %v2006
    %2154 = vmatpush.msra.mxu0 %v2005
    %2155 = vmatpush.msra.mxu0 %v2004
    %2156 = vmatmul.f32.gmra.mxu0 %v1965
    %v2157 = vpop.f32.mrf.mxu0
    %v2158 = vadd.f32 %v2138, %v2157
    %2159 = vdwg.mxu0
    %2160 = vmatpush.msra.mxu0 %v2035
    %2161 = vmatpush.msra.mxu0 %v2034
    %2162 = vmatpush.msra.mxu0 %v2033
    %2163 = vmatpush.msra.mxu0 %v2032
    %2164 = vmatpush.msra.mxu0 %v2031
    %2165 = vmatpush.msra.mxu0 %v2030
    %2166 = vmatpush.msra.mxu0 %v2029
    %2167 = vmatpush.msra.mxu0 %v2028
    %2168 = vmatpush.msra.mxu0 %v2027
    %2169 = vmatpush.msra.mxu0 %v2026
    %2170 = vmatpush.msra.mxu0 %v2025
    %2171 = vmatpush.msra.mxu0 %v2024
    %2172 = vmatpush.msra.mxu0 %v2023
    %2173 = vmatpush.msra.mxu0 %v2022
    %2174 = vmatpush.msra.mxu0 %v2021
    %2175 = vmatpush.msra.mxu0 %v2020
    %2176 = vmatmul.f32.gmra.mxu0 %v1966
    %v2177 = vpop.f32.mrf.mxu0
    %v2178 = vadd.f32 %v2158, %v2177
    %2179 = vdwg.mxu0
    %2180 = vmatpush.msra.mxu0 %v2051
    %2181 = vmatpush.msra.mxu0 %v2050
    %2182 = vmatpush.msra.mxu0 %v2049
    %2183 = vmatpush.msra.mxu0 %v2048
    %2184 = vmatpush.msra.mxu0 %v2047
    %2185 = vmatpush.msra.mxu0 %v2046
    %2186 = vmatpush.msra.mxu0 %v2045
    %2187 = vmatpush.msra.mxu0 %v2044
    %2188 = vmatpush.msra.mxu0 %v2043
    %2189 = vmatpush.msra.mxu0 %v2042
    %2190 = vmatpush.msra.mxu0 %v2041
    %2191 = vmatpush.msra.mxu0 %v2040
    %2192 = vmatpush.msra.mxu0 %v2039
    %2193 = vmatpush.msra.mxu0 %v2038
    %2194 = vmatpush.msra.mxu0 %v2037
    %2195 = vmatpush.msra.mxu0 %v2036
    %2196 = vmatmul.f32.gmra.mxu0 %v1967
    %v2197 = vpop.f32.mrf.mxu0
    %v2198 = vadd.f32 %v2178, %v2197
    %2199 = vdwg.mxu0
    %2200 = vmatpush.msra.mxu0 %v2067
    %2201 = vmatpush.msra.mxu0 %v2066
    %2202 = vmatpush.msra.mxu0 %v2065
    %2203 = vmatpush.msra.mxu0 %v2064
    %2204 = vmatpush.msra.mxu0 %v2063
    %2205 = vmatpush.msra.mxu0 %v2062
    %2206 = vmatpush.msra.mxu0 %v2061
    %2207 = vmatpush.msra.mxu0 %v2060
    %2208 = vmatpush.msra.mxu0 %v2059
    %2209 = vmatpush.msra.mxu0 %v2058
    %2210 = vmatpush.msra.mxu0 %v2057
    %2211 = vmatpush.msra.mxu0 %v2056
    %2212 = vmatpush.msra.mxu0 %v2055
    %2213 = vmatpush.msra.mxu0 %v2054
    %2214 = vmatpush.msra.mxu0 %v2053
    %2215 = vmatpush.msra.mxu0 %v2052
    %2216 = vmatmul.f32.gmra.mxu0 %v1968
    %v2217 = vpop.f32.mrf.mxu0
    %v2218 = vadd.f32 %v2198, %v2217
    %2219 = vdwg.mxu0
    %2220 = vmatpush.msra.mxu0 %v2083
    %2221 = vmatpush.msra.mxu0 %v2082
    %2222 = vmatpush.msra.mxu0 %v2081
    %2223 = vmatpush.msra.mxu0 %v2080
    %2224 = vmatpush.msra.mxu0 %v2079
    %2225 = vmatpush.msra.mxu0 %v2078
    %2226 = vmatpush.msra.mxu0 %v2077
    %2227 = vmatpush.msra.mxu0 %v2076
    %2228 = vmatpush.msra.mxu0 %v2075
    %2229 = vmatpush.msra.mxu0 %v2074
    %2230 = vmatpush.msra.mxu0 %v2073
    %2231 = vmatpush.msra.mxu0 %v2072
    %2232 = vmatpush.msra.mxu0 %v2071
    %2233 = vmatpush.msra.mxu0 %v2070
    %2234 = vmatpush.msra.mxu0 %v2069
    %2235 = vmatpush.msra.mxu0 %v2068
    %2236 = vmatmul.f32.gmra.mxu0 %v1969
    %v2237 = vpop.f32.mrf.mxu0
    %v2238 = vadd.f32 %v2218, %v2237
    %2239 = vdwg.mxu0
    %2240 = vmatpush.msra.mxu0 %v2099
    %2241 = vmatpush.msra.mxu0 %v2098
    %2242 = vmatpush.msra.mxu0 %v2097
    %2243 = vmatpush.msra.mxu0 %v2096
    %2244 = vmatpush.msra.mxu0 %v2095
    %2245 = vmatpush.msra.mxu0 %v2094
    %2246 = vmatpush.msra.mxu0 %v2093
    %2247 = vmatpush.msra.mxu0 %v2092
    %2248 = vmatpush.msra.mxu0 %v2091
    %2249 = vmatpush.msra.mxu0 %v2090
    %2250 = vmatpush.msra.mxu0 %v2089
    %2251 = vmatpush.msra.mxu0 %v2088
    %2252 = vmatpush.msra.mxu0 %v2087
    %2253 = vmatpush.msra.mxu0 %v2086
    %2254 = vmatpush.msra.mxu0 %v2085
    %2255 = vmatpush.msra.mxu0 %v2084
    %2256 = vmatmul.f32.gmra.mxu0 %v1970
    %v2257 = vpop.f32.mrf.mxu0
    %v2258 = vadd.f32 %v2238, %v2257
    %2259 = vdwg.mxu0
    %v2260 = vadd.f32 %v1718, %v2258
    %s2261 = scalar_lea.vmem [#allocation5], 256
    %v2262 = vld [vmem:[%s2261] sm:$0xff]
    %v2263 = vld [vmem:[%s2261 + $0x8] sm:$0xff]
    %v2264 = vld [vmem:[%s2261 + $0x10] sm:$0xff]
    %v2265 = vld [vmem:[%s2261 + $0x18] sm:$0xff]
    %v2266 = vld [vmem:[%s2261 + $0x20] sm:$0xff]
    %v2267 = vld [vmem:[%s2261 + $0x28] sm:$0xff]
    %v2268 = vld [vmem:[%s2261 + $0x30] sm:$0xff]
    %v2269 = vld [vmem:[%s2261 + $0x38] sm:$0xff]
    %v2270 = vld [vmem:[%s2261 + $0x140] sm:$0xff]
    %v2271 = vld [vmem:[%s2261 + $0x148] sm:$0xff]
    %v2272 = vld [vmem:[%s2261 + $0x150] sm:$0xff]
    %v2273 = vld [vmem:[%s2261 + $0x158] sm:$0xff]
    %v2274 = vld [vmem:[%s2261 + $0x160] sm:$0xff]
    %v2275 = vld [vmem:[%s2261 + $0x168] sm:$0xff]
    %v2276 = vld [vmem:[%s2261 + $0x170] sm:$0xff]
    %v2277 = vld [vmem:[%s2261 + $0x178] sm:$0xff]
    %v2278 = vld [vmem:[%s2261 + $0x280] sm:$0xff]
    %v2279 = vld [vmem:[%s2261 + $0x288] sm:$0xff]
    %v2280 = vld [vmem:[%s2261 + $0x290] sm:$0xff]
    %v2281 = vld [vmem:[%s2261 + $0x298] sm:$0xff]
    %v2282 = vld [vmem:[%s2261 + $0x2a0] sm:$0xff]
    %v2283 = vld [vmem:[%s2261 + $0x2a8] sm:$0xff]
    %v2284 = vld [vmem:[%s2261 + $0x2b0] sm:$0xff]
    %v2285 = vld [vmem:[%s2261 + $0x2b8] sm:$0xff]
    %v2286 = vld [vmem:[%s2261 + $0x3c0] sm:$0xff]
    %v2287 = vld [vmem:[%s2261 + $0x3c8] sm:$0xff]
    %v2288 = vld [vmem:[%s2261 + $0x3d0] sm:$0xff]
    %v2289 = vld [vmem:[%s2261 + $0x3d8] sm:$0xff]
    %v2290 = vld [vmem:[%s2261 + $0x3e0] sm:$0xff]
    %v2291 = vld [vmem:[%s2261 + $0x3e8] sm:$0xff]
    %v2292 = vld [vmem:[%s2261 + $0x3f0] sm:$0xff]
    %v2293 = vld [vmem:[%s2261 + $0x3f8] sm:$0xff]
    %v2294 = vld [vmem:[%s2261 + $0x500] sm:$0xff]
    %v2295 = vld [vmem:[%s2261 + $0x508] sm:$0xff]
    %v2296 = vld [vmem:[%s2261 + $0x510] sm:$0xff]
    %v2297 = vld [vmem:[%s2261 + $0x518] sm:$0xff]
    %v2298 = vld [vmem:[%s2261 + $0x520] sm:$0xff]
    %v2299 = vld [vmem:[%s2261 + $0x528] sm:$0xff]
    %v2300 = vld [vmem:[%s2261 + $0x530] sm:$0xff]
    %v2301 = vld [vmem:[%s2261 + $0x538] sm:$0xff]
    %v2302 = vld [vmem:[%s2261 + $0x640] sm:$0xff]
    %v2303 = vld [vmem:[%s2261 + $0x648] sm:$0xff]
    %v2304 = vld [vmem:[%s2261 + $0x650] sm:$0xff]
    %v2305 = vld [vmem:[%s2261 + $0x658] sm:$0xff]
    %v2306 = vld [vmem:[%s2261 + $0x660] sm:$0xff]
    %v2307 = vld [vmem:[%s2261 + $0x668] sm:$0xff]
    %v2308 = vld [vmem:[%s2261 + $0x670] sm:$0xff]
    %v2309 = vld [vmem:[%s2261 + $0x678] sm:$0xff]
    %v2310 = vld [vmem:[%s2261 + $0x780] sm:$0xff]
    %v2311 = vld [vmem:[%s2261 + $0x788] sm:$0xff]
    %v2312 = vld [vmem:[%s2261 + $0x790] sm:$0xff]
    %v2313 = vld [vmem:[%s2261 + $0x798] sm:$0xff]
    %v2314 = vld [vmem:[%s2261 + $0x7a0] sm:$0xff]
    %v2315 = vld [vmem:[%s2261 + $0x7a8] sm:$0xff]
    %v2316 = vld [vmem:[%s2261 + $0x7b0] sm:$0xff]
    %v2317 = vld [vmem:[%s2261 + $0x7b8] sm:$0xff]
    %v2318 = vld [vmem:[%s2261 + $0x8c0] sm:$0xff]
    %v2319 = vld [vmem:[%s2261 + $0x8c8] sm:$0xff]
    %v2320 = vld [vmem:[%s2261 + $0x8d0] sm:$0xff]
    %v2321 = vld [vmem:[%s2261 + $0x8d8] sm:$0xff]
    %v2322 = vld [vmem:[%s2261 + $0x8e0] sm:$0xff]
    %v2323 = vld [vmem:[%s2261 + $0x8e8] sm:$0xff]
    %v2324 = vld [vmem:[%s2261 + $0x8f0] sm:$0xff]
    %v2325 = vld [vmem:[%s2261 + $0x8f8] sm:$0xff]
    %s2326 = scalar_lea.vmem [#allocation7], 32
    %v2327 = vld [vmem:[%s2326] sm:$0xff]
    %v2329 = vperm.slane %v2327, 0
    %v2330 = vperm.slane %v2327, 1
    %v2331 = vperm.slane %v2327, 2
    %v2332 = vperm.slane %v2327, 3
    %v2333 = vperm.slane %v2327, 4
    %v2334 = vperm.slane %v2327, 5
    %v2335 = vperm.slane %v2327, 6
    %v2336 = vperm.slane %v2327, 7
    %2345 = vmatpush.msra.mxu0 0.0
    %2346 = vmatpush.msra.mxu0 0.0
    %2347 = vmatpush.msra.mxu0 0.0
    %2348 = vmatpush.msra.mxu0 0.0
    %2349 = vmatpush.msra.mxu0 0.0
    %2350 = vmatpush.msra.mxu0 0.0
    %2351 = vmatpush.msra.mxu0 0.0
    %2352 = vmatpush.msra.mxu0 0.0
    %2353 = vmatpush.msra.mxu0 %v2318
    %2354 = vmatpush.msra.mxu0 %v2310
    %2355 = vmatpush.msra.mxu0 %v2302
    %2356 = vmatpush.msra.mxu0 %v2294
    %2357 = vmatpush.msra.mxu0 %v2286
    %2358 = vmatpush.msra.mxu0 %v2278
    %2359 = vmatpush.msra.mxu0 %v2270
    %2360 = vmatpush.msra.mxu0 %v2262
    %2361 = vmatmul.f32.gmra.mxu0 %v178
    %v2362 = vpop.f32.mrf.mxu0
    %v2363 = vadd.f32 %v2329, %v2362
    %2364 = vdwg.mxu0
    %2365 = vmatpush.msra.mxu0 0.0
    %2366 = vmatpush.msra.mxu0 0.0
    %2367 = vmatpush.msra.mxu0 0.0
    %2368 = vmatpush.msra.mxu0 0.0
    %2369 = vmatpush.msra.mxu0 0.0
    %2370 = vmatpush.msra.mxu0 0.0
    %2371 = vmatpush.msra.mxu0 0.0
    %2372 = vmatpush.msra.mxu0 0.0
    %2373 = vmatpush.msra.mxu0 %v2319
    %2374 = vmatpush.msra.mxu0 %v2311
    %2375 = vmatpush.msra.mxu0 %v2303
    %2376 = vmatpush.msra.mxu0 %v2295
    %2377 = vmatpush.msra.mxu0 %v2287
    %2378 = vmatpush.msra.mxu0 %v2279
    %2379 = vmatpush.msra.mxu0 %v2271
    %2380 = vmatpush.msra.mxu0 %v2263
    %2381 = vmatmul.f32.gmra.mxu0 %v178
    %v2382 = vpop.f32.mrf.mxu0
    %v2383 = vadd.f32 %v2330, %v2382
    %2384 = vdwg.mxu0
    %2385 = vmatpush.msra.mxu0 0.0
    %2386 = vmatpush.msra.mxu0 0.0
    %2387 = vmatpush.msra.mxu0 0.0
    %2388 = vmatpush.msra.mxu0 0.0
    %2389 = vmatpush.msra.mxu0 0.0
    %2390 = vmatpush.msra.mxu0 0.0
    %2391 = vmatpush.msra.mxu0 0.0
    %2392 = vmatpush.msra.mxu0 0.0
    %2393 = vmatpush.msra.mxu0 %v2320
    %2394 = vmatpush.msra.mxu0 %v2312
    %2395 = vmatpush.msra.mxu0 %v2304
    %2396 = vmatpush.msra.mxu0 %v2296
    %2397 = vmatpush.msra.mxu0 %v2288
    %2398 = vmatpush.msra.mxu0 %v2280
    %2399 = vmatpush.msra.mxu0 %v2272
    %2400 = vmatpush.msra.mxu0 %v2264
    %2401 = vmatmul.f32.gmra.mxu0 %v178
    %v2402 = vpop.f32.mrf.mxu0
    %v2403 = vadd.f32 %v2331, %v2402
    %2404 = vdwg.mxu0
    %2405 = vmatpush.msra.mxu0 0.0
    %2406 = vmatpush.msra.mxu0 0.0
    %2407 = vmatpush.msra.mxu0 0.0
    %2408 = vmatpush.msra.mxu0 0.0
    %2409 = vmatpush.msra.mxu0 0.0
    %2410 = vmatpush.msra.mxu0 0.0
    %2411 = vmatpush.msra.mxu0 0.0
    %2412 = vmatpush.msra.mxu0 0.0
    %2413 = vmatpush.msra.mxu0 %v2321
    %2414 = vmatpush.msra.mxu0 %v2313
    %2415 = vmatpush.msra.mxu0 %v2305
    %2416 = vmatpush.msra.mxu0 %v2297
    %2417 = vmatpush.msra.mxu0 %v2289
    %2418 = vmatpush.msra.mxu0 %v2281
    %2419 = vmatpush.msra.mxu0 %v2273
    %2420 = vmatpush.msra.mxu0 %v2265
    %2421 = vmatmul.f32.gmra.mxu0 %v178
    %v2422 = vpop.f32.mrf.mxu0
    %v2423 = vadd.f32 %v2332, %v2422
    %2424 = vdwg.mxu0
    %2425 = vmatpush.msra.mxu0 0.0
    %2426 = vmatpush.msra.mxu0 0.0
    %2427 = vmatpush.msra.mxu0 0.0
    %2428 = vmatpush.msra.mxu0 0.0
    %2429 = vmatpush.msra.mxu0 0.0
    %2430 = vmatpush.msra.mxu0 0.0
    %2431 = vmatpush.msra.mxu0 0.0
    %2432 = vmatpush.msra.mxu0 0.0
    %2433 = vmatpush.msra.mxu0 %v2322
    %2434 = vmatpush.msra.mxu0 %v2314
    %2435 = vmatpush.msra.mxu0 %v2306
    %2436 = vmatpush.msra.mxu0 %v2298
    %2437 = vmatpush.msra.mxu0 %v2290
    %2438 = vmatpush.msra.mxu0 %v2282
    %2439 = vmatpush.msra.mxu0 %v2274
    %2440 = vmatpush.msra.mxu0 %v2266
    %2441 = vmatmul.f32.gmra.mxu0 %v178
    %v2442 = vpop.f32.mrf.mxu0
    %v2443 = vadd.f32 %v2333, %v2442
    %2444 = vdwg.mxu0
    %2445 = vmatpush.msra.mxu0 0.0
    %2446 = vmatpush.msra.mxu0 0.0
    %2447 = vmatpush.msra.mxu0 0.0
    %2448 = vmatpush.msra.mxu0 0.0
    %2449 = vmatpush.msra.mxu0 0.0
    %2450 = vmatpush.msra.mxu0 0.0
    %2451 = vmatpush.msra.mxu0 0.0
    %2452 = vmatpush.msra.mxu0 0.0
    %2453 = vmatpush.msra.mxu0 %v2323
    %2454 = vmatpush.msra.mxu0 %v2315
    %2455 = vmatpush.msra.mxu0 %v2307
    %2456 = vmatpush.msra.mxu0 %v2299
    %2457 = vmatpush.msra.mxu0 %v2291
    %2458 = vmatpush.msra.mxu0 %v2283
    %2459 = vmatpush.msra.mxu0 %v2275
    %2460 = vmatpush.msra.mxu0 %v2267
    %2461 = vmatmul.f32.gmra.mxu0 %v178
    %v2462 = vpop.f32.mrf.mxu0
    %v2463 = vadd.f32 %v2334, %v2462
    %2464 = vdwg.mxu0
    %2465 = vmatpush.msra.mxu0 0.0
    %2466 = vmatpush.msra.mxu0 0.0
    %2467 = vmatpush.msra.mxu0 0.0
    %2468 = vmatpush.msra.mxu0 0.0
    %2469 = vmatpush.msra.mxu0 0.0
    %2470 = vmatpush.msra.mxu0 0.0
    %2471 = vmatpush.msra.mxu0 0.0
    %2472 = vmatpush.msra.mxu0 0.0
    %2473 = vmatpush.msra.mxu0 %v2324
    %2474 = vmatpush.msra.mxu0 %v2316
    %2475 = vmatpush.msra.mxu0 %v2308
    %2476 = vmatpush.msra.mxu0 %v2300
    %2477 = vmatpush.msra.mxu0 %v2292
    %2478 = vmatpush.msra.mxu0 %v2284
    %2479 = vmatpush.msra.mxu0 %v2276
    %2480 = vmatpush.msra.mxu0 %v2268
    %2481 = vmatmul.f32.gmra.mxu0 %v178
    %v2482 = vpop.f32.mrf.mxu0
    %v2483 = vadd.f32 %v2335, %v2482
    %2484 = vdwg.mxu0
    %2485 = vmatpush.msra.mxu0 0.0
    %2486 = vmatpush.msra.mxu0 0.0
    %2487 = vmatpush.msra.mxu0 0.0
    %2488 = vmatpush.msra.mxu0 0.0
    %2489 = vmatpush.msra.mxu0 0.0
    %2490 = vmatpush.msra.mxu0 0.0
    %2491 = vmatpush.msra.mxu0 0.0
    %2492 = vmatpush.msra.mxu0 0.0
    %2493 = vmatpush.msra.mxu0 %v2325
    %2494 = vmatpush.msra.mxu0 %v2317
    %2495 = vmatpush.msra.mxu0 %v2309
    %2496 = vmatpush.msra.mxu0 %v2301
    %2497 = vmatpush.msra.mxu0 %v2293
    %2498 = vmatpush.msra.mxu0 %v2285
    %2499 = vmatpush.msra.mxu0 %v2277
    %2500 = vmatpush.msra.mxu0 %v2269
    %2501 = vmatmul.f32.gmra.mxu0 %v178
    %v2502 = vpop.f32.mrf.mxu0
    %v2503 = vadd.f32 %v2336, %v2502
    %2504 = vdwg.mxu0
    %v2505 = vmax.f32 %v2363, 0.0
    %v2506 = vmax.f32 %v2383, 0.0
    %v2507 = vmax.f32 %v2403, 0.0
    %v2508 = vmax.f32 %v2423, 0.0
    %v2509 = vmax.f32 %v2443, 0.0
    %v2510 = vmax.f32 %v2463, 0.0
    %v2511 = vmax.f32 %v2483, 0.0
    %v2512 = vmax.f32 %v2503, 0.0
    %s2513 = scalar_lea.vmem [#allocation8], 4096
    %v2514 = vld [vmem:[%s2513] sm:$0xff]
    %v2515 = vld [vmem:[%s2513 + $0x8] sm:$0xff]
    %v2516 = vld [vmem:[%s2513 + $0x10] sm:$0xff]
    %v2517 = vld [vmem:[%s2513 + $0x18] sm:$0xff]
    %v2518 = vld [vmem:[%s2513 + $0x20] sm:$0xff]
    %v2519 = vld [vmem:[%s2513 + $0x28] sm:$0xff]
    %v2520 = vld [vmem:[%s2513 + $0x30] sm:$0xff]
    %v2521 = vld [vmem:[%s2513 + $0x38] sm:$0xff]
    %v2522 = vld [vmem:[%s2513 + $0x40] sm:$0xff]
    %v2523 = vld [vmem:[%s2513 + $0x48] sm:$0xff]
    %v2524 = vld [vmem:[%s2513 + $0x50] sm:$0xff]
    %v2525 = vld [vmem:[%s2513 + $0x58] sm:$0xff]
    %v2526 = vld [vmem:[%s2513 + $0x60] sm:$0xff]
    %v2527 = vld [vmem:[%s2513 + $0x68] sm:$0xff]
    %v2528 = vld [vmem:[%s2513 + $0x70] sm:$0xff]
    %v2529 = vld [vmem:[%s2513 + $0x78] sm:$0xff]
    %v2530 = vld [vmem:[%s2513 + $0x80] sm:$0xff]
    %v2531 = vld [vmem:[%s2513 + $0x88] sm:$0xff]
    %v2532 = vld [vmem:[%s2513 + $0x90] sm:$0xff]
    %v2533 = vld [vmem:[%s2513 + $0x98] sm:$0xff]
    %v2534 = vld [vmem:[%s2513 + $0xa0] sm:$0xff]
    %v2535 = vld [vmem:[%s2513 + $0xa8] sm:$0xff]
    %v2536 = vld [vmem:[%s2513 + $0xb0] sm:$0xff]
    %v2537 = vld [vmem:[%s2513 + $0xb8] sm:$0xff]
    %v2538 = vld [vmem:[%s2513 + $0xc0] sm:$0xff]
    %v2539 = vld [vmem:[%s2513 + $0xc8] sm:$0xff]
    %v2540 = vld [vmem:[%s2513 + $0xd0] sm:$0xff]
    %v2541 = vld [vmem:[%s2513 + $0xd8] sm:$0xff]
    %v2542 = vld [vmem:[%s2513 + $0xe0] sm:$0xff]
    %v2543 = vld [vmem:[%s2513 + $0xe8] sm:$0xff]
    %v2544 = vld [vmem:[%s2513 + $0xf0] sm:$0xff]
    %v2545 = vld [vmem:[%s2513 + $0xf8] sm:$0xff]
    %v2546 = vld [vmem:[%s2513 + $0x100] sm:$0xff]
    %v2547 = vld [vmem:[%s2513 + $0x108] sm:$0xff]
    %v2548 = vld [vmem:[%s2513 + $0x110] sm:$0xff]
    %v2549 = vld [vmem:[%s2513 + $0x118] sm:$0xff]
    %v2550 = vld [vmem:[%s2513 + $0x120] sm:$0xff]
    %v2551 = vld [vmem:[%s2513 + $0x128] sm:$0xff]
    %v2552 = vld [vmem:[%s2513 + $0x130] sm:$0xff]
    %v2553 = vld [vmem:[%s2513 + $0x138] sm:$0xff]
    %v2554 = vld [vmem:[%s2513 + $0x140] sm:$0xff]
    %v2555 = vld [vmem:[%s2513 + $0x148] sm:$0xff]
    %v2556 = vld [vmem:[%s2513 + $0x150] sm:$0xff]
    %v2557 = vld [vmem:[%s2513 + $0x158] sm:$0xff]
    %v2558 = vld [vmem:[%s2513 + $0x160] sm:$0xff]
    %v2559 = vld [vmem:[%s2513 + $0x168] sm:$0xff]
    %v2560 = vld [vmem:[%s2513 + $0x170] sm:$0xff]
    %v2561 = vld [vmem:[%s2513 + $0x178] sm:$0xff]
    %v2562 = vld [vmem:[%s2513 + $0x180] sm:$0xff]
    %v2563 = vld [vmem:[%s2513 + $0x188] sm:$0xff]
    %v2564 = vld [vmem:[%s2513 + $0x190] sm:$0xff]
    %v2565 = vld [vmem:[%s2513 + $0x198] sm:$0xff]
    %v2566 = vld [vmem:[%s2513 + $0x1a0] sm:$0xff]
    %v2567 = vld [vmem:[%s2513 + $0x1a8] sm:$0xff]
    %v2568 = vld [vmem:[%s2513 + $0x1b0] sm:$0xff]
    %v2569 = vld [vmem:[%s2513 + $0x1b8] sm:$0xff]
    %v2570 = vld [vmem:[%s2513 + $0x1c0] sm:$0xff]
    %v2571 = vld [vmem:[%s2513 + $0x1c8] sm:$0xff]
    %v2572 = vld [vmem:[%s2513 + $0x1d0] sm:$0xff]
    %v2573 = vld [vmem:[%s2513 + $0x1d8] sm:$0xff]
    %v2574 = vld [vmem:[%s2513 + $0x1e0] sm:$0xff]
    %v2575 = vld [vmem:[%s2513 + $0x1e8] sm:$0xff]
    %v2576 = vld [vmem:[%s2513 + $0x1f0] sm:$0xff]
    %v2577 = vld [vmem:[%s2513 + $0x1f8] sm:$0xff]
    %v2578 = vld [vmem:[%s2513 + $0x200] sm:$0xff]
    %v2579 = vld [vmem:[%s2513 + $0x208] sm:$0xff]
    %v2580 = vld [vmem:[%s2513 + $0x210] sm:$0xff]
    %v2581 = vld [vmem:[%s2513 + $0x218] sm:$0xff]
    %v2582 = vld [vmem:[%s2513 + $0x220] sm:$0xff]
    %v2583 = vld [vmem:[%s2513 + $0x228] sm:$0xff]
    %v2584 = vld [vmem:[%s2513 + $0x230] sm:$0xff]
    %v2585 = vld [vmem:[%s2513 + $0x238] sm:$0xff]
    %v2586 = vld [vmem:[%s2513 + $0x240] sm:$0xff]
    %v2587 = vld [vmem:[%s2513 + $0x248] sm:$0xff]
    %v2588 = vld [vmem:[%s2513 + $0x250] sm:$0xff]
    %v2589 = vld [vmem:[%s2513 + $0x258] sm:$0xff]
    %v2590 = vld [vmem:[%s2513 + $0x260] sm:$0xff]
    %v2591 = vld [vmem:[%s2513 + $0x268] sm:$0xff]
    %v2592 = vld [vmem:[%s2513 + $0x270] sm:$0xff]
    %v2593 = vld [vmem:[%s2513 + $0x278] sm:$0xff]
    %v2594 = vld [vmem:[%s2513 + $0x280] sm:$0xff]
    %v2595 = vld [vmem:[%s2513 + $0x288] sm:$0xff]
    %v2596 = vld [vmem:[%s2513 + $0x290] sm:$0xff]
    %v2597 = vld [vmem:[%s2513 + $0x298] sm:$0xff]
    %v2598 = vld [vmem:[%s2513 + $0x2a0] sm:$0xff]
    %v2599 = vld [vmem:[%s2513 + $0x2a8] sm:$0xff]
    %v2600 = vld [vmem:[%s2513 + $0x2b0] sm:$0xff]
    %v2601 = vld [vmem:[%s2513 + $0x2b8] sm:$0xff]
    %v2602 = vld [vmem:[%s2513 + $0x2c0] sm:$0xff]
    %v2603 = vld [vmem:[%s2513 + $0x2c8] sm:$0xff]
    %v2604 = vld [vmem:[%s2513 + $0x2d0] sm:$0xff]
    %v2605 = vld [vmem:[%s2513 + $0x2d8] sm:$0xff]
    %v2606 = vld [vmem:[%s2513 + $0x2e0] sm:$0xff]
    %v2607 = vld [vmem:[%s2513 + $0x2e8] sm:$0xff]
    %v2608 = vld [vmem:[%s2513 + $0x2f0] sm:$0xff]
    %v2609 = vld [vmem:[%s2513 + $0x2f8] sm:$0xff]
    %v2610 = vld [vmem:[%s2513 + $0x300] sm:$0xff]
    %v2611 = vld [vmem:[%s2513 + $0x308] sm:$0xff]
    %v2612 = vld [vmem:[%s2513 + $0x310] sm:$0xff]
    %v2613 = vld [vmem:[%s2513 + $0x318] sm:$0xff]
    %v2614 = vld [vmem:[%s2513 + $0x320] sm:$0xff]
    %v2615 = vld [vmem:[%s2513 + $0x328] sm:$0xff]
    %v2616 = vld [vmem:[%s2513 + $0x330] sm:$0xff]
    %v2617 = vld [vmem:[%s2513 + $0x338] sm:$0xff]
    %v2618 = vld [vmem:[%s2513 + $0x340] sm:$0xff]
    %v2619 = vld [vmem:[%s2513 + $0x348] sm:$0xff]
    %v2620 = vld [vmem:[%s2513 + $0x350] sm:$0xff]
    %v2621 = vld [vmem:[%s2513 + $0x358] sm:$0xff]
    %v2622 = vld [vmem:[%s2513 + $0x360] sm:$0xff]
    %v2623 = vld [vmem:[%s2513 + $0x368] sm:$0xff]
    %v2624 = vld [vmem:[%s2513 + $0x370] sm:$0xff]
    %v2625 = vld [vmem:[%s2513 + $0x378] sm:$0xff]
    %v2626 = vld [vmem:[%s2513 + $0x380] sm:$0xff]
    %v2627 = vld [vmem:[%s2513 + $0x388] sm:$0xff]
    %v2628 = vld [vmem:[%s2513 + $0x390] sm:$0xff]
    %v2629 = vld [vmem:[%s2513 + $0x398] sm:$0xff]
    %v2630 = vld [vmem:[%s2513 + $0x3a0] sm:$0xff]
    %v2631 = vld [vmem:[%s2513 + $0x3a8] sm:$0xff]
    %v2632 = vld [vmem:[%s2513 + $0x3b0] sm:$0xff]
    %v2633 = vld [vmem:[%s2513 + $0x3b8] sm:$0xff]
    %v2634 = vld [vmem:[%s2513 + $0x3c0] sm:$0xff]
    %v2635 = vld [vmem:[%s2513 + $0x3c8] sm:$0xff]
    %v2636 = vld [vmem:[%s2513 + $0x3d0] sm:$0xff]
    %v2637 = vld [vmem:[%s2513 + $0x3d8] sm:$0xff]
    %v2638 = vld [vmem:[%s2513 + $0x3e0] sm:$0xff]
    %v2639 = vld [vmem:[%s2513 + $0x3e8] sm:$0xff]
    %v2640 = vld [vmem:[%s2513 + $0x3f0] sm:$0xff]
    %v2641 = vld [vmem:[%s2513 + $0x3f8] sm:$0xff]
    %2642 = vmatpush.msra.mxu0 %v2529
    %2643 = vmatpush.msra.mxu0 %v2528
    %2644 = vmatpush.msra.mxu0 %v2527
    %2645 = vmatpush.msra.mxu0 %v2526
    %2646 = vmatpush.msra.mxu0 %v2525
    %2647 = vmatpush.msra.mxu0 %v2524
    %2648 = vmatpush.msra.mxu0 %v2523
    %2649 = vmatpush.msra.mxu0 %v2522
    %2650 = vmatpush.msra.mxu0 %v2521
    %2651 = vmatpush.msra.mxu0 %v2520
    %2652 = vmatpush.msra.mxu0 %v2519
    %2653 = vmatpush.msra.mxu0 %v2518
    %2654 = vmatpush.msra.mxu0 %v2517
    %2655 = vmatpush.msra.mxu0 %v2516
    %2656 = vmatpush.msra.mxu0 %v2515
    %2657 = vmatpush.msra.mxu0 %v2514
    %2658 = vmatmul.f32.gmra.mxu0 %v2505
    %v2659 = vpop.f32.mrf.mxu0
    %v2660 = vadd.f32 0.0, %v2659
    %2661 = vdwg.mxu0
    %2662 = vmatpush.msra.mxu0 %v2545
    %2663 = vmatpush.msra.mxu0 %v2544
    %2664 = vmatpush.msra.mxu0 %v2543
    %2665 = vmatpush.msra.mxu0 %v2542
    %2666 = vmatpush.msra.mxu0 %v2541
    %2667 = vmatpush.msra.mxu0 %v2540
    %2668 = vmatpush.msra.mxu0 %v2539
    %2669 = vmatpush.msra.mxu0 %v2538
    %2670 = vmatpush.msra.mxu0 %v2537
    %2671 = vmatpush.msra.mxu0 %v2536
    %2672 = vmatpush.msra.mxu0 %v2535
    %2673 = vmatpush.msra.mxu0 %v2534
    %2674 = vmatpush.msra.mxu0 %v2533
    %2675 = vmatpush.msra.mxu0 %v2532
    %2676 = vmatpush.msra.mxu0 %v2531
    %2677 = vmatpush.msra.mxu0 %v2530
    %2678 = vmatmul.f32.gmra.mxu0 %v2506
    %v2679 = vpop.f32.mrf.mxu0
    %v2680 = vadd.f32 %v2660, %v2679
    %2681 = vdwg.mxu0
    %2682 = vmatpush.msra.mxu0 %v2561
    %2683 = vmatpush.msra.mxu0 %v2560
    %2684 = vmatpush.msra.mxu0 %v2559
    %2685 = vmatpush.msra.mxu0 %v2558
    %2686 = vmatpush.msra.mxu0 %v2557
    %2687 = vmatpush.msra.mxu0 %v2556
    %2688 = vmatpush.msra.mxu0 %v2555
    %2689 = vmatpush.msra.mxu0 %v2554
    %2690 = vmatpush.msra.mxu0 %v2553
    %2691 = vmatpush.msra.mxu0 %v2552
    %2692 = vmatpush.msra.mxu0 %v2551
    %2693 = vmatpush.msra.mxu0 %v2550
    %2694 = vmatpush.msra.mxu0 %v2549
    %2695 = vmatpush.msra.mxu0 %v2548
    %2696 = vmatpush.msra.mxu0 %v2547
    %2697 = vmatpush.msra.mxu0 %v2546
    %2698 = vmatmul.f32.gmra.mxu0 %v2507
    %v2699 = vpop.f32.mrf.mxu0
    %v2700 = vadd.f32 %v2680, %v2699
    %2701 = vdwg.mxu0
    %2702 = vmatpush.msra.mxu0 %v2577
    %2703 = vmatpush.msra.mxu0 %v2576
    %2704 = vmatpush.msra.mxu0 %v2575
    %2705 = vmatpush.msra.mxu0 %v2574
    %2706 = vmatpush.msra.mxu0 %v2573
    %2707 = vmatpush.msra.mxu0 %v2572
    %2708 = vmatpush.msra.mxu0 %v2571
    %2709 = vmatpush.msra.mxu0 %v2570
    %2710 = vmatpush.msra.mxu0 %v2569
    %2711 = vmatpush.msra.mxu0 %v2568
    %2712 = vmatpush.msra.mxu0 %v2567
    %2713 = vmatpush.msra.mxu0 %v2566
    %2714 = vmatpush.msra.mxu0 %v2565
    %2715 = vmatpush.msra.mxu0 %v2564
    %2716 = vmatpush.msra.mxu0 %v2563
    %2717 = vmatpush.msra.mxu0 %v2562
    %2718 = vmatmul.f32.gmra.mxu0 %v2508
    %v2719 = vpop.f32.mrf.mxu0
    %v2720 = vadd.f32 %v2700, %v2719
    %2721 = vdwg.mxu0
    %2722 = vmatpush.msra.mxu0 %v2593
    %2723 = vmatpush.msra.mxu0 %v2592
    %2724 = vmatpush.msra.mxu0 %v2591
    %2725 = vmatpush.msra.mxu0 %v2590
    %2726 = vmatpush.msra.mxu0 %v2589
    %2727 = vmatpush.msra.mxu0 %v2588
    %2728 = vmatpush.msra.mxu0 %v2587
    %2729 = vmatpush.msra.mxu0 %v2586
    %2730 = vmatpush.msra.mxu0 %v2585
    %2731 = vmatpush.msra.mxu0 %v2584
    %2732 = vmatpush.msra.mxu0 %v2583
    %2733 = vmatpush.msra.mxu0 %v2582
    %2734 = vmatpush.msra.mxu0 %v2581
    %2735 = vmatpush.msra.mxu0 %v2580
    %2736 = vmatpush.msra.mxu0 %v2579
    %2737 = vmatpush.msra.mxu0 %v2578
    %2738 = vmatmul.f32.gmra.mxu0 %v2509
    %v2739 = vpop.f32.mrf.mxu0
    %v2740 = vadd.f32 %v2720, %v2739
    %2741 = vdwg.mxu0
    %2742 = vmatpush.msra.mxu0 %v2609
    %2743 = vmatpush.msra.mxu0 %v2608
    %2744 = vmatpush.msra.mxu0 %v2607
    %2745 = vmatpush.msra.mxu0 %v2606
    %2746 = vmatpush.msra.mxu0 %v2605
    %2747 = vmatpush.msra.mxu0 %v2604
    %2748 = vmatpush.msra.mxu0 %v2603
    %2749 = vmatpush.msra.mxu0 %v2602
    %2750 = vmatpush.msra.mxu0 %v2601
    %2751 = vmatpush.msra.mxu0 %v2600
    %2752 = vmatpush.msra.mxu0 %v2599
    %2753 = vmatpush.msra.mxu0 %v2598
    %2754 = vmatpush.msra.mxu0 %v2597
    %2755 = vmatpush.msra.mxu0 %v2596
    %2756 = vmatpush.msra.mxu0 %v2595
    %2757 = vmatpush.msra.mxu0 %v2594
    %2758 = vmatmul.f32.gmra.mxu0 %v2510
    %v2759 = vpop.f32.mrf.mxu0
    %v2760 = vadd.f32 %v2740, %v2759
    %2761 = vdwg.mxu0
    %2762 = vmatpush.msra.mxu0 %v2625
    %2763 = vmatpush.msra.mxu0 %v2624
    %2764 = vmatpush.msra.mxu0 %v2623
    %2765 = vmatpush.msra.mxu0 %v2622
    %2766 = vmatpush.msra.mxu0 %v2621
    %2767 = vmatpush.msra.mxu0 %v2620
    %2768 = vmatpush.msra.mxu0 %v2619
    %2769 = vmatpush.msra.mxu0 %v2618
    %2770 = vmatpush.msra.mxu0 %v2617
    %2771 = vmatpush.msra.mxu0 %v2616
    %2772 = vmatpush.msra.mxu0 %v2615
    %2773 = vmatpush.msra.mxu0 %v2614
    %2774 = vmatpush.msra.mxu0 %v2613
    %2775 = vmatpush.msra.mxu0 %v2612
    %2776 = vmatpush.msra.mxu0 %v2611
    %2777 = vmatpush.msra.mxu0 %v2610
    %2778 = vmatmul.f32.gmra.mxu0 %v2511
    %v2779 = vpop.f32.mrf.mxu0
    %v2780 = vadd.f32 %v2760, %v2779
    %2781 = vdwg.mxu0
    %2782 = vmatpush.msra.mxu0 %v2641
    %2783 = vmatpush.msra.mxu0 %v2640
    %2784 = vmatpush.msra.mxu0 %v2639
    %2785 = vmatpush.msra.mxu0 %v2638
    %2786 = vmatpush.msra.mxu0 %v2637
    %2787 = vmatpush.msra.mxu0 %v2636
    %2788 = vmatpush.msra.mxu0 %v2635
    %2789 = vmatpush.msra.mxu0 %v2634
    %2790 = vmatpush.msra.mxu0 %v2633
    %2791 = vmatpush.msra.mxu0 %v2632
    %2792 = vmatpush.msra.mxu0 %v2631
    %2793 = vmatpush.msra.mxu0 %v2630
    %2794 = vmatpush.msra.mxu0 %v2629
    %2795 = vmatpush.msra.mxu0 %v2628
    %2796 = vmatpush.msra.mxu0 %v2627
    %2797 = vmatpush.msra.mxu0 %v2626
    %2798 = vmatmul.f32.gmra.mxu0 %v2512
    %v2799 = vpop.f32.mrf.mxu0
    %v2800 = vadd.f32 %v2780, %v2799
    %2801 = vdwg.mxu0
    %v2802 = vadd.f32 %v2260, %v2800
    %v2803 = vld [vmem:[#allocation10] sm:$0x1]
    %v2805 = vperm.slane %v2803, 0
    %v2807 = vadd.f32 %v2802, %v2805
    %2808 = vst [vmem:[#allocation11] sm:$0xff] %v2807
    // Predicated region
    $region42: #{tpu_custom_call.1} parent=1 // pred_check
      _
    $region43: #{tpu_custom_call.1} parent=1 // pred_check_branch
      %2810 = sbr.rel (0) target = $region45
    $region44: #{tpu_custom_call.1} parent=1 // pred_region
      %2812 = vsyncadd [#allocation4], 0
      %s2814 = sshll.u32 [#allocation11], 4
      %s2815 = int_to_ptr.vmem [resolvable:$true] %s2814
      %s2816 = sshll.u32 %s5, 4
      %s2817 = int_to_ptr.hbm [resolvable:$true] %s2816
      %2819 = dma.vmem_to_hbm [thread:$0]  %s2815, 128, %s2817, [#allocation4]
    $region45: #{tpu_custom_call.1} parent=1 // pred_fallthru
      _
    // Predicated region
    $region46: #{tpu_custom_call.1} parent=1 // pred_check
      _
    $region47: #{tpu_custom_call.1} parent=1 // pred_check_branch
      %2821 = sbr.rel (0) target = $region49
    $region48: #{tpu_custom_call.1} parent=1 // pred_region
      %2823 = dma.done [#allocation4], 128
    $region49: #{tpu_custom_call.1} parent=1 // pred_fallthru
      _
    %2824 = vsyncpa [#allocation3], 1
    %2825 = vsyncpa [#allocation6], 1
    %2826 = vsyncpa [#allocation9], 1
    %2827 = vsyncpa [#allocation4], 1

</llo_original>
